<compile_context>
chip_gen: v6e
topology: v6e:2x2x1
jax: 0.10.0
libtpu: 0.0.40
codegen_flags: <defaults>
</compile_context>

<pallas_src>
import jax
import jax.numpy as jnp
from jax.experimental import pallas as pl
from jax.experimental.pallas import tpu as pltpu


def conv_bn_relu_kernel(x_ref, w_ref, bias_ref, o_ref, col_ref):
    # x_ref:    [1, H+2, W+2, Cin_p]  bf16  (one batch sample, spatially pre-padded)
    # w_ref:    [9*Cin_p, Cout_p]     bf16  (3x3 taps flattened HWIO; BN scale folded in)
    # bias_ref: [1, Cout_p]           f32   (beta + scale*(conv_bias - running_mean))
    # o_ref:    [1, H*W, Cout_p]      f32   (lane-dense output slab)
    # col_ref:  [H*W, 9*Cin_p]        bf16  VMEM scratch (im2col buffer)
    _, hp, wp, cin = x_ref.shape
    h, w = hp - 2, wp - 2

    # im2col: one shifted-window copy per tap into the scratch, then ONE MXU matmul
    # with contraction K = 9*Cin_p (instead of nine tiny-K matmuls + f32 patch temps).
    for kh in range(3):
        for kw in range(3):
            tap = kh * 3 + kw
            col_ref[:, tap * cin:(tap + 1) * cin] = (
                x_ref[0, kh:kh + h, kw:kw + w, :].reshape(h * w, cin))

    acc = jnp.dot(col_ref[...], w_ref[...], preferred_element_type=jnp.float32)
    acc = acc + bias_ref[...]                 # folded BN bias (f32 epilogue)
    o_ref[0] = jnp.maximum(acc, 0.0)          # ReLU, lane-dense 128-wide store


def conv_layer_forward(x_nchw, weight_oihw, conv_bias, gamma, beta,
                       running_mean, running_var, eps=1e-5):
    N, Cin, H, W = x_nchw.shape
    Cout = weight_oihw.shape[0]
    Hp, Wp = H + 2, W + 2

    LANE, SUB = 128, 8
    Cin_p = ((Cin + SUB - 1) // SUB) * SUB          # sublane-friendly input channels
    Cout_p = ((Cout + LANE - 1) // LANE) * LANE     # lane-dense output channels

    f32 = jnp.float32
    # Fold BN (inference) into an affine around the conv: y = scale*conv(x) + bias.
    inv_std = 1.0 / jnp.sqrt(running_var.astype(f32) + eps)
    scale = gamma.astype(f32) * inv_std
    bias = beta.astype(f32) + scale * (conv_bias.astype(f32) - running_mean.astype(f32))

    # Weights: OIHW -> HWIO, fold BN scale into the (linear) conv weights, pad channels,
    # flatten to [9*Cin_p, Cout_p], cast to bf16 for the MXU.
    w_hwio = (jnp.transpose(weight_oihw.astype(f32), (2, 3, 1, 0))
              * scale[None, None, None, :])
    w_pad = jnp.zeros((3, 3, Cin_p, Cout_p), f32).at[:, :, :Cin, :Cout].set(w_hwio)
    w2d = w_pad.reshape(9 * Cin_p, Cout_p).astype(jnp.bfloat16)

    bias2d = jnp.zeros((1, Cout_p), f32).at[0, :Cout].set(bias)

    # Input: NCHW -> NHWC, zero-pad spatial (padding=1) + channels, cast to bf16.
    x_nhwc = jnp.transpose(x_nchw, (0, 2, 3, 1)).astype(f32)
    xp = jnp.pad(x_nhwc,
                 ((0, 0), (1, 1), (1, 1), (0, Cin_p - Cin))).astype(jnp.bfloat16)

    out_slab = pl.pallas_call(
        conv_bn_relu_kernel,
        out_shape=jax.ShapeDtypeStruct((N, H * W, Cout_p), jnp.float32),
        grid_spec=pltpu.PrefetchScalarGridSpec(
            num_scalar_prefetch=0,
            grid=(N,),                                              # pipeline over batch
            in_specs=[
                pl.BlockSpec((1, Hp, Wp, Cin_p), lambda n: (n, 0, 0, 0)),
                pl.BlockSpec((9 * Cin_p, Cout_p), lambda n: (0, 0)),  # resident weights
                pl.BlockSpec((1, Cout_p), lambda n: (0, 0)),          # resident bias
            ],
            out_specs=pl.BlockSpec((1, H * W, Cout_p), lambda n: (n, 0, 0)),
            scratch_shapes=[pltpu.VMEM((H * W, 9 * Cin_p), jnp.bfloat16)],
        ),
        compiler_params=pltpu.CompilerParams(
            dimension_semantics=("parallel",),      # shard batch across TCs (v7x megacore)
            vmem_limit_bytes=48 * 1024 * 1024,      # safe under v7x's 64 MiB physical VMEM
        ),
    )(xp, w2d, bias2d)

    # Un-pad channels, restore PyTorch's NCHW convention.
    out = out_slab.reshape(N, H, W, Cout_p)[..., :Cout]
    return jnp.transpose(out, (0, 3, 1, 2))


def reference_forward(x, weight, conv_bias, gamma, beta, mean, var, eps=1e-5):
    y = jax.lax.conv_general_dilated(
        x.astype(jnp.float32), weight.astype(jnp.float32),
        window_strides=(1, 1), padding=((1, 1), (1, 1)),
        dimension_numbers=("NCHW", "OIHW", "NCHW"))
    y = y + conv_bias[None, :, None, None]
    y = gamma[None, :, None, None] * (y - mean[None, :, None, None]) \
        / jnp.sqrt(var + eps)[None, :, None, None] + beta[None, :, None, None]
    return jnp.maximum(y, 0.0)


if __name__ == "__main__":
    key = jax.random.PRNGKey(0)
    k_x, k_w, k_b, k_g, k_be, k_m, k_v = jax.random.split(key, 7)

    N, Cin, Cout, H, W = 2, 4, 8, 16, 16

    x = jax.random.normal(k_x, (N, Cin, H, W), dtype=jnp.float32)
    weight = jax.random.normal(k_w, (Cout, Cin, 3, 3), dtype=jnp.float32) * 0.1
    conv_bias = jax.random.normal(k_b, (Cout,), dtype=jnp.float32) * 0.1
    gamma = 1.0 + 0.1 * jax.random.normal(k_g, (Cout,), dtype=jnp.float32)
    beta = 0.1 * jax.random.normal(k_be, (Cout,), dtype=jnp.float32)
    running_mean = 0.1 * jax.random.normal(k_m, (Cout,), dtype=jnp.float32)
    running_var = 1.0 + 0.1 * jnp.abs(jax.random.normal(k_v, (Cout,), dtype=jnp.float32))

    out = conv_layer_forward(x, weight, conv_bias, gamma, beta,
                             running_mean, running_var)
    out = jax.block_until_ready(out)

    ref = reference_forward(x, weight, conv_bias, gamma, beta,
                            running_mean, running_var)
    assert out.shape == (N, Cout, H, W)
    # bf16 operands on the MXU (f32 accumulation) -> slightly looser tolerance.
    assert jnp.allclose(out, ref, atol=5e-2, rtol=5e-2), "mismatch vs reference"

    print("KERNEL_OK")
</pallas_src>

<mosaic_0001>
module attributes {stable_mosaic.version = 11 : i64} {
  func.func @conv_bn_relu_kernel(%arg0: i32, %arg1: memref<1x18x18x8xbf16, #tpu.memory_space<vmem>>, %arg2: memref<72x128xbf16, #tpu.memory_space<vmem>>, %arg3: memref<1x128xf32, #tpu.memory_space<vmem>>, %arg4: memref<1x256x128xf32, #tpu.memory_space<vmem>>, %arg5: memref<256x72xbf16, #tpu.memory_space<vmem>>) attributes {dimension_semantics = [#tpu.dimension_semantics<parallel>], iteration_bounds = array<i64: 2>, scalar_prefetch = 0 : i64, scratch_operands = 1 : i64, tpu.core_type = #tpu.core_type<tc>, window_params = [{transform_indices = @transform_0, window_bounds = array<i64: 1, 18, 18, 8>}, {pipeline_mode = #tpu.pipeline_mode<synchronous>, transform_indices = @transform_1, window_bounds = array<i64: 72, 128>}, {pipeline_mode = #tpu.pipeline_mode<synchronous>, transform_indices = @transform_2, window_bounds = array<i64: 1, 128>}, {transform_indices = @transform_3, window_bounds = array<i64: 1, 256, 128>}]} {
    %c0 = arith.constant 0 : index
    %c0_0 = arith.constant 0 : index
    %c0_1 = arith.constant 0 : index
    %c0_2 = arith.constant 0 : index
    %0 = vector.load %arg1[%c0, %c0_0, %c0_1, %c0_2] : memref<1x18x18x8xbf16, #tpu.memory_space<vmem>>, vector<1x16x16x8xbf16>
    %1 = vector.shape_cast %0 : vector<1x16x16x8xbf16> to vector<16x16x8xbf16>
    %2 = vector.shape_cast %1 : vector<16x16x8xbf16> to vector<256x8xbf16>
    %c0_3 = arith.constant 0 : index
    %c0_4 = arith.constant 0 : index
    %3 = vector.load %arg5[%c0_3, %c0_4] : memref<256x72xbf16, #tpu.memory_space<vmem>>, vector<256x8xbf16>
    tpu.vector_store %arg5[%c0_3, %c0_4], %2 {strides = array<i32>} : memref<256x72xbf16, #tpu.memory_space<vmem>>, vector<256x8xbf16>,
    %c0_5 = arith.constant 0 : index
    %c0_6 = arith.constant 0 : index
    %c1 = arith.constant 1 : index
    %c0_7 = arith.constant 0 : index
    %4 = vector.load %arg1[%c0_5, %c0_6, %c1, %c0_7] : memref<1x18x18x8xbf16, #tpu.memory_space<vmem>>, vector<1x16x16x8xbf16>
    %5 = vector.shape_cast %4 : vector<1x16x16x8xbf16> to vector<16x16x8xbf16>
    %6 = vector.shape_cast %5 : vector<16x16x8xbf16> to vector<256x8xbf16>
    %c0_8 = arith.constant 0 : index
    %c8 = arith.constant 8 : index
    %7 = vector.load %arg5[%c0_8, %c8] : memref<256x72xbf16, #tpu.memory_space<vmem>>, vector<256x8xbf16>
    tpu.vector_store %arg5[%c0_8, %c8], %6 {strides = array<i32>} : memref<256x72xbf16, #tpu.memory_space<vmem>>, vector<256x8xbf16>,
    %c0_9 = arith.constant 0 : index
    %c0_10 = arith.constant 0 : index
    %c2 = arith.constant 2 : index
    %c0_11 = arith.constant 0 : index
    %8 = vector.load %arg1[%c0_9, %c0_10, %c2, %c0_11] : memref<1x18x18x8xbf16, #tpu.memory_space<vmem>>, vector<1x16x16x8xbf16>
    %9 = vector.shape_cast %8 : vector<1x16x16x8xbf16> to vector<16x16x8xbf16>
    %10 = vector.shape_cast %9 : vector<16x16x8xbf16> to vector<256x8xbf16>
    %c0_12 = arith.constant 0 : index
    %c16 = arith.constant 16 : index
    %11 = vector.load %arg5[%c0_12, %c16] : memref<256x72xbf16, #tpu.memory_space<vmem>>, vector<256x8xbf16>
    tpu.vector_store %arg5[%c0_12, %c16], %10 {strides = array<i32>} : memref<256x72xbf16, #tpu.memory_space<vmem>>, vector<256x8xbf16>,
    %c0_13 = arith.constant 0 : index
    %c1_14 = arith.constant 1 : index
    %c0_15 = arith.constant 0 : index
    %c0_16 = arith.constant 0 : index
    %12 = vector.load %arg1[%c0_13, %c1_14, %c0_15, %c0_16] : memref<1x18x18x8xbf16, #tpu.memory_space<vmem>>, vector<1x16x16x8xbf16>
    %13 = vector.shape_cast %12 : vector<1x16x16x8xbf16> to vector<16x16x8xbf16>
    %14 = vector.shape_cast %13 : vector<16x16x8xbf16> to vector<256x8xbf16>
    %c0_17 = arith.constant 0 : index
    %c24 = arith.constant 24 : index
    %15 = vector.load %arg5[%c0_17, %c24] : memref<256x72xbf16, #tpu.memory_space<vmem>>, vector<256x8xbf16>
    tpu.vector_store %arg5[%c0_17, %c24], %14 {strides = array<i32>} : memref<256x72xbf16, #tpu.memory_space<vmem>>, vector<256x8xbf16>,
    %c0_18 = arith.constant 0 : index
    %c1_19 = arith.constant 1 : index
    %c1_20 = arith.constant 1 : index
    %c0_21 = arith.constant 0 : index
    %16 = vector.load %arg1[%c0_18, %c1_19, %c1_20, %c0_21] : memref<1x18x18x8xbf16, #tpu.memory_space<vmem>>, vector<1x16x16x8xbf16>
    %17 = vector.shape_cast %16 : vector<1x16x16x8xbf16> to vector<16x16x8xbf16>
    %18 = vector.shape_cast %17 : vector<16x16x8xbf16> to vector<256x8xbf16>
    %c0_22 = arith.constant 0 : index
    %c32 = arith.constant 32 : index
    %19 = vector.load %arg5[%c0_22, %c32] : memref<256x72xbf16, #tpu.memory_space<vmem>>, vector<256x8xbf16>
    tpu.vector_store %arg5[%c0_22, %c32], %18 {strides = array<i32>} : memref<256x72xbf16, #tpu.memory_space<vmem>>, vector<256x8xbf16>,
    %c0_23 = arith.constant 0 : index
    %c1_24 = arith.constant 1 : index
    %c2_25 = arith.constant 2 : index
    %c0_26 = arith.constant 0 : index
    %20 = vector.load %arg1[%c0_23, %c1_24, %c2_25, %c0_26] : memref<1x18x18x8xbf16, #tpu.memory_space<vmem>>, vector<1x16x16x8xbf16>
    %21 = vector.shape_cast %20 : vector<1x16x16x8xbf16> to vector<16x16x8xbf16>
    %22 = vector.shape_cast %21 : vector<16x16x8xbf16> to vector<256x8xbf16>
    %c0_27 = arith.constant 0 : index
    %c40 = arith.constant 40 : index
    %23 = vector.load %arg5[%c0_27, %c40] : memref<256x72xbf16, #tpu.memory_space<vmem>>, vector<256x8xbf16>
    tpu.vector_store %arg5[%c0_27, %c40], %22 {strides = array<i32>} : memref<256x72xbf16, #tpu.memory_space<vmem>>, vector<256x8xbf16>,
    %c0_28 = arith.constant 0 : index
    %c2_29 = arith.constant 2 : index
    %c0_30 = arith.constant 0 : index
    %c0_31 = arith.constant 0 : index
    %24 = vector.load %arg1[%c0_28, %c2_29, %c0_30, %c0_31] : memref<1x18x18x8xbf16, #tpu.memory_space<vmem>>, vector<1x16x16x8xbf16>
    %25 = vector.shape_cast %24 : vector<1x16x16x8xbf16> to vector<16x16x8xbf16>
    %26 = vector.shape_cast %25 : vector<16x16x8xbf16> to vector<256x8xbf16>
    %c0_32 = arith.constant 0 : index
    %c48 = arith.constant 48 : index
    %27 = vector.load %arg5[%c0_32, %c48] : memref<256x72xbf16, #tpu.memory_space<vmem>>, vector<256x8xbf16>
    tpu.vector_store %arg5[%c0_32, %c48], %26 {strides = array<i32>} : memref<256x72xbf16, #tpu.memory_space<vmem>>, vector<256x8xbf16>,
    %c0_33 = arith.constant 0 : index
    %c2_34 = arith.constant 2 : index
    %c1_35 = arith.constant 1 : index
    %c0_36 = arith.constant 0 : index
    %28 = vector.load %arg1[%c0_33, %c2_34, %c1_35, %c0_36] : memref<1x18x18x8xbf16, #tpu.memory_space<vmem>>, vector<1x16x16x8xbf16>
    %29 = vector.shape_cast %28 : vector<1x16x16x8xbf16> to vector<16x16x8xbf16>
    %30 = vector.shape_cast %29 : vector<16x16x8xbf16> to vector<256x8xbf16>
    %c0_37 = arith.constant 0 : index
    %c56 = arith.constant 56 : index
    %31 = vector.load %arg5[%c0_37, %c56] : memref<256x72xbf16, #tpu.memory_space<vmem>>, vector<256x8xbf16>
    tpu.vector_store %arg5[%c0_37, %c56], %30 {strides = array<i32>} : memref<256x72xbf16, #tpu.memory_space<vmem>>, vector<256x8xbf16>,
    %c0_38 = arith.constant 0 : index
    %c2_39 = arith.constant 2 : index
    %c2_40 = arith.constant 2 : index
    %c0_41 = arith.constant 0 : index
    %32 = vector.load %arg1[%c0_38, %c2_39, %c2_40, %c0_41] : memref<1x18x18x8xbf16, #tpu.memory_space<vmem>>, vector<1x16x16x8xbf16>
    %33 = vector.shape_cast %32 : vector<1x16x16x8xbf16> to vector<16x16x8xbf16>
    %34 = vector.shape_cast %33 : vector<16x16x8xbf16> to vector<256x8xbf16>
    %c0_42 = arith.constant 0 : index
    %c64 = arith.constant 64 : index
    %35 = vector.load %arg5[%c0_42, %c64] : memref<256x72xbf16, #tpu.memory_space<vmem>>, vector<256x8xbf16>
    tpu.vector_store %arg5[%c0_42, %c64], %34 {strides = array<i32>} : memref<256x72xbf16, #tpu.memory_space<vmem>>, vector<256x8xbf16>,
    %c0_43 = arith.constant 0 : index
    %c0_44 = arith.constant 0 : index
    %36 = vector.load %arg5[%c0_43, %c0_44] : memref<256x72xbf16, #tpu.memory_space<vmem>>, vector<256x72xbf16>
    %c0_45 = arith.constant 0 : index
    %c0_46 = arith.constant 0 : index
    %37 = vector.load %arg2[%c0_45, %c0_46] : memref<72x128xbf16, #tpu.memory_space<vmem>>, vector<72x128xbf16>
    %cst = arith.constant dense<0.000000e+00> : vector<256x128xf32>
    %38 = tpu.matmul %36, %37, %cst {dimension_numbers = #tpu.dot_dimension_numbers<[1], [0], [0], [1], [0, 0, 1, 1], [], []>} : vector<256x72xbf16>, vector<72x128xbf16>, vector<256x128xf32> -> vector<256x128xf32>
    %c0_47 = arith.constant 0 : index
    %c0_48 = arith.constant 0 : index
    %39 = vector.load %arg3[%c0_47, %c0_48] : memref<1x128xf32, #tpu.memory_space<vmem>>, vector<1x128xf32>
    %40 = vector.broadcast %39 : vector<1x128xf32> to vector<256x128xf32>
    %41 = arith.addf %38, %40 : vector<256x128xf32>
    %cst_49 = arith.constant 0.000000e+00 : f32
    %42 = vector.broadcast %cst_49 : f32 to vector<256x128xf32>
    %43 = arith.maximumf %41, %42 : vector<256x128xf32>
    %c0_50 = arith.constant 0 : index
    %c0_51 = arith.constant 0 : index
    %c0_52 = arith.constant 0 : index
    %44 = vector.load %arg4[%c0_50, %c0_51, %c0_52] : memref<1x256x128xf32, #tpu.memory_space<vmem>>, vector<1x256x128xf32>
    %45 = vector.shape_cast %44 : vector<1x256x128xf32> to vector<256x128xf32>
    %46 = vector.shape_cast %43 : vector<256x128xf32> to vector<1x256x128xf32>
    tpu.vector_store %arg4[%c0_50, %c0_51, %c0_52], %46 {strides = array<i32>} : memref<1x256x128xf32, #tpu.memory_space<vmem>>, vector<1x256x128xf32>,
    return
  }
  func.func @transform_0(%arg0: i32) -> (i32, i32, i32, i32) {
    %c0_i32 = arith.constant 0 : i32
    %c0_i32_0 = arith.constant 0 : i32
    %c0_i32_1 = arith.constant 0 : i32
    %c0_i32_2 = arith.constant 0 : i32
    return %arg0, %c0_i32, %c0_i32_0, %c0_i32_1 : i32, i32, i32, i32
  }
  func.func @transform_1(%arg0: i32) -> (i32, i32) {
    %c0_i32 = arith.constant 0 : i32
    %c0_i32_0 = arith.constant 0 : i32
    %c0_i32_1 = arith.constant 0 : i32
    return %c0_i32, %c0_i32_0 : i32, i32
  }
  func.func @transform_2(%arg0: i32) -> (i32, i32) {
    %c0_i32 = arith.constant 0 : i32
    %c0_i32_0 = arith.constant 0 : i32
    %c0_i32_1 = arith.constant 0 : i32
    return %c0_i32, %c0_i32_0 : i32, i32
  }
  func.func @transform_3(%arg0: i32) -> (i32, i32, i32) {
    %c0_i32 = arith.constant 0 : i32
    %c0_i32_0 = arith.constant 0 : i32
    %c0_i32_1 = arith.constant 0 : i32
    return %arg0, %c0_i32, %c0_i32_0 : i32, i32, i32
  }
}

</mosaic_0001>

<llo_original>
// kernel: tpu_custom_call.1
$region0: #{tpu_custom_call.1}
  #allocation0 [shape = 'u32[]', space=smem, size = 0x4, offset = 0x4, fixed_abs, tag = 'smem constant byte address 0x4 - core index']
  #allocation1 [shape = 'u32[144,128]{1,0:T(1,128)}', space=vmem, size = 0x12000, scoped, tag = 'internal scratch']
  #allocation2 [shape = 'bf16[256,72]{1,0:T(8,128)(2,1)}', space=vmem, size = 0x10000, scoped, tag = 'scratch operand']
  %s0 = inlined_call_operand.vmem [shape: bf16[2,18,18,8], index: 0, kind: input, shape index: {}]
  %s1 = inlined_call_operand.vmem [shape: bf16[72,128], index: 1, kind: input, shape index: {}]
  %s2 = inlined_call_operand.vmem [shape: f32[1,128], index: 2, kind: input, shape index: {}]
  %s3 = inlined_call_operand.hbm [shape: f32[2,256,128], index: 3, kind: output, shape index: {}]
  %s4 = sld [smem:[#allocation0]]
  $region45: #{tpu_custom_call.1} parent=0
    _
  %s6 = ssub.s32 1, %s4
  %s7 = scalar_select 0, %s6, %s4
  $region1: #{tpu_custom_call.1} parent=0
    #allocation3 [shape = 'u8[262144]{0}', space=vmem, size = 0x40000, scoped, tag = 'output window, operand 0']
    #allocation4 [shape = 's32[2]{0}', space=sflag, size = 0x8, scoped, tag = 'scoped memory for tpu_custom_call.1']
    %8 = vsyncpa [#allocation4], 0
    %s9 = scalar_lea.sflag [#allocation4], 1
    %10 = vsyncpa %s9, 0
    loop: start=0, step=1, limit=4
    $region2: #{tpu_custom_call.1} parent=1 // loop_pre_header
      _
    $region3: #{tpu_custom_call.1} parent=1 // loop_header
      %s12 = sphi 0, %s16
      %p13 = scmp.ge.s32.totalorder %s12, 4
      %s22 = sphi 0, %s24
      %s25 = sphi 0, %s22
      %s26 = sphi 0, %s25
      %s42 = sphi 0, %s26
      %s46 = sphi 0, %s46
      %s48 = sphi 0, %s46
      %s49 = sphi 0, %s48
      %s63 = sphi 0, %s49
      %s67 = sphi 0, %s67
      %s69 = sphi 0, %s67
      %s70 = sphi 0, %s69
      %s84 = sphi 0, %s70
      %s90 = sphi 0, %s92
      %s93 = sphi 0, %s90
      %s94 = sphi 0, %s93
      %s110 = sphi 0, %s94
    $region4: #{tpu_custom_call.1} parent=1 // loop_header_branch
      %15 = sbr.rel (%p13) target = $region8
    $region5: #{tpu_custom_call.1} parent=1 // loop_body
      %s17 = ssub.s32 %s12, 1
      %s18 = ssub.s32 %s12, 2
      %s19 = sadd.s32 %s12, 1
      %s20 = ssub.s32 %s12, %s19
      %p21 = scmp.eq.s32.totalorder %s20, 0
      %s23 = sadd.s32 %s22, 1
      %s24 = scalar_select %p21, %s22, %s23
      %p27 = pneg %p21
      %p28 = scmp.eq.s32.totalorder %s12, 1
      %p29 = por %p27, %p28
      %p30 = scmp.ne.s32.totalorder %s22, %s25
      %p31 = scmp.eq.s32.totalorder %s12, 0
      %p32 = por %p30, %p31
      %p33 = scmp.ne.s32.totalorder %s22, %s25
      %p34 = scmp.eq.s32.totalorder %s17, 1
      %p35 = por %p33, %p34
      %p36 = scmp.ne.s32.totalorder %s25, %s26
      %p37 = scmp.eq.s32.totalorder %s17, 0
      %p38 = por %p36, %p37
      %p39 = scmp.ne.s32.totalorder %s25, %s26
      %p40 = scmp.eq.s32.totalorder %s18, 1
      %p41 = por %p39, %p40
      %p43 = scmp.ne.s32.totalorder %s26, %s42
      %p44 = scmp.eq.s32.totalorder %s18, 0
      %p45 = por %p43, %p44
      %s47 = sadd.s32 %s46, 1
      %p50 = scmp.eq.s32.totalorder %s12, 1
      %p51 = scmp.ne.s32.totalorder %s46, %s48
      %p52 = scmp.eq.s32.totalorder %s12, 0
      %p53 = por %p51, %p52
      %p54 = scmp.ne.s32.totalorder %s46, %s48
      %p55 = scmp.eq.s32.totalorder %s17, 1
      %p56 = por %p54, %p55
      %p57 = scmp.ne.s32.totalorder %s48, %s49
      %p58 = scmp.eq.s32.totalorder %s17, 0
      %p59 = por %p57, %p58
      %p60 = scmp.ne.s32.totalorder %s48, %s49
      %p61 = scmp.eq.s32.totalorder %s18, 1
      %p62 = por %p60, %p61
      %p64 = scmp.ne.s32.totalorder %s49, %s63
      %p65 = scmp.eq.s32.totalorder %s18, 0
      %p66 = por %p64, %p65
      %s68 = sadd.s32 %s67, 1
      %p71 = scmp.eq.s32.totalorder %s12, 1
      %p72 = scmp.ne.s32.totalorder %s67, %s69
      %p73 = scmp.eq.s32.totalorder %s12, 0
      %p74 = por %p72, %p73
      %p75 = scmp.ne.s32.totalorder %s67, %s69
      %p76 = scmp.eq.s32.totalorder %s17, 1
      %p77 = por %p75, %p76
      %p78 = scmp.ne.s32.totalorder %s69, %s70
      %p79 = scmp.eq.s32.totalorder %s17, 0
      %p80 = por %p78, %p79
      %p81 = scmp.ne.s32.totalorder %s69, %s70
      %p82 = scmp.eq.s32.totalorder %s18, 1
      %p83 = por %p81, %p82
      %p85 = scmp.ne.s32.totalorder %s70, %s84
      %p86 = scmp.eq.s32.totalorder %s18, 0
      %p87 = por %p85, %p86
      %s88 = ssub.s32 %s12, %s19
      %p89 = scmp.eq.s32.totalorder %s88, 0
      %s91 = sadd.s32 %s90, 1
      %s92 = scalar_select %p89, %s90, %s91
      %p95 = pneg %p89
      %p96 = scmp.eq.s32.totalorder %s12, 1
      %p97 = por %p95, %p96
      %p98 = scmp.ne.s32.totalorder %s90, %s93
      %p99 = scmp.eq.s32.totalorder %s12, 0
      %p100 = por %p98, %p99
      %p101 = scmp.ne.s32.totalorder %s90, %s93
      %p102 = scmp.eq.s32.totalorder %s17, 1
      %p103 = por %p101, %p102
      %p104 = scmp.ne.s32.totalorder %s93, %s94
      %p105 = scmp.eq.s32.totalorder %s17, 0
      %p106 = por %p104, %p105
      %p107 = scmp.ne.s32.totalorder %s93, %s94
      %p108 = scmp.eq.s32.totalorder %s18, 1
      %p109 = por %p107, %p108
      %p111 = scmp.ne.s32.totalorder %s94, %s110
      %p112 = scmp.eq.s32.totalorder %s18, 0
      %p113 = por %p111, %p112
      %p114 = scmp.le.s32.totalorder 1, %s12
      %p115 = scmp.lt.s32.totalorder %s12, 3
      %p116 = pnand %p114, %p115
      %p117 = pneg %p116
      // Predicated region
      $region9: #{tpu_custom_call.1} parent=5 // pred_check
        _
      $region10: #{tpu_custom_call.1} parent=5 // pred_check_branch
        %119 = sbr.rel (%p116) target = $region12
      $region11: #{tpu_custom_call.1} parent=5 // pred_region
        %s120 = ssub.s32 %s12, 1
        // Predicated region
        $region13: #{tpu_custom_call.1} parent=11 // pred_check
          %p121 = pneg %p59
        $region14: #{tpu_custom_call.1} parent=11 // pred_check_branch
          %123 = sbr.rel (%p121) target = $region16
        $region15: #{tpu_custom_call.1} parent=11 // pred_region
          _
        $region16: #{tpu_custom_call.1} parent=11 // pred_fallthru
          _
        // Predicated region
        $region17: #{tpu_custom_call.1} parent=11 // pred_check
          %p124 = pneg %p80
        $region18: #{tpu_custom_call.1} parent=11 // pred_check_branch
          %126 = sbr.rel (%p124) target = $region20
        $region19: #{tpu_custom_call.1} parent=11 // pred_region
          _
        $region20: #{tpu_custom_call.1} parent=11 // pred_fallthru
          _
      $region12: #{tpu_custom_call.1} parent=5 // pred_fallthru
        _
      %p127 = scmp.lt.s32.totalorder %s12, 2
      // Predicated region
      $region21: #{tpu_custom_call.1} parent=5 // pred_check
        %p128 = pneg %p127
      $region22: #{tpu_custom_call.1} parent=5 // pred_check_branch
        %130 = sbr.rel (%p128) target = $region24
      $region23: #{tpu_custom_call.1} parent=5 // pred_region
        // Predicated region
        $region25: #{tpu_custom_call.1} parent=23 // pred_check
          %p131 = pneg %p32
        $region26: #{tpu_custom_call.1} parent=23 // pred_check_branch
          %133 = sbr.rel (%p131) target = $region28
        $region27: #{tpu_custom_call.1} parent=23 // pred_region
          %p134 = scmp.lt.s32.totalorder %s12, 1
          %s135 = scalar_select %p134, %s12, 1
          %s136 = smul.addr %s135, 54
          %s137 = smul.addr %s136, 4
          %s138 = scalar_lea.vmem %s0, %s137
        $region28: #{tpu_custom_call.1} parent=23 // pred_fallthru
          _
      $region24: #{tpu_custom_call.1} parent=5 // pred_fallthru
        _
      %p139 = scmp.le.s32.totalorder 1, %s12
      %p140 = scmp.lt.s32.totalorder %s12, 3
      %p141 = pnand %p139, %p140
      %p142 = pneg %p141
      // Predicated region
      $region29: #{tpu_custom_call.1} parent=5 // pred_check
        _
      $region30: #{tpu_custom_call.1} parent=5 // pred_check_branch
        %144 = sbr.rel (%p141) target = $region32
      $region31: #{tpu_custom_call.1} parent=5 // pred_region
        %s145 = ssub.s32 %s12, 1
        %p146 = scmp.lt.s32.totalorder %s17, 1
        %s147 = scalar_select %p146, %s17, 1
        %s148 = smul.addr %s147, 54
        %s149 = smul.addr %s148, 4
        %s150 = scalar_lea.vmem %s0, %s149
        %p151 = pneg %p38
        %p152 = pneg %p35
        %p153 = pneg %p59
        %p154 = pneg %p56
        %p155 = pneg %p80
        %p156 = pneg %p77
        %p157 = pneg %p106
        %p158 = pneg %p103
        %s159 = sand.u32 %s93, 1
        %s160 = scalar_lea.sflag [#allocation4], %s159
        %s161 = sand.u32 %s93, 1
        %s162 = smul.addr %s161, 256
        %s163 = scalar_lea.vmem [#allocation3], %s162
        %p164 = scmp.lt.s32.totalorder %s17, 1
        %s165 = scalar_select %p164, %s17, 1
        %s166 = smul.addr %s165, 54
        %s167 = smul.addr %s166, 4
        %s168 = scalar_lea.vmem %s0, %s167
        %v170 = vld [vmem:[%s168] sm:$0xf]
        %v171 = vld [vmem:[%s168 + $0x4] sm:$0xf]
        %v172 = vld [vmem:[%s168 + $0xc] sm:$0xf]
        %v173 = vld [vmem:[%s168 + $0x10] sm:$0xf]
        %v174 = vld [vmem:[%s168 + $0x18] sm:$0xf]
        %v175 = vld [vmem:[%s168 + $0x1c] sm:$0xf]
        %v176 = vld [vmem:[%s168 + $0x24] sm:$0xf]
        %v177 = vld [vmem:[%s168 + $0x28] sm:$0xf]
        %v178 = vld [vmem:[%s168 + $0x30] sm:$0xf]
        %v179 = vld [vmem:[%s168 + $0x34] sm:$0xf]
        %v180 = vld [vmem:[%s168 + $0x3c] sm:$0xf]
        %v181 = vld [vmem:[%s168 + $0x40] sm:$0xf]
        %v182 = vld [vmem:[%s168 + $0x48] sm:$0xf]
        %v183 = vld [vmem:[%s168 + $0x4c] sm:$0xf]
        %v184 = vld [vmem:[%s168 + $0x54] sm:$0xf]
        %v185 = vld [vmem:[%s168 + $0x58] sm:$0xf]
        %v186 = vld [vmem:[%s168 + $0x60] sm:$0xf]
        %v187 = vld [vmem:[%s168 + $0x64] sm:$0xf]
        %v188 = vld [vmem:[%s168 + $0x6c] sm:$0xf]
        %v189 = vld [vmem:[%s168 + $0x70] sm:$0xf]
        %v190 = vld [vmem:[%s168 + $0x78] sm:$0xf]
        %v191 = vld [vmem:[%s168 + $0x7c] sm:$0xf]
        %v192 = vld [vmem:[%s168 + $0x84] sm:$0xf]
        %v193 = vld [vmem:[%s168 + $0x88] sm:$0xf]
        %v194 = vld [vmem:[%s168 + $0x90] sm:$0xf]
        %v195 = vld [vmem:[%s168 + $0x94] sm:$0xf]
        %v196 = vld [vmem:[%s168 + $0x9c] sm:$0xf]
        %v197 = vld [vmem:[%s168 + $0xa0] sm:$0xf]
        %v198 = vld [vmem:[%s168 + $0xa8] sm:$0xf]
        %v199 = vld [vmem:[%s168 + $0xac] sm:$0xf]
        %v200 = vld [vmem:[%s168 + $0xb4] sm:$0xf]
        %v201 = vld [vmem:[%s168 + $0xb8] sm:$0xf]
        %vm202 = vcmask 60416
        %203 = vst.msk [vmem:[#allocation2] sm:$0xf] %vm202, %v170
        %204 = vst.msk [vmem:[#allocation2 + $0x4] sm:$0xf] %vm202, %v171
        %205 = vst.msk [vmem:[#allocation2 + $0x8] sm:$0xf] %vm202, %v172
        %206 = vst.msk [vmem:[#allocation2 + $0xc] sm:$0xf] %vm202, %v173
        %207 = vst.msk [vmem:[#allocation2 + $0x10] sm:$0xf] %vm202, %v174
        %208 = vst.msk [vmem:[#allocation2 + $0x14] sm:$0xf] %vm202, %v175
        %209 = vst.msk [vmem:[#allocation2 + $0x18] sm:$0xf] %vm202, %v176
        %210 = vst.msk [vmem:[#allocation2 + $0x1c] sm:$0xf] %vm202, %v177
        %211 = vst.msk [vmem:[#allocation2 + $0x20] sm:$0xf] %vm202, %v178
        %212 = vst.msk [vmem:[#allocation2 + $0x24] sm:$0xf] %vm202, %v179
        %213 = vst.msk [vmem:[#allocation2 + $0x28] sm:$0xf] %vm202, %v180
        %214 = vst.msk [vmem:[#allocation2 + $0x2c] sm:$0xf] %vm202, %v181
        %215 = vst.msk [vmem:[#allocation2 + $0x30] sm:$0xf] %vm202, %v182
        %216 = vst.msk [vmem:[#allocation2 + $0x34] sm:$0xf] %vm202, %v183
        %217 = vst.msk [vmem:[#allocation2 + $0x38] sm:$0xf] %vm202, %v184
        %218 = vst.msk [vmem:[#allocation2 + $0x3c] sm:$0xf] %vm202, %v185
        %219 = vst.msk [vmem:[#allocation2 + $0x40] sm:$0xf] %vm202, %v186
        %220 = vst.msk [vmem:[#allocation2 + $0x44] sm:$0xf] %vm202, %v187
        %221 = vst.msk [vmem:[#allocation2 + $0x48] sm:$0xf] %vm202, %v188
        %222 = vst.msk [vmem:[#allocation2 + $0x4c] sm:$0xf] %vm202, %v189
        %223 = vst.msk [vmem:[#allocation2 + $0x50] sm:$0xf] %vm202, %v190
        %224 = vst.msk [vmem:[#allocation2 + $0x54] sm:$0xf] %vm202, %v191
        %225 = vst.msk [vmem:[#allocation2 + $0x58] sm:$0xf] %vm202, %v192
        %226 = vst.msk [vmem:[#allocation2 + $0x5c] sm:$0xf] %vm202, %v193
        %227 = vst.msk [vmem:[#allocation2 + $0x60] sm:$0xf] %vm202, %v194
        %228 = vst.msk [vmem:[#allocation2 + $0x64] sm:$0xf] %vm202, %v195
        %229 = vst.msk [vmem:[#allocation2 + $0x68] sm:$0xf] %vm202, %v196
        %230 = vst.msk [vmem:[#allocation2 + $0x6c] sm:$0xf] %vm202, %v197
        %231 = vst.msk [vmem:[#allocation2 + $0x70] sm:$0xf] %vm202, %v198
        %232 = vst.msk [vmem:[#allocation2 + $0x74] sm:$0xf] %vm202, %v199
        %233 = vst.msk [vmem:[#allocation2 + $0x78] sm:$0xf] %vm202, %v200
        %234 = vst.msk [vmem:[#allocation2 + $0x7c] sm:$0xf] %vm202, %v201
        %v235 = vld [vmem:[%s168] sm:$0xf]
        %v236 = vld [vmem:[%s168 + $0x4] sm:$0xf]
        %v237 = vld [vmem:[%s168 + $0x8] sm:$0x1]
        %v238 = vld [vmem:[%s168 + $0xc] sm:$0xf]
        %v239 = vld [vmem:[%s168 + $0x10] sm:$0xf]
        %v240 = vld [vmem:[%s168 + $0x14] sm:$0x1]
        %v241 = vld [vmem:[%s168 + $0x18] sm:$0xf]
        %v242 = vld [vmem:[%s168 + $0x1c] sm:$0xf]
        %v243 = vld [vmem:[%s168 + $0x20] sm:$0x1]
        %v244 = vld [vmem:[%s168 + $0x24] sm:$0xf]
        %v245 = vld [vmem:[%s168 + $0x28] sm:$0xf]
        %v246 = vld [vmem:[%s168 + $0x2c] sm:$0x1]
        %v247 = vld [vmem:[%s168 + $0x30] sm:$0xf]
        %v248 = vld [vmem:[%s168 + $0x34] sm:$0xf]
        %v249 = vld [vmem:[%s168 + $0x38] sm:$0x1]
        %v250 = vld [vmem:[%s168 + $0x3c] sm:$0xf]
        %v251 = vld [vmem:[%s168 + $0x40] sm:$0xf]
        %v252 = vld [vmem:[%s168 + $0x44] sm:$0x1]
        %v253 = vld [vmem:[%s168 + $0x48] sm:$0xf]
        %v254 = vld [vmem:[%s168 + $0x4c] sm:$0xf]
        %v255 = vld [vmem:[%s168 + $0x50] sm:$0x1]
        %v256 = vld [vmem:[%s168 + $0x54] sm:$0xf]
        %v257 = vld [vmem:[%s168 + $0x58] sm:$0xf]
        %v258 = vld [vmem:[%s168 + $0x5c] sm:$0x1]
        %v259 = vld [vmem:[%s168 + $0x60] sm:$0xf]
        %v260 = vld [vmem:[%s168 + $0x64] sm:$0xf]
        %v261 = vld [vmem:[%s168 + $0x68] sm:$0x1]
        %v262 = vld [vmem:[%s168 + $0x6c] sm:$0xf]
        %v263 = vld [vmem:[%s168 + $0x70] sm:$0xf]
        %v264 = vld [vmem:[%s168 + $0x74] sm:$0x1]
        %v265 = vld [vmem:[%s168 + $0x78] sm:$0xf]
        %v266 = vld [vmem:[%s168 + $0x7c] sm:$0xf]
        %v267 = vld [vmem:[%s168 + $0x80] sm:$0x1]
        %v268 = vld [vmem:[%s168 + $0x84] sm:$0xf]
        %v269 = vld [vmem:[%s168 + $0x88] sm:$0xf]
        %v270 = vld [vmem:[%s168 + $0x8c] sm:$0x1]
        %v271 = vld [vmem:[%s168 + $0x90] sm:$0xf]
        %v272 = vld [vmem:[%s168 + $0x94] sm:$0xf]
        %v273 = vld [vmem:[%s168 + $0x98] sm:$0x1]
        %v274 = vld [vmem:[%s168 + $0x9c] sm:$0xf]
        %v275 = vld [vmem:[%s168 + $0xa0] sm:$0xf]
        %v276 = vld [vmem:[%s168 + $0xa4] sm:$0x1]
        %v277 = vld [vmem:[%s168 + $0xa8] sm:$0xf]
        %v278 = vld [vmem:[%s168 + $0xac] sm:$0xf]
        %v279 = vld [vmem:[%s168 + $0xb0] sm:$0x1]
        %v280 = vld [vmem:[%s168 + $0xb4] sm:$0xf]
        %v281 = vld [vmem:[%s168 + $0xb8] sm:$0xf]
        %v282 = vld [vmem:[%s168 + $0xbc] sm:$0x1]
        %vm283 = vsmask.f32 3328
        %vm284 = vsmask.f32 7440
        %vm285 = vmor %vm283, %vm284
        %v287 = vshrl.u32 %v235, 16
        %v289 = vrot.slane %v287, 4
        %v290 = vshll.u32 %v235, 16
        %v292 = vrot.slane %v290, 5
        %v293 = vor.u32 %v289, %v292
        %v294 = vrot.slane %v293, 4
        %v296 = vshll.u32 %v236, 16
        %v298 = vrot.slane %v296, 5
        %v299 = vsel %vm285, %v294, %v298
        %v300 = vshrl.u32 %v236, 16
        %v302 = vrot.slane %v300, 4
        %v303 = vor.u32 %v302, %v298
        %v304 = vrot.slane %v303, 4
        %v306 = vshll.u32 %v237, 16
        %v308 = vrot.slane %v306, 5
        %v309 = vsel %vm285, %v304, %v308
        %v311 = vshrl.u32 %v238, 16
        %v313 = vrot.slane %v311, 4
        %v314 = vshll.u32 %v238, 16
        %v316 = vrot.slane %v314, 5
        %v317 = vor.u32 %v313, %v316
        %v318 = vrot.slane %v317, 4
        %v320 = vshll.u32 %v239, 16
        %v322 = vrot.slane %v320, 5
        %v323 = vsel %vm285, %v318, %v322
        %v324 = vshrl.u32 %v239, 16
        %v326 = vrot.slane %v324, 4
        %v327 = vor.u32 %v326, %v322
        %v328 = vrot.slane %v327, 4
        %v330 = vshll.u32 %v240, 16
        %v332 = vrot.slane %v330, 5
        %v333 = vsel %vm285, %v328, %v332
        %v335 = vshrl.u32 %v241, 16
        %v337 = vrot.slane %v335, 4
        %v338 = vshll.u32 %v241, 16
        %v340 = vrot.slane %v338, 5
        %v341 = vor.u32 %v337, %v340
        %v342 = vrot.slane %v341, 4
        %v344 = vshll.u32 %v242, 16
        %v346 = vrot.slane %v344, 5
        %v347 = vsel %vm285, %v342, %v346
        %v348 = vshrl.u32 %v242, 16
        %v350 = vrot.slane %v348, 4
        %v351 = vor.u32 %v350, %v346
        %v352 = vrot.slane %v351, 4
        %v354 = vshll.u32 %v243, 16
        %v356 = vrot.slane %v354, 5
        %v357 = vsel %vm285, %v352, %v356
        %v359 = vshrl.u32 %v244, 16
        %v361 = vrot.slane %v359, 4
        %v362 = vshll.u32 %v244, 16
        %v364 = vrot.slane %v362, 5
        %v365 = vor.u32 %v361, %v364
        %v366 = vrot.slane %v365, 4
        %v368 = vshll.u32 %v245, 16
        %v370 = vrot.slane %v368, 5
        %v371 = vsel %vm285, %v366, %v370
        %v372 = vshrl.u32 %v245, 16
        %v374 = vrot.slane %v372, 4
        %v375 = vor.u32 %v374, %v370
        %v376 = vrot.slane %v375, 4
        %v378 = vshll.u32 %v246, 16
        %v380 = vrot.slane %v378, 5
        %v381 = vsel %vm285, %v376, %v380
        %v383 = vshrl.u32 %v247, 16
        %v385 = vrot.slane %v383, 4
        %v386 = vshll.u32 %v247, 16
        %v388 = vrot.slane %v386, 5
        %v389 = vor.u32 %v385, %v388
        %v390 = vrot.slane %v389, 4
        %v392 = vshll.u32 %v248, 16
        %v394 = vrot.slane %v392, 5
        %v395 = vsel %vm285, %v390, %v394
        %v396 = vshrl.u32 %v248, 16
        %v398 = vrot.slane %v396, 4
        %v399 = vor.u32 %v398, %v394
        %v400 = vrot.slane %v399, 4
        %v402 = vshll.u32 %v249, 16
        %v404 = vrot.slane %v402, 5
        %v405 = vsel %vm285, %v400, %v404
        %v407 = vshrl.u32 %v250, 16
        %v409 = vrot.slane %v407, 4
        %v410 = vshll.u32 %v250, 16
        %v412 = vrot.slane %v410, 5
        %v413 = vor.u32 %v409, %v412
        %v414 = vrot.slane %v413, 4
        %v416 = vshll.u32 %v251, 16
        %v418 = vrot.slane %v416, 5
        %v419 = vsel %vm285, %v414, %v418
        %v420 = vshrl.u32 %v251, 16
        %v422 = vrot.slane %v420, 4
        %v423 = vor.u32 %v422, %v418
        %v424 = vrot.slane %v423, 4
        %v426 = vshll.u32 %v252, 16
        %v428 = vrot.slane %v426, 5
        %v429 = vsel %vm285, %v424, %v428
        %v431 = vshrl.u32 %v253, 16
        %v433 = vrot.slane %v431, 4
        %v434 = vshll.u32 %v253, 16
        %v436 = vrot.slane %v434, 5
        %v437 = vor.u32 %v433, %v436
        %v438 = vrot.slane %v437, 4
        %v440 = vshll.u32 %v254, 16
        %v442 = vrot.slane %v440, 5
        %v443 = vsel %vm285, %v438, %v442
        %v444 = vshrl.u32 %v254, 16
        %v446 = vrot.slane %v444, 4
        %v447 = vor.u32 %v446, %v442
        %v448 = vrot.slane %v447, 4
        %v450 = vshll.u32 %v255, 16
        %v452 = vrot.slane %v450, 5
        %v453 = vsel %vm285, %v448, %v452
        %v455 = vshrl.u32 %v256, 16
        %v457 = vrot.slane %v455, 4
        %v458 = vshll.u32 %v256, 16
        %v460 = vrot.slane %v458, 5
        %v461 = vor.u32 %v457, %v460
        %v462 = vrot.slane %v461, 4
        %v464 = vshll.u32 %v257, 16
        %v466 = vrot.slane %v464, 5
        %v467 = vsel %vm285, %v462, %v466
        %v468 = vshrl.u32 %v257, 16
        %v470 = vrot.slane %v468, 4
        %v471 = vor.u32 %v470, %v466
        %v472 = vrot.slane %v471, 4
        %v474 = vshll.u32 %v258, 16
        %v476 = vrot.slane %v474, 5
        %v477 = vsel %vm285, %v472, %v476
        %v479 = vshrl.u32 %v259, 16
        %v481 = vrot.slane %v479, 4
        %v482 = vshll.u32 %v259, 16
        %v484 = vrot.slane %v482, 5
        %v485 = vor.u32 %v481, %v484
        %v486 = vrot.slane %v485, 4
        %v488 = vshll.u32 %v260, 16
        %v490 = vrot.slane %v488, 5
        %v491 = vsel %vm285, %v486, %v490
        %v492 = vshrl.u32 %v260, 16
        %v494 = vrot.slane %v492, 4
        %v495 = vor.u32 %v494, %v490
        %v496 = vrot.slane %v495, 4
        %v498 = vshll.u32 %v261, 16
        %v500 = vrot.slane %v498, 5
        %v501 = vsel %vm285, %v496, %v500
        %v503 = vshrl.u32 %v262, 16
        %v505 = vrot.slane %v503, 4
        %v506 = vshll.u32 %v262, 16
        %v508 = vrot.slane %v506, 5
        %v509 = vor.u32 %v505, %v508
        %v510 = vrot.slane %v509, 4
        %v512 = vshll.u32 %v263, 16
        %v514 = vrot.slane %v512, 5
        %v515 = vsel %vm285, %v510, %v514
        %v516 = vshrl.u32 %v263, 16
        %v518 = vrot.slane %v516, 4
        %v519 = vor.u32 %v518, %v514
        %v520 = vrot.slane %v519, 4
        %v522 = vshll.u32 %v264, 16
        %v524 = vrot.slane %v522, 5
        %v525 = vsel %vm285, %v520, %v524
        %v527 = vshrl.u32 %v265, 16
        %v529 = vrot.slane %v527, 4
        %v530 = vshll.u32 %v265, 16
        %v532 = vrot.slane %v530, 5
        %v533 = vor.u32 %v529, %v532
        %v534 = vrot.slane %v533, 4
        %v536 = vshll.u32 %v266, 16
        %v538 = vrot.slane %v536, 5
        %v539 = vsel %vm285, %v534, %v538
        %v540 = vshrl.u32 %v266, 16
        %v542 = vrot.slane %v540, 4
        %v543 = vor.u32 %v542, %v538
        %v544 = vrot.slane %v543, 4
        %v546 = vshll.u32 %v267, 16
        %v548 = vrot.slane %v546, 5
        %v549 = vsel %vm285, %v544, %v548
        %v551 = vshrl.u32 %v268, 16
        %v553 = vrot.slane %v551, 4
        %v554 = vshll.u32 %v268, 16
        %v556 = vrot.slane %v554, 5
        %v557 = vor.u32 %v553, %v556
        %v558 = vrot.slane %v557, 4
        %v560 = vshll.u32 %v269, 16
        %v562 = vrot.slane %v560, 5
        %v563 = vsel %vm285, %v558, %v562
        %v564 = vshrl.u32 %v269, 16
        %v566 = vrot.slane %v564, 4
        %v567 = vor.u32 %v566, %v562
        %v568 = vrot.slane %v567, 4
        %v570 = vshll.u32 %v270, 16
        %v572 = vrot.slane %v570, 5
        %v573 = vsel %vm285, %v568, %v572
        %v575 = vshrl.u32 %v271, 16
        %v577 = vrot.slane %v575, 4
        %v578 = vshll.u32 %v271, 16
        %v580 = vrot.slane %v578, 5
        %v581 = vor.u32 %v577, %v580
        %v582 = vrot.slane %v581, 4
        %v584 = vshll.u32 %v272, 16
        %v586 = vrot.slane %v584, 5
        %v587 = vsel %vm285, %v582, %v586
        %v588 = vshrl.u32 %v272, 16
        %v590 = vrot.slane %v588, 4
        %v591 = vor.u32 %v590, %v586
        %v592 = vrot.slane %v591, 4
        %v594 = vshll.u32 %v273, 16
        %v596 = vrot.slane %v594, 5
        %v597 = vsel %vm285, %v592, %v596
        %v599 = vshrl.u32 %v274, 16
        %v601 = vrot.slane %v599, 4
        %v602 = vshll.u32 %v274, 16
        %v604 = vrot.slane %v602, 5
        %v605 = vor.u32 %v601, %v604
        %v606 = vrot.slane %v605, 4
        %v608 = vshll.u32 %v275, 16
        %v610 = vrot.slane %v608, 5
        %v611 = vsel %vm285, %v606, %v610
        %v612 = vshrl.u32 %v275, 16
        %v614 = vrot.slane %v612, 4
        %v615 = vor.u32 %v614, %v610
        %v616 = vrot.slane %v615, 4
        %v618 = vshll.u32 %v276, 16
        %v620 = vrot.slane %v618, 5
        %v621 = vsel %vm285, %v616, %v620
        %v623 = vshrl.u32 %v277, 16
        %v625 = vrot.slane %v623, 4
        %v626 = vshll.u32 %v277, 16
        %v628 = vrot.slane %v626, 5
        %v629 = vor.u32 %v625, %v628
        %v630 = vrot.slane %v629, 4
        %v632 = vshll.u32 %v278, 16
        %v634 = vrot.slane %v632, 5
        %v635 = vsel %vm285, %v630, %v634
        %v636 = vshrl.u32 %v278, 16
        %v638 = vrot.slane %v636, 4
        %v639 = vor.u32 %v638, %v634
        %v640 = vrot.slane %v639, 4
        %v642 = vshll.u32 %v279, 16
        %v644 = vrot.slane %v642, 5
        %v645 = vsel %vm285, %v640, %v644
        %v647 = vshrl.u32 %v280, 16
        %v649 = vrot.slane %v647, 4
        %v650 = vshll.u32 %v280, 16
        %v652 = vrot.slane %v650, 5
        %v653 = vor.u32 %v649, %v652
        %v654 = vrot.slane %v653, 4
        %v656 = vshll.u32 %v281, 16
        %v658 = vrot.slane %v656, 5
        %v659 = vsel %vm285, %v654, %v658
        %v660 = vshrl.u32 %v281, 16
        %v662 = vrot.slane %v660, 4
        %v663 = vor.u32 %v662, %v658
        %v664 = vrot.slane %v663, 4
        %v666 = vshll.u32 %v282, 16
        %v668 = vrot.slane %v666, 5
        %v669 = vsel %vm285, %v664, %v668
        %670 = vrot.lane.b32.xlu0 %v299, 8
        %v671 = vpop.permute.xlu0 %670
        %672 = vrot.lane.b32.xlu0 %v309, 8
        %v673 = vpop.permute.xlu0 %672
        %674 = vrot.lane.b32.xlu0 %v323, 8
        %v675 = vpop.permute.xlu0 %674
        %676 = vrot.lane.b32.xlu0 %v333, 8
        %v677 = vpop.permute.xlu0 %676
        %678 = vrot.lane.b32.xlu0 %v347, 8
        %v679 = vpop.permute.xlu0 %678
        %680 = vrot.lane.b32.xlu0 %v357, 8
        %v681 = vpop.permute.xlu0 %680
        %682 = vrot.lane.b32.xlu0 %v371, 8
        %v683 = vpop.permute.xlu0 %682
        %684 = vrot.lane.b32.xlu0 %v381, 8
        %v685 = vpop.permute.xlu0 %684
        %686 = vrot.lane.b32.xlu0 %v395, 8
        %v687 = vpop.permute.xlu0 %686
        %688 = vrot.lane.b32.xlu0 %v405, 8
        %v689 = vpop.permute.xlu0 %688
        %690 = vrot.lane.b32.xlu0 %v419, 8
        %v691 = vpop.permute.xlu0 %690
        %692 = vrot.lane.b32.xlu0 %v429, 8
        %v693 = vpop.permute.xlu0 %692
        %694 = vrot.lane.b32.xlu0 %v443, 8
        %v695 = vpop.permute.xlu0 %694
        %696 = vrot.lane.b32.xlu0 %v453, 8
        %v697 = vpop.permute.xlu0 %696
        %698 = vrot.lane.b32.xlu0 %v467, 8
        %v699 = vpop.permute.xlu0 %698
        %700 = vrot.lane.b32.xlu0 %v477, 8
        %v701 = vpop.permute.xlu0 %700
        %702 = vrot.lane.b32.xlu0 %v491, 8
        %v703 = vpop.permute.xlu0 %702
        %704 = vrot.lane.b32.xlu0 %v501, 8
        %v705 = vpop.permute.xlu0 %704
        %706 = vrot.lane.b32.xlu0 %v515, 8
        %v707 = vpop.permute.xlu0 %706
        %708 = vrot.lane.b32.xlu0 %v525, 8
        %v709 = vpop.permute.xlu0 %708
        %710 = vrot.lane.b32.xlu0 %v539, 8
        %v711 = vpop.permute.xlu0 %710
        %712 = vrot.lane.b32.xlu0 %v549, 8
        %v713 = vpop.permute.xlu0 %712
        %714 = vrot.lane.b32.xlu0 %v563, 8
        %v715 = vpop.permute.xlu0 %714
        %716 = vrot.lane.b32.xlu0 %v573, 8
        %v717 = vpop.permute.xlu0 %716
        %718 = vrot.lane.b32.xlu0 %v587, 8
        %v719 = vpop.permute.xlu0 %718
        %720 = vrot.lane.b32.xlu0 %v597, 8
        %v721 = vpop.permute.xlu0 %720
        %722 = vrot.lane.b32.xlu0 %v611, 8
        %v723 = vpop.permute.xlu0 %722
        %724 = vrot.lane.b32.xlu0 %v621, 8
        %v725 = vpop.permute.xlu0 %724
        %726 = vrot.lane.b32.xlu0 %v635, 8
        %v727 = vpop.permute.xlu0 %726
        %728 = vrot.lane.b32.xlu0 %v645, 8
        %v729 = vpop.permute.xlu0 %728
        %730 = vrot.lane.b32.xlu0 %v659, 8
        %v731 = vpop.permute.xlu0 %730
        %732 = vrot.lane.b32.xlu0 %v669, 8
        %v733 = vpop.permute.xlu0 %732
        %vm766 = vcmask 126016
        %767 = vst.msk [vmem:[#allocation2] sm:$0xf] %vm766, %v671
        %768 = vst.msk [vmem:[#allocation2 + $0x4] sm:$0xf] %vm766, %v673
        %769 = vst.msk [vmem:[#allocation2 + $0x8] sm:$0xf] %vm766, %v675
        %770 = vst.msk [vmem:[#allocation2 + $0xc] sm:$0xf] %vm766, %v677
        %771 = vst.msk [vmem:[#allocation2 + $0x10] sm:$0xf] %vm766, %v679
        %772 = vst.msk [vmem:[#allocation2 + $0x14] sm:$0xf] %vm766, %v681
        %773 = vst.msk [vmem:[#allocation2 + $0x18] sm:$0xf] %vm766, %v683
        %774 = vst.msk [vmem:[#allocation2 + $0x1c] sm:$0xf] %vm766, %v685
        %775 = vst.msk [vmem:[#allocation2 + $0x20] sm:$0xf] %vm766, %v687
        %776 = vst.msk [vmem:[#allocation2 + $0x24] sm:$0xf] %vm766, %v689
        %777 = vst.msk [vmem:[#allocation2 + $0x28] sm:$0xf] %vm766, %v691
        %778 = vst.msk [vmem:[#allocation2 + $0x2c] sm:$0xf] %vm766, %v693
        %779 = vst.msk [vmem:[#allocation2 + $0x30] sm:$0xf] %vm766, %v695
        %780 = vst.msk [vmem:[#allocation2 + $0x34] sm:$0xf] %vm766, %v697
        %781 = vst.msk [vmem:[#allocation2 + $0x38] sm:$0xf] %vm766, %v699
        %782 = vst.msk [vmem:[#allocation2 + $0x3c] sm:$0xf] %vm766, %v701
        %783 = vst.msk [vmem:[#allocation2 + $0x40] sm:$0xf] %vm766, %v703
        %784 = vst.msk [vmem:[#allocation2 + $0x44] sm:$0xf] %vm766, %v705
        %785 = vst.msk [vmem:[#allocation2 + $0x48] sm:$0xf] %vm766, %v707
        %786 = vst.msk [vmem:[#allocation2 + $0x4c] sm:$0xf] %vm766, %v709
        %787 = vst.msk [vmem:[#allocation2 + $0x50] sm:$0xf] %vm766, %v711
        %788 = vst.msk [vmem:[#allocation2 + $0x54] sm:$0xf] %vm766, %v713
        %789 = vst.msk [vmem:[#allocation2 + $0x58] sm:$0xf] %vm766, %v715
        %790 = vst.msk [vmem:[#allocation2 + $0x5c] sm:$0xf] %vm766, %v717
        %791 = vst.msk [vmem:[#allocation2 + $0x60] sm:$0xf] %vm766, %v719
        %792 = vst.msk [vmem:[#allocation2 + $0x64] sm:$0xf] %vm766, %v721
        %793 = vst.msk [vmem:[#allocation2 + $0x68] sm:$0xf] %vm766, %v723
        %794 = vst.msk [vmem:[#allocation2 + $0x6c] sm:$0xf] %vm766, %v725
        %795 = vst.msk [vmem:[#allocation2 + $0x70] sm:$0xf] %vm766, %v727
        %796 = vst.msk [vmem:[#allocation2 + $0x74] sm:$0xf] %vm766, %v729
        %797 = vst.msk [vmem:[#allocation2 + $0x78] sm:$0xf] %vm766, %v731
        %798 = vst.msk [vmem:[#allocation2 + $0x7c] sm:$0xf] %vm766, %v733
        %v799 = vld [vmem:[%s168] sm:$0xe]
        %v800 = vld [vmem:[%s168 + $0x4] sm:$0xf]
        %v801 = vld [vmem:[%s168 + $0x8] sm:$0x1]
        %v802 = vld [vmem:[%s168 + $0xc] sm:$0xe]
        %v803 = vld [vmem:[%s168 + $0x10] sm:$0xf]
        %v804 = vld [vmem:[%s168 + $0x14] sm:$0x1]
        %v805 = vld [vmem:[%s168 + $0x18] sm:$0xe]
        %v806 = vld [vmem:[%s168 + $0x1c] sm:$0xf]
        %v807 = vld [vmem:[%s168 + $0x20] sm:$0x1]
        %v808 = vld [vmem:[%s168 + $0x24] sm:$0xe]
        %v809 = vld [vmem:[%s168 + $0x28] sm:$0xf]
        %v810 = vld [vmem:[%s168 + $0x2c] sm:$0x1]
        %v811 = vld [vmem:[%s168 + $0x30] sm:$0xe]
        %v812 = vld [vmem:[%s168 + $0x34] sm:$0xf]
        %v813 = vld [vmem:[%s168 + $0x38] sm:$0x1]
        %v814 = vld [vmem:[%s168 + $0x3c] sm:$0xe]
        %v815 = vld [vmem:[%s168 + $0x40] sm:$0xf]
        %v816 = vld [vmem:[%s168 + $0x44] sm:$0x1]
        %v817 = vld [vmem:[%s168 + $0x48] sm:$0xe]
        %v818 = vld [vmem:[%s168 + $0x4c] sm:$0xf]
        %v819 = vld [vmem:[%s168 + $0x50] sm:$0x1]
        %v820 = vld [vmem:[%s168 + $0x54] sm:$0xe]
        %v821 = vld [vmem:[%s168 + $0x58] sm:$0xf]
        %v822 = vld [vmem:[%s168 + $0x5c] sm:$0x1]
        %v823 = vld [vmem:[%s168 + $0x60] sm:$0xe]
        %v824 = vld [vmem:[%s168 + $0x64] sm:$0xf]
        %v825 = vld [vmem:[%s168 + $0x68] sm:$0x1]
        %v826 = vld [vmem:[%s168 + $0x6c] sm:$0xe]
        %v827 = vld [vmem:[%s168 + $0x70] sm:$0xf]
        %v828 = vld [vmem:[%s168 + $0x74] sm:$0x1]
        %v829 = vld [vmem:[%s168 + $0x78] sm:$0xe]
        %v830 = vld [vmem:[%s168 + $0x7c] sm:$0xf]
        %v831 = vld [vmem:[%s168 + $0x80] sm:$0x1]
        %v832 = vld [vmem:[%s168 + $0x84] sm:$0xe]
        %v833 = vld [vmem:[%s168 + $0x88] sm:$0xf]
        %v834 = vld [vmem:[%s168 + $0x8c] sm:$0x1]
        %v835 = vld [vmem:[%s168 + $0x90] sm:$0xe]
        %v836 = vld [vmem:[%s168 + $0x94] sm:$0xf]
        %v837 = vld [vmem:[%s168 + $0x98] sm:$0x1]
        %v838 = vld [vmem:[%s168 + $0x9c] sm:$0xe]
        %v839 = vld [vmem:[%s168 + $0xa0] sm:$0xf]
        %v840 = vld [vmem:[%s168 + $0xa4] sm:$0x1]
        %v841 = vld [vmem:[%s168 + $0xa8] sm:$0xe]
        %v842 = vld [vmem:[%s168 + $0xac] sm:$0xf]
        %v843 = vld [vmem:[%s168 + $0xb0] sm:$0x1]
        %v844 = vld [vmem:[%s168 + $0xb4] sm:$0xe]
        %v845 = vld [vmem:[%s168 + $0xb8] sm:$0xf]
        %v846 = vld [vmem:[%s168 + $0xbc] sm:$0x1]
        %vm895 = vcmask 1042432
        %vm896 = vcmask 1046532
        %vm897 = vmor %vm895, %vm896
        %v898 = vrot.slane %v799, 5
        %v899 = vrot.slane %v898, 4
        %v900 = vrot.slane %v800, 5
        %v901 = vsel %vm897, %v899, %v900
        %v902 = vrot.slane %v900, 4
        %v903 = vrot.slane %v801, 5
        %v904 = vsel %vm897, %v902, %v903
        %v905 = vrot.slane %v802, 5
        %v906 = vrot.slane %v905, 4
        %v907 = vrot.slane %v803, 5
        %v908 = vsel %vm897, %v906, %v907
        %v909 = vrot.slane %v907, 4
        %v910 = vrot.slane %v804, 5
        %v911 = vsel %vm897, %v909, %v910
        %v912 = vrot.slane %v805, 5
        %v913 = vrot.slane %v912, 4
        %v914 = vrot.slane %v806, 5
        %v915 = vsel %vm897, %v913, %v914
        %v916 = vrot.slane %v914, 4
        %v917 = vrot.slane %v807, 5
        %v918 = vsel %vm897, %v916, %v917
        %v919 = vrot.slane %v808, 5
        %v920 = vrot.slane %v919, 4
        %v921 = vrot.slane %v809, 5
        %v922 = vsel %vm897, %v920, %v921
        %v923 = vrot.slane %v921, 4
        %v924 = vrot.slane %v810, 5
        %v925 = vsel %vm897, %v923, %v924
        %v926 = vrot.slane %v811, 5
        %v927 = vrot.slane %v926, 4
        %v928 = vrot.slane %v812, 5
        %v929 = vsel %vm897, %v927, %v928
        %v930 = vrot.slane %v928, 4
        %v931 = vrot.slane %v813, 5
        %v932 = vsel %vm897, %v930, %v931
        %v933 = vrot.slane %v814, 5
        %v934 = vrot.slane %v933, 4
        %v935 = vrot.slane %v815, 5
        %v936 = vsel %vm897, %v934, %v935
        %v937 = vrot.slane %v935, 4
        %v938 = vrot.slane %v816, 5
        %v939 = vsel %vm897, %v937, %v938
        %v940 = vrot.slane %v817, 5
        %v941 = vrot.slane %v940, 4
        %v942 = vrot.slane %v818, 5
        %v943 = vsel %vm897, %v941, %v942
        %v944 = vrot.slane %v942, 4
        %v945 = vrot.slane %v819, 5
        %v946 = vsel %vm897, %v944, %v945
        %v947 = vrot.slane %v820, 5
        %v948 = vrot.slane %v947, 4
        %v949 = vrot.slane %v821, 5
        %v950 = vsel %vm897, %v948, %v949
        %v951 = vrot.slane %v949, 4
        %v952 = vrot.slane %v822, 5
        %v953 = vsel %vm897, %v951, %v952
        %v954 = vrot.slane %v823, 5
        %v955 = vrot.slane %v954, 4
        %v956 = vrot.slane %v824, 5
        %v957 = vsel %vm897, %v955, %v956
        %v958 = vrot.slane %v956, 4
        %v959 = vrot.slane %v825, 5
        %v960 = vsel %vm897, %v958, %v959
        %v961 = vrot.slane %v826, 5
        %v962 = vrot.slane %v961, 4
        %v963 = vrot.slane %v827, 5
        %v964 = vsel %vm897, %v962, %v963
        %v965 = vrot.slane %v963, 4
        %v966 = vrot.slane %v828, 5
        %v967 = vsel %vm897, %v965, %v966
        %v968 = vrot.slane %v829, 5
        %v969 = vrot.slane %v968, 4
        %v970 = vrot.slane %v830, 5
        %v971 = vsel %vm897, %v969, %v970
        %v972 = vrot.slane %v970, 4
        %v973 = vrot.slane %v831, 5
        %v974 = vsel %vm897, %v972, %v973
        %v975 = vrot.slane %v832, 5
        %v976 = vrot.slane %v975, 4
        %v977 = vrot.slane %v833, 5
        %v978 = vsel %vm897, %v976, %v977
        %v979 = vrot.slane %v977, 4
        %v980 = vrot.slane %v834, 5
        %v981 = vsel %vm897, %v979, %v980
        %v982 = vrot.slane %v835, 5
        %v983 = vrot.slane %v982, 4
        %v984 = vrot.slane %v836, 5
        %v985 = vsel %vm897, %v983, %v984
        %v986 = vrot.slane %v984, 4
        %v987 = vrot.slane %v837, 5
        %v988 = vsel %vm897, %v986, %v987
        %v989 = vrot.slane %v838, 5
        %v990 = vrot.slane %v989, 4
        %v991 = vrot.slane %v839, 5
        %v992 = vsel %vm897, %v990, %v991
        %v993 = vrot.slane %v991, 4
        %v994 = vrot.slane %v840, 5
        %v995 = vsel %vm897, %v993, %v994
        %v996 = vrot.slane %v841, 5
        %v997 = vrot.slane %v996, 4
        %v998 = vrot.slane %v842, 5
        %v999 = vsel %vm897, %v997, %v998
        %v1000 = vrot.slane %v998, 4
        %v1001 = vrot.slane %v843, 5
        %v1002 = vsel %vm897, %v1000, %v1001
        %v1003 = vrot.slane %v844, 5
        %v1004 = vrot.slane %v1003, 4
        %v1005 = vrot.slane %v845, 5
        %v1006 = vsel %vm897, %v1004, %v1005
        %v1007 = vrot.slane %v1005, 4
        %v1008 = vrot.slane %v846, 5
        %v1009 = vsel %vm897, %v1007, %v1008
        %1010 = vrot.lane.b32.xlu0 %v901, 16
        %v1011 = vpop.permute.xlu0 %1010
        %1012 = vrot.lane.b32.xlu0 %v904, 16
        %v1013 = vpop.permute.xlu0 %1012
        %1014 = vrot.lane.b32.xlu0 %v908, 16
        %v1015 = vpop.permute.xlu0 %1014
        %1016 = vrot.lane.b32.xlu0 %v911, 16
        %v1017 = vpop.permute.xlu0 %1016
        %1018 = vrot.lane.b32.xlu0 %v915, 16
        %v1019 = vpop.permute.xlu0 %1018
        %1020 = vrot.lane.b32.xlu0 %v918, 16
        %v1021 = vpop.permute.xlu0 %1020
        %1022 = vrot.lane.b32.xlu0 %v922, 16
        %v1023 = vpop.permute.xlu0 %1022
        %1024 = vrot.lane.b32.xlu0 %v925, 16
        %v1025 = vpop.permute.xlu0 %1024
        %1026 = vrot.lane.b32.xlu0 %v929, 16
        %v1027 = vpop.permute.xlu0 %1026
        %1028 = vrot.lane.b32.xlu0 %v932, 16
        %v1029 = vpop.permute.xlu0 %1028
        %1030 = vrot.lane.b32.xlu0 %v936, 16
        %v1031 = vpop.permute.xlu0 %1030
        %1032 = vrot.lane.b32.xlu0 %v939, 16
        %v1033 = vpop.permute.xlu0 %1032
        %1034 = vrot.lane.b32.xlu0 %v943, 16
        %v1035 = vpop.permute.xlu0 %1034
        %1036 = vrot.lane.b32.xlu0 %v946, 16
        %v1037 = vpop.permute.xlu0 %1036
        %1038 = vrot.lane.b32.xlu0 %v950, 16
        %v1039 = vpop.permute.xlu0 %1038
        %1040 = vrot.lane.b32.xlu0 %v953, 16
        %v1041 = vpop.permute.xlu0 %1040
        %1042 = vrot.lane.b32.xlu0 %v957, 16
        %v1043 = vpop.permute.xlu0 %1042
        %1044 = vrot.lane.b32.xlu0 %v960, 16
        %v1045 = vpop.permute.xlu0 %1044
        %1046 = vrot.lane.b32.xlu0 %v964, 16
        %v1047 = vpop.permute.xlu0 %1046
        %1048 = vrot.lane.b32.xlu0 %v967, 16
        %v1049 = vpop.permute.xlu0 %1048
        %1050 = vrot.lane.b32.xlu0 %v971, 16
        %v1051 = vpop.permute.xlu0 %1050
        %1052 = vrot.lane.b32.xlu0 %v974, 16
        %v1053 = vpop.permute.xlu0 %1052
        %1054 = vrot.lane.b32.xlu0 %v978, 16
        %v1055 = vpop.permute.xlu0 %1054
        %1056 = vrot.lane.b32.xlu0 %v981, 16
        %v1057 = vpop.permute.xlu0 %1056
        %1058 = vrot.lane.b32.xlu0 %v985, 16
        %v1059 = vpop.permute.xlu0 %1058
        %1060 = vrot.lane.b32.xlu0 %v988, 16
        %v1061 = vpop.permute.xlu0 %1060
        %1062 = vrot.lane.b32.xlu0 %v992, 16
        %v1063 = vpop.permute.xlu0 %1062
        %1064 = vrot.lane.b32.xlu0 %v995, 16
        %v1065 = vpop.permute.xlu0 %1064
        %1066 = vrot.lane.b32.xlu0 %v999, 16
        %v1067 = vpop.permute.xlu0 %1066
        %1068 = vrot.lane.b32.xlu0 %v1002, 16
        %v1069 = vpop.permute.xlu0 %1068
        %1070 = vrot.lane.b32.xlu0 %v1006, 16
        %v1071 = vpop.permute.xlu0 %1070
        %1072 = vrot.lane.b32.xlu0 %v1009, 16
        %v1073 = vpop.permute.xlu0 %1072
        %vm1106 = vcmask 191616
        %1107 = vst.msk [vmem:[#allocation2] sm:$0xf] %vm1106, %v1011
        %1108 = vst.msk [vmem:[#allocation2 + $0x4] sm:$0xf] %vm1106, %v1013
        %1109 = vst.msk [vmem:[#allocation2 + $0x8] sm:$0xf] %vm1106, %v1015
        %1110 = vst.msk [vmem:[#allocation2 + $0xc] sm:$0xf] %vm1106, %v1017
        %1111 = vst.msk [vmem:[#allocation2 + $0x10] sm:$0xf] %vm1106, %v1019
        %1112 = vst.msk [vmem:[#allocation2 + $0x14] sm:$0xf] %vm1106, %v1021
        %1113 = vst.msk [vmem:[#allocation2 + $0x18] sm:$0xf] %vm1106, %v1023
        %1114 = vst.msk [vmem:[#allocation2 + $0x1c] sm:$0xf] %vm1106, %v1025
        %1115 = vst.msk [vmem:[#allocation2 + $0x20] sm:$0xf] %vm1106, %v1027
        %1116 = vst.msk [vmem:[#allocation2 + $0x24] sm:$0xf] %vm1106, %v1029
        %1117 = vst.msk [vmem:[#allocation2 + $0x28] sm:$0xf] %vm1106, %v1031
        %1118 = vst.msk [vmem:[#allocation2 + $0x2c] sm:$0xf] %vm1106, %v1033
        %1119 = vst.msk [vmem:[#allocation2 + $0x30] sm:$0xf] %vm1106, %v1035
        %1120 = vst.msk [vmem:[#allocation2 + $0x34] sm:$0xf] %vm1106, %v1037
        %1121 = vst.msk [vmem:[#allocation2 + $0x38] sm:$0xf] %vm1106, %v1039
        %1122 = vst.msk [vmem:[#allocation2 + $0x3c] sm:$0xf] %vm1106, %v1041
        %1123 = vst.msk [vmem:[#allocation2 + $0x40] sm:$0xf] %vm1106, %v1043
        %1124 = vst.msk [vmem:[#allocation2 + $0x44] sm:$0xf] %vm1106, %v1045
        %1125 = vst.msk [vmem:[#allocation2 + $0x48] sm:$0xf] %vm1106, %v1047
        %1126 = vst.msk [vmem:[#allocation2 + $0x4c] sm:$0xf] %vm1106, %v1049
        %1127 = vst.msk [vmem:[#allocation2 + $0x50] sm:$0xf] %vm1106, %v1051
        %1128 = vst.msk [vmem:[#allocation2 + $0x54] sm:$0xf] %vm1106, %v1053
        %1129 = vst.msk [vmem:[#allocation2 + $0x58] sm:$0xf] %vm1106, %v1055
        %1130 = vst.msk [vmem:[#allocation2 + $0x5c] sm:$0xf] %vm1106, %v1057
        %1131 = vst.msk [vmem:[#allocation2 + $0x60] sm:$0xf] %vm1106, %v1059
        %1132 = vst.msk [vmem:[#allocation2 + $0x64] sm:$0xf] %vm1106, %v1061
        %1133 = vst.msk [vmem:[#allocation2 + $0x68] sm:$0xf] %vm1106, %v1063
        %1134 = vst.msk [vmem:[#allocation2 + $0x6c] sm:$0xf] %vm1106, %v1065
        %1135 = vst.msk [vmem:[#allocation2 + $0x70] sm:$0xf] %vm1106, %v1067
        %1136 = vst.msk [vmem:[#allocation2 + $0x74] sm:$0xf] %vm1106, %v1069
        %1137 = vst.msk [vmem:[#allocation2 + $0x78] sm:$0xf] %vm1106, %v1071
        %1138 = vst.msk [vmem:[#allocation2 + $0x7c] sm:$0xf] %vm1106, %v1073
        %s1139 = scalar_lea.vmem %s168, 12
        %v1140 = vld [vmem:[%s1139] sm:$0xf]
        %v1141 = vld [vmem:[%s1139 + $0x4] sm:$0xf]
        %v1142 = vld [vmem:[%s1139 + $0xc] sm:$0xf]
        %v1143 = vld [vmem:[%s1139 + $0x10] sm:$0xf]
        %v1144 = vld [vmem:[%s1139 + $0x18] sm:$0xf]
        %v1145 = vld [vmem:[%s1139 + $0x1c] sm:$0xf]
        %v1146 = vld [vmem:[%s1139 + $0x24] sm:$0xf]
        %v1147 = vld [vmem:[%s1139 + $0x28] sm:$0xf]
        %v1148 = vld [vmem:[%s1139 + $0x30] sm:$0xf]
        %v1149 = vld [vmem:[%s1139 + $0x34] sm:$0xf]
        %v1150 = vld [vmem:[%s1139 + $0x3c] sm:$0xf]
        %v1151 = vld [vmem:[%s1139 + $0x40] sm:$0xf]
        %v1152 = vld [vmem:[%s1139 + $0x48] sm:$0xf]
        %v1153 = vld [vmem:[%s1139 + $0x4c] sm:$0xf]
        %v1154 = vld [vmem:[%s1139 + $0x54] sm:$0xf]
        %v1155 = vld [vmem:[%s1139 + $0x58] sm:$0xf]
        %v1156 = vld [vmem:[%s1139 + $0x60] sm:$0xf]
        %v1157 = vld [vmem:[%s1139 + $0x64] sm:$0xf]
        %v1158 = vld [vmem:[%s1139 + $0x6c] sm:$0xf]
        %v1159 = vld [vmem:[%s1139 + $0x70] sm:$0xf]
        %v1160 = vld [vmem:[%s1139 + $0x78] sm:$0xf]
        %v1161 = vld [vmem:[%s1139 + $0x7c] sm:$0xf]
        %v1162 = vld [vmem:[%s1139 + $0x84] sm:$0xf]
        %v1163 = vld [vmem:[%s1139 + $0x88] sm:$0xf]
        %v1164 = vld [vmem:[%s1139 + $0x90] sm:$0xf]
        %v1165 = vld [vmem:[%s1139 + $0x94] sm:$0xf]
        %v1166 = vld [vmem:[%s1139 + $0x9c] sm:$0xf]
        %v1167 = vld [vmem:[%s1139 + $0xa0] sm:$0xf]
        %v1168 = vld [vmem:[%s1139 + $0xa8] sm:$0xf]
        %v1169 = vld [vmem:[%s1139 + $0xac] sm:$0xf]
        %v1170 = vld [vmem:[%s1139 + $0xb4] sm:$0xf]
        %v1171 = vld [vmem:[%s1139 + $0xb8] sm:$0xf]
        %1204 = vrot.lane.b32.xlu0 %v1140, 24
        %v1205 = vpop.permute.xlu0 %1204
        %1206 = vrot.lane.b32.xlu0 %v1141, 24
        %v1207 = vpop.permute.xlu0 %1206
        %1208 = vrot.lane.b32.xlu0 %v1142, 24
        %v1209 = vpop.permute.xlu0 %1208
        %1210 = vrot.lane.b32.xlu0 %v1143, 24
        %v1211 = vpop.permute.xlu0 %1210
        %1212 = vrot.lane.b32.xlu0 %v1144, 24
        %v1213 = vpop.permute.xlu0 %1212
        %1214 = vrot.lane.b32.xlu0 %v1145, 24
        %v1215 = vpop.permute.xlu0 %1214
        %1216 = vrot.lane.b32.xlu0 %v1146, 24
        %v1217 = vpop.permute.xlu0 %1216
        %1218 = vrot.lane.b32.xlu0 %v1147, 24
        %v1219 = vpop.permute.xlu0 %1218
        %1220 = vrot.lane.b32.xlu0 %v1148, 24
        %v1221 = vpop.permute.xlu0 %1220
        %1222 = vrot.lane.b32.xlu0 %v1149, 24
        %v1223 = vpop.permute.xlu0 %1222
        %1224 = vrot.lane.b32.xlu0 %v1150, 24
        %v1225 = vpop.permute.xlu0 %1224
        %1226 = vrot.lane.b32.xlu0 %v1151, 24
        %v1227 = vpop.permute.xlu0 %1226
        %1228 = vrot.lane.b32.xlu0 %v1152, 24
        %v1229 = vpop.permute.xlu0 %1228
        %1230 = vrot.lane.b32.xlu0 %v1153, 24
        %v1231 = vpop.permute.xlu0 %1230
        %1232 = vrot.lane.b32.xlu0 %v1154, 24
        %v1233 = vpop.permute.xlu0 %1232
        %1234 = vrot.lane.b32.xlu0 %v1155, 24
        %v1235 = vpop.permute.xlu0 %1234
        %1236 = vrot.lane.b32.xlu0 %v1156, 24
        %v1237 = vpop.permute.xlu0 %1236
        %1238 = vrot.lane.b32.xlu0 %v1157, 24
        %v1239 = vpop.permute.xlu0 %1238
        %1240 = vrot.lane.b32.xlu0 %v1158, 24
        %v1241 = vpop.permute.xlu0 %1240
        %1242 = vrot.lane.b32.xlu0 %v1159, 24
        %v1243 = vpop.permute.xlu0 %1242
        %1244 = vrot.lane.b32.xlu0 %v1160, 24
        %v1245 = vpop.permute.xlu0 %1244
        %1246 = vrot.lane.b32.xlu0 %v1161, 24
        %v1247 = vpop.permute.xlu0 %1246
        %1248 = vrot.lane.b32.xlu0 %v1162, 24
        %v1249 = vpop.permute.xlu0 %1248
        %1250 = vrot.lane.b32.xlu0 %v1163, 24
        %v1251 = vpop.permute.xlu0 %1250
        %1252 = vrot.lane.b32.xlu0 %v1164, 24
        %v1253 = vpop.permute.xlu0 %1252
        %1254 = vrot.lane.b32.xlu0 %v1165, 24
        %v1255 = vpop.permute.xlu0 %1254
        %1256 = vrot.lane.b32.xlu0 %v1166, 24
        %v1257 = vpop.permute.xlu0 %1256
        %1258 = vrot.lane.b32.xlu0 %v1167, 24
        %v1259 = vpop.permute.xlu0 %1258
        %1260 = vrot.lane.b32.xlu0 %v1168, 24
        %v1261 = vpop.permute.xlu0 %1260
        %1262 = vrot.lane.b32.xlu0 %v1169, 24
        %v1263 = vpop.permute.xlu0 %1262
        %1264 = vrot.lane.b32.xlu0 %v1170, 24
        %v1265 = vpop.permute.xlu0 %1264
        %1266 = vrot.lane.b32.xlu0 %v1171, 24
        %v1267 = vpop.permute.xlu0 %1266
        %vm1300 = vcmask 257216
        %1301 = vst.msk [vmem:[#allocation2] sm:$0xf] %vm1300, %v1205
        %1302 = vst.msk [vmem:[#allocation2 + $0x4] sm:$0xf] %vm1300, %v1207
        %1303 = vst.msk [vmem:[#allocation2 + $0x8] sm:$0xf] %vm1300, %v1209
        %1304 = vst.msk [vmem:[#allocation2 + $0xc] sm:$0xf] %vm1300, %v1211
        %1305 = vst.msk [vmem:[#allocation2 + $0x10] sm:$0xf] %vm1300, %v1213
        %1306 = vst.msk [vmem:[#allocation2 + $0x14] sm:$0xf] %vm1300, %v1215
        %1307 = vst.msk [vmem:[#allocation2 + $0x18] sm:$0xf] %vm1300, %v1217
        %1308 = vst.msk [vmem:[#allocation2 + $0x1c] sm:$0xf] %vm1300, %v1219
        %1309 = vst.msk [vmem:[#allocation2 + $0x20] sm:$0xf] %vm1300, %v1221
        %1310 = vst.msk [vmem:[#allocation2 + $0x24] sm:$0xf] %vm1300, %v1223
        %1311 = vst.msk [vmem:[#allocation2 + $0x28] sm:$0xf] %vm1300, %v1225
        %1312 = vst.msk [vmem:[#allocation2 + $0x2c] sm:$0xf] %vm1300, %v1227
        %1313 = vst.msk [vmem:[#allocation2 + $0x30] sm:$0xf] %vm1300, %v1229
        %1314 = vst.msk [vmem:[#allocation2 + $0x34] sm:$0xf] %vm1300, %v1231
        %1315 = vst.msk [vmem:[#allocation2 + $0x38] sm:$0xf] %vm1300, %v1233
        %1316 = vst.msk [vmem:[#allocation2 + $0x3c] sm:$0xf] %vm1300, %v1235
        %1317 = vst.msk [vmem:[#allocation2 + $0x40] sm:$0xf] %vm1300, %v1237
        %1318 = vst.msk [vmem:[#allocation2 + $0x44] sm:$0xf] %vm1300, %v1239
        %1319 = vst.msk [vmem:[#allocation2 + $0x48] sm:$0xf] %vm1300, %v1241
        %1320 = vst.msk [vmem:[#allocation2 + $0x4c] sm:$0xf] %vm1300, %v1243
        %1321 = vst.msk [vmem:[#allocation2 + $0x50] sm:$0xf] %vm1300, %v1245
        %1322 = vst.msk [vmem:[#allocation2 + $0x54] sm:$0xf] %vm1300, %v1247
        %1323 = vst.msk [vmem:[#allocation2 + $0x58] sm:$0xf] %vm1300, %v1249
        %1324 = vst.msk [vmem:[#allocation2 + $0x5c] sm:$0xf] %vm1300, %v1251
        %1325 = vst.msk [vmem:[#allocation2 + $0x60] sm:$0xf] %vm1300, %v1253
        %1326 = vst.msk [vmem:[#allocation2 + $0x64] sm:$0xf] %vm1300, %v1255
        %1327 = vst.msk [vmem:[#allocation2 + $0x68] sm:$0xf] %vm1300, %v1257
        %1328 = vst.msk [vmem:[#allocation2 + $0x6c] sm:$0xf] %vm1300, %v1259
        %1329 = vst.msk [vmem:[#allocation2 + $0x70] sm:$0xf] %vm1300, %v1261
        %1330 = vst.msk [vmem:[#allocation2 + $0x74] sm:$0xf] %vm1300, %v1263
        %1331 = vst.msk [vmem:[#allocation2 + $0x78] sm:$0xf] %vm1300, %v1265
        %1332 = vst.msk [vmem:[#allocation2 + $0x7c] sm:$0xf] %vm1300, %v1267
        %v1333 = vld [vmem:[%s1139] sm:$0xf]
        %v1334 = vld [vmem:[%s1139 + $0x4] sm:$0xf]
        %v1335 = vld [vmem:[%s1139 + $0x8] sm:$0x1]
        %v1336 = vld [vmem:[%s1139 + $0xc] sm:$0xf]
        %v1337 = vld [vmem:[%s1139 + $0x10] sm:$0xf]
        %v1338 = vld [vmem:[%s1139 + $0x14] sm:$0x1]
        %v1339 = vld [vmem:[%s1139 + $0x18] sm:$0xf]
        %v1340 = vld [vmem:[%s1139 + $0x1c] sm:$0xf]
        %v1341 = vld [vmem:[%s1139 + $0x20] sm:$0x1]
        %v1342 = vld [vmem:[%s1139 + $0x24] sm:$0xf]
        %v1343 = vld [vmem:[%s1139 + $0x28] sm:$0xf]
        %v1344 = vld [vmem:[%s1139 + $0x2c] sm:$0x1]
        %v1345 = vld [vmem:[%s1139 + $0x30] sm:$0xf]
        %v1346 = vld [vmem:[%s1139 + $0x34] sm:$0xf]
        %v1347 = vld [vmem:[%s1139 + $0x38] sm:$0x1]
        %v1348 = vld [vmem:[%s1139 + $0x3c] sm:$0xf]
        %v1349 = vld [vmem:[%s1139 + $0x40] sm:$0xf]
        %v1350 = vld [vmem:[%s1139 + $0x44] sm:$0x1]
        %v1351 = vld [vmem:[%s1139 + $0x48] sm:$0xf]
        %v1352 = vld [vmem:[%s1139 + $0x4c] sm:$0xf]
        %v1353 = vld [vmem:[%s1139 + $0x50] sm:$0x1]
        %v1354 = vld [vmem:[%s1139 + $0x54] sm:$0xf]
        %v1355 = vld [vmem:[%s1139 + $0x58] sm:$0xf]
        %v1356 = vld [vmem:[%s1139 + $0x5c] sm:$0x1]
        %v1357 = vld [vmem:[%s1139 + $0x60] sm:$0xf]
        %v1358 = vld [vmem:[%s1139 + $0x64] sm:$0xf]
        %v1359 = vld [vmem:[%s1139 + $0x68] sm:$0x1]
        %v1360 = vld [vmem:[%s1139 + $0x6c] sm:$0xf]
        %v1361 = vld [vmem:[%s1139 + $0x70] sm:$0xf]
        %v1362 = vld [vmem:[%s1139 + $0x74] sm:$0x1]
        %v1363 = vld [vmem:[%s1139 + $0x78] sm:$0xf]
        %v1364 = vld [vmem:[%s1139 + $0x7c] sm:$0xf]
        %v1365 = vld [vmem:[%s1139 + $0x80] sm:$0x1]
        %v1366 = vld [vmem:[%s1139 + $0x84] sm:$0xf]
        %v1367 = vld [vmem:[%s1139 + $0x88] sm:$0xf]
        %v1368 = vld [vmem:[%s1139 + $0x8c] sm:$0x1]
        %v1369 = vld [vmem:[%s1139 + $0x90] sm:$0xf]
        %v1370 = vld [vmem:[%s1139 + $0x94] sm:$0xf]
        %v1371 = vld [vmem:[%s1139 + $0x98] sm:$0x1]
        %v1372 = vld [vmem:[%s1139 + $0x9c] sm:$0xf]
        %v1373 = vld [vmem:[%s1139 + $0xa0] sm:$0xf]
        %v1374 = vld [vmem:[%s1139 + $0xa4] sm:$0x1]
        %v1375 = vld [vmem:[%s1139 + $0xa8] sm:$0xf]
        %v1376 = vld [vmem:[%s1139 + $0xac] sm:$0xf]
        %v1377 = vld [vmem:[%s1139 + $0xb0] sm:$0x1]
        %v1378 = vld [vmem:[%s1139 + $0xb4] sm:$0xf]
        %v1379 = vld [vmem:[%s1139 + $0xb8] sm:$0xf]
        %v1380 = vld [vmem:[%s1139 + $0xbc] sm:$0x1]
        %v1382 = vshrl.u32 %v1333, 16
        %v1384 = vrot.slane %v1382, 4
        %v1385 = vshll.u32 %v1333, 16
        %v1387 = vrot.slane %v1385, 5
        %v1388 = vor.u32 %v1384, %v1387
        %v1389 = vrot.slane %v1388, 4
        %v1391 = vshll.u32 %v1334, 16
        %v1393 = vrot.slane %v1391, 5
        %v1394 = vsel %vm285, %v1389, %v1393
        %v1395 = vshrl.u32 %v1334, 16
        %v1397 = vrot.slane %v1395, 4
        %v1398 = vor.u32 %v1397, %v1393
        %v1399 = vrot.slane %v1398, 4
        %v1401 = vshll.u32 %v1335, 16
        %v1403 = vrot.slane %v1401, 5
        %v1404 = vsel %vm285, %v1399, %v1403
        %v1406 = vshrl.u32 %v1336, 16
        %v1408 = vrot.slane %v1406, 4
        %v1409 = vshll.u32 %v1336, 16
        %v1411 = vrot.slane %v1409, 5
        %v1412 = vor.u32 %v1408, %v1411
        %v1413 = vrot.slane %v1412, 4
        %v1415 = vshll.u32 %v1337, 16
        %v1417 = vrot.slane %v1415, 5
        %v1418 = vsel %vm285, %v1413, %v1417
        %v1419 = vshrl.u32 %v1337, 16
        %v1421 = vrot.slane %v1419, 4
        %v1422 = vor.u32 %v1421, %v1417
        %v1423 = vrot.slane %v1422, 4
        %v1425 = vshll.u32 %v1338, 16
        %v1427 = vrot.slane %v1425, 5
        %v1428 = vsel %vm285, %v1423, %v1427
        %v1430 = vshrl.u32 %v1339, 16
        %v1432 = vrot.slane %v1430, 4
        %v1433 = vshll.u32 %v1339, 16
        %v1435 = vrot.slane %v1433, 5
        %v1436 = vor.u32 %v1432, %v1435
        %v1437 = vrot.slane %v1436, 4
        %v1439 = vshll.u32 %v1340, 16
        %v1441 = vrot.slane %v1439, 5
        %v1442 = vsel %vm285, %v1437, %v1441
        %v1443 = vshrl.u32 %v1340, 16
        %v1445 = vrot.slane %v1443, 4
        %v1446 = vor.u32 %v1445, %v1441
        %v1447 = vrot.slane %v1446, 4
        %v1449 = vshll.u32 %v1341, 16
        %v1451 = vrot.slane %v1449, 5
        %v1452 = vsel %vm285, %v1447, %v1451
        %v1454 = vshrl.u32 %v1342, 16
        %v1456 = vrot.slane %v1454, 4
        %v1457 = vshll.u32 %v1342, 16
        %v1459 = vrot.slane %v1457, 5
        %v1460 = vor.u32 %v1456, %v1459
        %v1461 = vrot.slane %v1460, 4
        %v1463 = vshll.u32 %v1343, 16
        %v1465 = vrot.slane %v1463, 5
        %v1466 = vsel %vm285, %v1461, %v1465
        %v1467 = vshrl.u32 %v1343, 16
        %v1469 = vrot.slane %v1467, 4
        %v1470 = vor.u32 %v1469, %v1465
        %v1471 = vrot.slane %v1470, 4
        %v1473 = vshll.u32 %v1344, 16
        %v1475 = vrot.slane %v1473, 5
        %v1476 = vsel %vm285, %v1471, %v1475
        %v1478 = vshrl.u32 %v1345, 16
        %v1480 = vrot.slane %v1478, 4
        %v1481 = vshll.u32 %v1345, 16
        %v1483 = vrot.slane %v1481, 5
        %v1484 = vor.u32 %v1480, %v1483
        %v1485 = vrot.slane %v1484, 4
        %v1487 = vshll.u32 %v1346, 16
        %v1489 = vrot.slane %v1487, 5
        %v1490 = vsel %vm285, %v1485, %v1489
        %v1491 = vshrl.u32 %v1346, 16
        %v1493 = vrot.slane %v1491, 4
        %v1494 = vor.u32 %v1493, %v1489
        %v1495 = vrot.slane %v1494, 4
        %v1497 = vshll.u32 %v1347, 16
        %v1499 = vrot.slane %v1497, 5
        %v1500 = vsel %vm285, %v1495, %v1499
        %v1502 = vshrl.u32 %v1348, 16
        %v1504 = vrot.slane %v1502, 4
        %v1505 = vshll.u32 %v1348, 16
        %v1507 = vrot.slane %v1505, 5
        %v1508 = vor.u32 %v1504, %v1507
        %v1509 = vrot.slane %v1508, 4
        %v1511 = vshll.u32 %v1349, 16
        %v1513 = vrot.slane %v1511, 5
        %v1514 = vsel %vm285, %v1509, %v1513
        %v1515 = vshrl.u32 %v1349, 16
        %v1517 = vrot.slane %v1515, 4
        %v1518 = vor.u32 %v1517, %v1513
        %v1519 = vrot.slane %v1518, 4
        %v1521 = vshll.u32 %v1350, 16
        %v1523 = vrot.slane %v1521, 5
        %v1524 = vsel %vm285, %v1519, %v1523
        %v1526 = vshrl.u32 %v1351, 16
        %v1528 = vrot.slane %v1526, 4
        %v1529 = vshll.u32 %v1351, 16
        %v1531 = vrot.slane %v1529, 5
        %v1532 = vor.u32 %v1528, %v1531
        %v1533 = vrot.slane %v1532, 4
        %v1535 = vshll.u32 %v1352, 16
        %v1537 = vrot.slane %v1535, 5
        %v1538 = vsel %vm285, %v1533, %v1537
        %v1539 = vshrl.u32 %v1352, 16
        %v1541 = vrot.slane %v1539, 4
        %v1542 = vor.u32 %v1541, %v1537
        %v1543 = vrot.slane %v1542, 4
        %v1545 = vshll.u32 %v1353, 16
        %v1547 = vrot.slane %v1545, 5
        %v1548 = vsel %vm285, %v1543, %v1547
        %v1550 = vshrl.u32 %v1354, 16
        %v1552 = vrot.slane %v1550, 4
        %v1553 = vshll.u32 %v1354, 16
        %v1555 = vrot.slane %v1553, 5
        %v1556 = vor.u32 %v1552, %v1555
        %v1557 = vrot.slane %v1556, 4
        %v1559 = vshll.u32 %v1355, 16
        %v1561 = vrot.slane %v1559, 5
        %v1562 = vsel %vm285, %v1557, %v1561
        %v1563 = vshrl.u32 %v1355, 16
        %v1565 = vrot.slane %v1563, 4
        %v1566 = vor.u32 %v1565, %v1561
        %v1567 = vrot.slane %v1566, 4
        %v1569 = vshll.u32 %v1356, 16
        %v1571 = vrot.slane %v1569, 5
        %v1572 = vsel %vm285, %v1567, %v1571
        %v1574 = vshrl.u32 %v1357, 16
        %v1576 = vrot.slane %v1574, 4
        %v1577 = vshll.u32 %v1357, 16
        %v1579 = vrot.slane %v1577, 5
        %v1580 = vor.u32 %v1576, %v1579
        %v1581 = vrot.slane %v1580, 4
        %v1583 = vshll.u32 %v1358, 16
        %v1585 = vrot.slane %v1583, 5
        %v1586 = vsel %vm285, %v1581, %v1585
        %v1587 = vshrl.u32 %v1358, 16
        %v1589 = vrot.slane %v1587, 4
        %v1590 = vor.u32 %v1589, %v1585
        %v1591 = vrot.slane %v1590, 4
        %v1593 = vshll.u32 %v1359, 16
        %v1595 = vrot.slane %v1593, 5
        %v1596 = vsel %vm285, %v1591, %v1595
        %v1598 = vshrl.u32 %v1360, 16
        %v1600 = vrot.slane %v1598, 4
        %v1601 = vshll.u32 %v1360, 16
        %v1603 = vrot.slane %v1601, 5
        %v1604 = vor.u32 %v1600, %v1603
        %v1605 = vrot.slane %v1604, 4
        %v1607 = vshll.u32 %v1361, 16
        %v1609 = vrot.slane %v1607, 5
        %v1610 = vsel %vm285, %v1605, %v1609
        %v1611 = vshrl.u32 %v1361, 16
        %v1613 = vrot.slane %v1611, 4
        %v1614 = vor.u32 %v1613, %v1609
        %v1615 = vrot.slane %v1614, 4
        %v1617 = vshll.u32 %v1362, 16
        %v1619 = vrot.slane %v1617, 5
        %v1620 = vsel %vm285, %v1615, %v1619
        %v1622 = vshrl.u32 %v1363, 16
        %v1624 = vrot.slane %v1622, 4
        %v1625 = vshll.u32 %v1363, 16
        %v1627 = vrot.slane %v1625, 5
        %v1628 = vor.u32 %v1624, %v1627
        %v1629 = vrot.slane %v1628, 4
        %v1631 = vshll.u32 %v1364, 16
        %v1633 = vrot.slane %v1631, 5
        %v1634 = vsel %vm285, %v1629, %v1633
        %v1635 = vshrl.u32 %v1364, 16
        %v1637 = vrot.slane %v1635, 4
        %v1638 = vor.u32 %v1637, %v1633
        %v1639 = vrot.slane %v1638, 4
        %v1641 = vshll.u32 %v1365, 16
        %v1643 = vrot.slane %v1641, 5
        %v1644 = vsel %vm285, %v1639, %v1643
        %v1646 = vshrl.u32 %v1366, 16
        %v1648 = vrot.slane %v1646, 4
        %v1649 = vshll.u32 %v1366, 16
        %v1651 = vrot.slane %v1649, 5
        %v1652 = vor.u32 %v1648, %v1651
        %v1653 = vrot.slane %v1652, 4
        %v1655 = vshll.u32 %v1367, 16
        %v1657 = vrot.slane %v1655, 5
        %v1658 = vsel %vm285, %v1653, %v1657
        %v1659 = vshrl.u32 %v1367, 16
        %v1661 = vrot.slane %v1659, 4
        %v1662 = vor.u32 %v1661, %v1657
        %v1663 = vrot.slane %v1662, 4
        %v1665 = vshll.u32 %v1368, 16
        %v1667 = vrot.slane %v1665, 5
        %v1668 = vsel %vm285, %v1663, %v1667
        %v1670 = vshrl.u32 %v1369, 16
        %v1672 = vrot.slane %v1670, 4
        %v1673 = vshll.u32 %v1369, 16
        %v1675 = vrot.slane %v1673, 5
        %v1676 = vor.u32 %v1672, %v1675
        %v1677 = vrot.slane %v1676, 4
        %v1679 = vshll.u32 %v1370, 16
        %v1681 = vrot.slane %v1679, 5
        %v1682 = vsel %vm285, %v1677, %v1681
        %v1683 = vshrl.u32 %v1370, 16
        %v1685 = vrot.slane %v1683, 4
        %v1686 = vor.u32 %v1685, %v1681
        %v1687 = vrot.slane %v1686, 4
        %v1689 = vshll.u32 %v1371, 16
        %v1691 = vrot.slane %v1689, 5
        %v1692 = vsel %vm285, %v1687, %v1691
        %v1694 = vshrl.u32 %v1372, 16
        %v1696 = vrot.slane %v1694, 4
        %v1697 = vshll.u32 %v1372, 16
        %v1699 = vrot.slane %v1697, 5
        %v1700 = vor.u32 %v1696, %v1699
        %v1701 = vrot.slane %v1700, 4
        %v1703 = vshll.u32 %v1373, 16
        %v1705 = vrot.slane %v1703, 5
        %v1706 = vsel %vm285, %v1701, %v1705
        %v1707 = vshrl.u32 %v1373, 16
        %v1709 = vrot.slane %v1707, 4
        %v1710 = vor.u32 %v1709, %v1705
        %v1711 = vrot.slane %v1710, 4
        %v1713 = vshll.u32 %v1374, 16
        %v1715 = vrot.slane %v1713, 5
        %v1716 = vsel %vm285, %v1711, %v1715
        %v1718 = vshrl.u32 %v1375, 16
        %v1720 = vrot.slane %v1718, 4
        %v1721 = vshll.u32 %v1375, 16
        %v1723 = vrot.slane %v1721, 5
        %v1724 = vor.u32 %v1720, %v1723
        %v1725 = vrot.slane %v1724, 4
        %v1727 = vshll.u32 %v1376, 16
        %v1729 = vrot.slane %v1727, 5
        %v1730 = vsel %vm285, %v1725, %v1729
        %v1731 = vshrl.u32 %v1376, 16
        %v1733 = vrot.slane %v1731, 4
        %v1734 = vor.u32 %v1733, %v1729
        %v1735 = vrot.slane %v1734, 4
        %v1737 = vshll.u32 %v1377, 16
        %v1739 = vrot.slane %v1737, 5
        %v1740 = vsel %vm285, %v1735, %v1739
        %v1742 = vshrl.u32 %v1378, 16
        %v1744 = vrot.slane %v1742, 4
        %v1745 = vshll.u32 %v1378, 16
        %v1747 = vrot.slane %v1745, 5
        %v1748 = vor.u32 %v1744, %v1747
        %v1749 = vrot.slane %v1748, 4
        %v1751 = vshll.u32 %v1379, 16
        %v1753 = vrot.slane %v1751, 5
        %v1754 = vsel %vm285, %v1749, %v1753
        %v1755 = vshrl.u32 %v1379, 16
        %v1757 = vrot.slane %v1755, 4
        %v1758 = vor.u32 %v1757, %v1753
        %v1759 = vrot.slane %v1758, 4
        %v1761 = vshll.u32 %v1380, 16
        %v1763 = vrot.slane %v1761, 5
        %v1764 = vsel %vm285, %v1759, %v1763
        %1765 = vrot.lane.b32.xlu0 %v1394, 32
        %v1766 = vpop.permute.xlu0 %1765
        %1767 = vrot.lane.b32.xlu0 %v1404, 32
        %v1768 = vpop.permute.xlu0 %1767
        %1769 = vrot.lane.b32.xlu0 %v1418, 32
        %v1770 = vpop.permute.xlu0 %1769
        %1771 = vrot.lane.b32.xlu0 %v1428, 32
        %v1772 = vpop.permute.xlu0 %1771
        %1773 = vrot.lane.b32.xlu0 %v1442, 32
        %v1774 = vpop.permute.xlu0 %1773
        %1775 = vrot.lane.b32.xlu0 %v1452, 32
        %v1776 = vpop.permute.xlu0 %1775
        %1777 = vrot.lane.b32.xlu0 %v1466, 32
        %v1778 = vpop.permute.xlu0 %1777
        %1779 = vrot.lane.b32.xlu0 %v1476, 32
        %v1780 = vpop.permute.xlu0 %1779
        %1781 = vrot.lane.b32.xlu0 %v1490, 32
        %v1782 = vpop.permute.xlu0 %1781
        %1783 = vrot.lane.b32.xlu0 %v1500, 32
        %v1784 = vpop.permute.xlu0 %1783
        %1785 = vrot.lane.b32.xlu0 %v1514, 32
        %v1786 = vpop.permute.xlu0 %1785
        %1787 = vrot.lane.b32.xlu0 %v1524, 32
        %v1788 = vpop.permute.xlu0 %1787
        %1789 = vrot.lane.b32.xlu0 %v1538, 32
        %v1790 = vpop.permute.xlu0 %1789
        %1791 = vrot.lane.b32.xlu0 %v1548, 32
        %v1792 = vpop.permute.xlu0 %1791
        %1793 = vrot.lane.b32.xlu0 %v1562, 32
        %v1794 = vpop.permute.xlu0 %1793
        %1795 = vrot.lane.b32.xlu0 %v1572, 32
        %v1796 = vpop.permute.xlu0 %1795
        %1797 = vrot.lane.b32.xlu0 %v1586, 32
        %v1798 = vpop.permute.xlu0 %1797
        %1799 = vrot.lane.b32.xlu0 %v1596, 32
        %v1800 = vpop.permute.xlu0 %1799
        %1801 = vrot.lane.b32.xlu0 %v1610, 32
        %v1802 = vpop.permute.xlu0 %1801
        %1803 = vrot.lane.b32.xlu0 %v1620, 32
        %v1804 = vpop.permute.xlu0 %1803
        %1805 = vrot.lane.b32.xlu0 %v1634, 32
        %v1806 = vpop.permute.xlu0 %1805
        %1807 = vrot.lane.b32.xlu0 %v1644, 32
        %v1808 = vpop.permute.xlu0 %1807
        %1809 = vrot.lane.b32.xlu0 %v1658, 32
        %v1810 = vpop.permute.xlu0 %1809
        %1811 = vrot.lane.b32.xlu0 %v1668, 32
        %v1812 = vpop.permute.xlu0 %1811
        %1813 = vrot.lane.b32.xlu0 %v1682, 32
        %v1814 = vpop.permute.xlu0 %1813
        %1815 = vrot.lane.b32.xlu0 %v1692, 32
        %v1816 = vpop.permute.xlu0 %1815
        %1817 = vrot.lane.b32.xlu0 %v1706, 32
        %v1818 = vpop.permute.xlu0 %1817
        %1819 = vrot.lane.b32.xlu0 %v1716, 32
        %v1820 = vpop.permute.xlu0 %1819
        %1821 = vrot.lane.b32.xlu0 %v1730, 32
        %v1822 = vpop.permute.xlu0 %1821
        %1823 = vrot.lane.b32.xlu0 %v1740, 32
        %v1824 = vpop.permute.xlu0 %1823
        %1825 = vrot.lane.b32.xlu0 %v1754, 32
        %v1826 = vpop.permute.xlu0 %1825
        %1827 = vrot.lane.b32.xlu0 %v1764, 32
        %v1828 = vpop.permute.xlu0 %1827
        %vm1861 = vcmask 322816
        %1862 = vst.msk [vmem:[#allocation2] sm:$0xf] %vm1861, %v1766
        %1863 = vst.msk [vmem:[#allocation2 + $0x4] sm:$0xf] %vm1861, %v1768
        %1864 = vst.msk [vmem:[#allocation2 + $0x8] sm:$0xf] %vm1861, %v1770
        %1865 = vst.msk [vmem:[#allocation2 + $0xc] sm:$0xf] %vm1861, %v1772
        %1866 = vst.msk [vmem:[#allocation2 + $0x10] sm:$0xf] %vm1861, %v1774
        %1867 = vst.msk [vmem:[#allocation2 + $0x14] sm:$0xf] %vm1861, %v1776
        %1868 = vst.msk [vmem:[#allocation2 + $0x18] sm:$0xf] %vm1861, %v1778
        %1869 = vst.msk [vmem:[#allocation2 + $0x1c] sm:$0xf] %vm1861, %v1780
        %1870 = vst.msk [vmem:[#allocation2 + $0x20] sm:$0xf] %vm1861, %v1782
        %1871 = vst.msk [vmem:[#allocation2 + $0x24] sm:$0xf] %vm1861, %v1784
        %1872 = vst.msk [vmem:[#allocation2 + $0x28] sm:$0xf] %vm1861, %v1786
        %1873 = vst.msk [vmem:[#allocation2 + $0x2c] sm:$0xf] %vm1861, %v1788
        %1874 = vst.msk [vmem:[#allocation2 + $0x30] sm:$0xf] %vm1861, %v1790
        %1875 = vst.msk [vmem:[#allocation2 + $0x34] sm:$0xf] %vm1861, %v1792
        %1876 = vst.msk [vmem:[#allocation2 + $0x38] sm:$0xf] %vm1861, %v1794
        %1877 = vst.msk [vmem:[#allocation2 + $0x3c] sm:$0xf] %vm1861, %v1796
        %1878 = vst.msk [vmem:[#allocation2 + $0x40] sm:$0xf] %vm1861, %v1798
        %1879 = vst.msk [vmem:[#allocation2 + $0x44] sm:$0xf] %vm1861, %v1800
        %1880 = vst.msk [vmem:[#allocation2 + $0x48] sm:$0xf] %vm1861, %v1802
        %1881 = vst.msk [vmem:[#allocation2 + $0x4c] sm:$0xf] %vm1861, %v1804
        %1882 = vst.msk [vmem:[#allocation2 + $0x50] sm:$0xf] %vm1861, %v1806
        %1883 = vst.msk [vmem:[#allocation2 + $0x54] sm:$0xf] %vm1861, %v1808
        %1884 = vst.msk [vmem:[#allocation2 + $0x58] sm:$0xf] %vm1861, %v1810
        %1885 = vst.msk [vmem:[#allocation2 + $0x5c] sm:$0xf] %vm1861, %v1812
        %1886 = vst.msk [vmem:[#allocation2 + $0x60] sm:$0xf] %vm1861, %v1814
        %1887 = vst.msk [vmem:[#allocation2 + $0x64] sm:$0xf] %vm1861, %v1816
        %1888 = vst.msk [vmem:[#allocation2 + $0x68] sm:$0xf] %vm1861, %v1818
        %1889 = vst.msk [vmem:[#allocation2 + $0x6c] sm:$0xf] %vm1861, %v1820
        %1890 = vst.msk [vmem:[#allocation2 + $0x70] sm:$0xf] %vm1861, %v1822
        %1891 = vst.msk [vmem:[#allocation2 + $0x74] sm:$0xf] %vm1861, %v1824
        %1892 = vst.msk [vmem:[#allocation2 + $0x78] sm:$0xf] %vm1861, %v1826
        %1893 = vst.msk [vmem:[#allocation2 + $0x7c] sm:$0xf] %vm1861, %v1828
        %v1894 = vld [vmem:[%s1139] sm:$0xe]
        %v1895 = vld [vmem:[%s1139 + $0x4] sm:$0xf]
        %v1896 = vld [vmem:[%s1139 + $0x8] sm:$0x1]
        %v1897 = vld [vmem:[%s1139 + $0xc] sm:$0xe]
        %v1898 = vld [vmem:[%s1139 + $0x10] sm:$0xf]
        %v1899 = vld [vmem:[%s1139 + $0x14] sm:$0x1]
        %v1900 = vld [vmem:[%s1139 + $0x18] sm:$0xe]
        %v1901 = vld [vmem:[%s1139 + $0x1c] sm:$0xf]
        %v1902 = vld [vmem:[%s1139 + $0x20] sm:$0x1]
        %v1903 = vld [vmem:[%s1139 + $0x24] sm:$0xe]
        %v1904 = vld [vmem:[%s1139 + $0x28] sm:$0xf]
        %v1905 = vld [vmem:[%s1139 + $0x2c] sm:$0x1]
        %v1906 = vld [vmem:[%s1139 + $0x30] sm:$0xe]
        %v1907 = vld [vmem:[%s1139 + $0x34] sm:$0xf]
        %v1908 = vld [vmem:[%s1139 + $0x38] sm:$0x1]
        %v1909 = vld [vmem:[%s1139 + $0x3c] sm:$0xe]
        %v1910 = vld [vmem:[%s1139 + $0x40] sm:$0xf]
        %v1911 = vld [vmem:[%s1139 + $0x44] sm:$0x1]
        %v1912 = vld [vmem:[%s1139 + $0x48] sm:$0xe]
        %v1913 = vld [vmem:[%s1139 + $0x4c] sm:$0xf]
        %v1914 = vld [vmem:[%s1139 + $0x50] sm:$0x1]
        %v1915 = vld [vmem:[%s1139 + $0x54] sm:$0xe]
        %v1916 = vld [vmem:[%s1139 + $0x58] sm:$0xf]
        %v1917 = vld [vmem:[%s1139 + $0x5c] sm:$0x1]
        %v1918 = vld [vmem:[%s1139 + $0x60] sm:$0xe]
        %v1919 = vld [vmem:[%s1139 + $0x64] sm:$0xf]
        %v1920 = vld [vmem:[%s1139 + $0x68] sm:$0x1]
        %v1921 = vld [vmem:[%s1139 + $0x6c] sm:$0xe]
        %v1922 = vld [vmem:[%s1139 + $0x70] sm:$0xf]
        %v1923 = vld [vmem:[%s1139 + $0x74] sm:$0x1]
        %v1924 = vld [vmem:[%s1139 + $0x78] sm:$0xe]
        %v1925 = vld [vmem:[%s1139 + $0x7c] sm:$0xf]
        %v1926 = vld [vmem:[%s1139 + $0x80] sm:$0x1]
        %v1927 = vld [vmem:[%s1139 + $0x84] sm:$0xe]
        %v1928 = vld [vmem:[%s1139 + $0x88] sm:$0xf]
        %v1929 = vld [vmem:[%s1139 + $0x8c] sm:$0x1]
        %v1930 = vld [vmem:[%s1139 + $0x90] sm:$0xe]
        %v1931 = vld [vmem:[%s1139 + $0x94] sm:$0xf]
        %v1932 = vld [vmem:[%s1139 + $0x98] sm:$0x1]
        %v1933 = vld [vmem:[%s1139 + $0x9c] sm:$0xe]
        %v1934 = vld [vmem:[%s1139 + $0xa0] sm:$0xf]
        %v1935 = vld [vmem:[%s1139 + $0xa4] sm:$0x1]
        %v1936 = vld [vmem:[%s1139 + $0xa8] sm:$0xe]
        %v1937 = vld [vmem:[%s1139 + $0xac] sm:$0xf]
        %v1938 = vld [vmem:[%s1139 + $0xb0] sm:$0x1]
        %v1939 = vld [vmem:[%s1139 + $0xb4] sm:$0xe]
        %v1940 = vld [vmem:[%s1139 + $0xb8] sm:$0xf]
        %v1941 = vld [vmem:[%s1139 + $0xbc] sm:$0x1]
        %v1990 = vrot.slane %v1894, 5
        %v1991 = vrot.slane %v1990, 4
        %v1992 = vrot.slane %v1895, 5
        %v1993 = vsel %vm897, %v1991, %v1992
        %v1994 = vrot.slane %v1992, 4
        %v1995 = vrot.slane %v1896, 5
        %v1996 = vsel %vm897, %v1994, %v1995
        %v1997 = vrot.slane %v1897, 5
        %v1998 = vrot.slane %v1997, 4
        %v1999 = vrot.slane %v1898, 5
        %v2000 = vsel %vm897, %v1998, %v1999
        %v2001 = vrot.slane %v1999, 4
        %v2002 = vrot.slane %v1899, 5
        %v2003 = vsel %vm897, %v2001, %v2002
        %v2004 = vrot.slane %v1900, 5
        %v2005 = vrot.slane %v2004, 4
        %v2006 = vrot.slane %v1901, 5
        %v2007 = vsel %vm897, %v2005, %v2006
        %v2008 = vrot.slane %v2006, 4
        %v2009 = vrot.slane %v1902, 5
        %v2010 = vsel %vm897, %v2008, %v2009
        %v2011 = vrot.slane %v1903, 5
        %v2012 = vrot.slane %v2011, 4
        %v2013 = vrot.slane %v1904, 5
        %v2014 = vsel %vm897, %v2012, %v2013
        %v2015 = vrot.slane %v2013, 4
        %v2016 = vrot.slane %v1905, 5
        %v2017 = vsel %vm897, %v2015, %v2016
        %v2018 = vrot.slane %v1906, 5
        %v2019 = vrot.slane %v2018, 4
        %v2020 = vrot.slane %v1907, 5
        %v2021 = vsel %vm897, %v2019, %v2020
        %v2022 = vrot.slane %v2020, 4
        %v2023 = vrot.slane %v1908, 5
        %v2024 = vsel %vm897, %v2022, %v2023
        %v2025 = vrot.slane %v1909, 5
        %v2026 = vrot.slane %v2025, 4
        %v2027 = vrot.slane %v1910, 5
        %v2028 = vsel %vm897, %v2026, %v2027
        %v2029 = vrot.slane %v2027, 4
        %v2030 = vrot.slane %v1911, 5
        %v2031 = vsel %vm897, %v2029, %v2030
        %v2032 = vrot.slane %v1912, 5
        %v2033 = vrot.slane %v2032, 4
        %v2034 = vrot.slane %v1913, 5
        %v2035 = vsel %vm897, %v2033, %v2034
        %v2036 = vrot.slane %v2034, 4
        %v2037 = vrot.slane %v1914, 5
        %v2038 = vsel %vm897, %v2036, %v2037
        %v2039 = vrot.slane %v1915, 5
        %v2040 = vrot.slane %v2039, 4
        %v2041 = vrot.slane %v1916, 5
        %v2042 = vsel %vm897, %v2040, %v2041
        %v2043 = vrot.slane %v2041, 4
        %v2044 = vrot.slane %v1917, 5
        %v2045 = vsel %vm897, %v2043, %v2044
        %v2046 = vrot.slane %v1918, 5
        %v2047 = vrot.slane %v2046, 4
        %v2048 = vrot.slane %v1919, 5
        %v2049 = vsel %vm897, %v2047, %v2048
        %v2050 = vrot.slane %v2048, 4
        %v2051 = vrot.slane %v1920, 5
        %v2052 = vsel %vm897, %v2050, %v2051
        %v2053 = vrot.slane %v1921, 5
        %v2054 = vrot.slane %v2053, 4
        %v2055 = vrot.slane %v1922, 5
        %v2056 = vsel %vm897, %v2054, %v2055
        %v2057 = vrot.slane %v2055, 4
        %v2058 = vrot.slane %v1923, 5
        %v2059 = vsel %vm897, %v2057, %v2058
        %v2060 = vrot.slane %v1924, 5
        %v2061 = vrot.slane %v2060, 4
        %v2062 = vrot.slane %v1925, 5
        %v2063 = vsel %vm897, %v2061, %v2062
        %v2064 = vrot.slane %v2062, 4
        %v2065 = vrot.slane %v1926, 5
        %v2066 = vsel %vm897, %v2064, %v2065
        %v2067 = vrot.slane %v1927, 5
        %v2068 = vrot.slane %v2067, 4
        %v2069 = vrot.slane %v1928, 5
        %v2070 = vsel %vm897, %v2068, %v2069
        %v2071 = vrot.slane %v2069, 4
        %v2072 = vrot.slane %v1929, 5
        %v2073 = vsel %vm897, %v2071, %v2072
        %v2074 = vrot.slane %v1930, 5
        %v2075 = vrot.slane %v2074, 4
        %v2076 = vrot.slane %v1931, 5
        %v2077 = vsel %vm897, %v2075, %v2076
        %v2078 = vrot.slane %v2076, 4
        %v2079 = vrot.slane %v1932, 5
        %v2080 = vsel %vm897, %v2078, %v2079
        %v2081 = vrot.slane %v1933, 5
        %v2082 = vrot.slane %v2081, 4
        %v2083 = vrot.slane %v1934, 5
        %v2084 = vsel %vm897, %v2082, %v2083
        %v2085 = vrot.slane %v2083, 4
        %v2086 = vrot.slane %v1935, 5
        %v2087 = vsel %vm897, %v2085, %v2086
        %v2088 = vrot.slane %v1936, 5
        %v2089 = vrot.slane %v2088, 4
        %v2090 = vrot.slane %v1937, 5
        %v2091 = vsel %vm897, %v2089, %v2090
        %v2092 = vrot.slane %v2090, 4
        %v2093 = vrot.slane %v1938, 5
        %v2094 = vsel %vm897, %v2092, %v2093
        %v2095 = vrot.slane %v1939, 5
        %v2096 = vrot.slane %v2095, 4
        %v2097 = vrot.slane %v1940, 5
        %v2098 = vsel %vm897, %v2096, %v2097
        %v2099 = vrot.slane %v2097, 4
        %v2100 = vrot.slane %v1941, 5
        %v2101 = vsel %vm897, %v2099, %v2100
        %2102 = vrot.lane.b32.xlu0 %v1993, 40
        %v2103 = vpop.permute.xlu0 %2102
        %2104 = vrot.lane.b32.xlu0 %v1996, 40
        %v2105 = vpop.permute.xlu0 %2104
        %2106 = vrot.lane.b32.xlu0 %v2000, 40
        %v2107 = vpop.permute.xlu0 %2106
        %2108 = vrot.lane.b32.xlu0 %v2003, 40
        %v2109 = vpop.permute.xlu0 %2108
        %2110 = vrot.lane.b32.xlu0 %v2007, 40
        %v2111 = vpop.permute.xlu0 %2110
        %2112 = vrot.lane.b32.xlu0 %v2010, 40
        %v2113 = vpop.permute.xlu0 %2112
        %2114 = vrot.lane.b32.xlu0 %v2014, 40
        %v2115 = vpop.permute.xlu0 %2114
        %2116 = vrot.lane.b32.xlu0 %v2017, 40
        %v2117 = vpop.permute.xlu0 %2116
        %2118 = vrot.lane.b32.xlu0 %v2021, 40
        %v2119 = vpop.permute.xlu0 %2118
        %2120 = vrot.lane.b32.xlu0 %v2024, 40
        %v2121 = vpop.permute.xlu0 %2120
        %2122 = vrot.lane.b32.xlu0 %v2028, 40
        %v2123 = vpop.permute.xlu0 %2122
        %2124 = vrot.lane.b32.xlu0 %v2031, 40
        %v2125 = vpop.permute.xlu0 %2124
        %2126 = vrot.lane.b32.xlu0 %v2035, 40
        %v2127 = vpop.permute.xlu0 %2126
        %2128 = vrot.lane.b32.xlu0 %v2038, 40
        %v2129 = vpop.permute.xlu0 %2128
        %2130 = vrot.lane.b32.xlu0 %v2042, 40
        %v2131 = vpop.permute.xlu0 %2130
        %2132 = vrot.lane.b32.xlu0 %v2045, 40
        %v2133 = vpop.permute.xlu0 %2132
        %2134 = vrot.lane.b32.xlu0 %v2049, 40
        %v2135 = vpop.permute.xlu0 %2134
        %2136 = vrot.lane.b32.xlu0 %v2052, 40
        %v2137 = vpop.permute.xlu0 %2136
        %2138 = vrot.lane.b32.xlu0 %v2056, 40
        %v2139 = vpop.permute.xlu0 %2138
        %2140 = vrot.lane.b32.xlu0 %v2059, 40
        %v2141 = vpop.permute.xlu0 %2140
        %2142 = vrot.lane.b32.xlu0 %v2063, 40
        %v2143 = vpop.permute.xlu0 %2142
        %2144 = vrot.lane.b32.xlu0 %v2066, 40
        %v2145 = vpop.permute.xlu0 %2144
        %2146 = vrot.lane.b32.xlu0 %v2070, 40
        %v2147 = vpop.permute.xlu0 %2146
        %2148 = vrot.lane.b32.xlu0 %v2073, 40
        %v2149 = vpop.permute.xlu0 %2148
        %2150 = vrot.lane.b32.xlu0 %v2077, 40
        %v2151 = vpop.permute.xlu0 %2150
        %2152 = vrot.lane.b32.xlu0 %v2080, 40
        %v2153 = vpop.permute.xlu0 %2152
        %2154 = vrot.lane.b32.xlu0 %v2084, 40
        %v2155 = vpop.permute.xlu0 %2154
        %2156 = vrot.lane.b32.xlu0 %v2087, 40
        %v2157 = vpop.permute.xlu0 %2156
        %2158 = vrot.lane.b32.xlu0 %v2091, 40
        %v2159 = vpop.permute.xlu0 %2158
        %2160 = vrot.lane.b32.xlu0 %v2094, 40
        %v2161 = vpop.permute.xlu0 %2160
        %2162 = vrot.lane.b32.xlu0 %v2098, 40
        %v2163 = vpop.permute.xlu0 %2162
        %2164 = vrot.lane.b32.xlu0 %v2101, 40
        %v2165 = vpop.permute.xlu0 %2164
        %vm2198 = vcmask 388416
        %2199 = vst.msk [vmem:[#allocation2] sm:$0xf] %vm2198, %v2103
        %2200 = vst.msk [vmem:[#allocation2 + $0x4] sm:$0xf] %vm2198, %v2105
        %2201 = vst.msk [vmem:[#allocation2 + $0x8] sm:$0xf] %vm2198, %v2107
        %2202 = vst.msk [vmem:[#allocation2 + $0xc] sm:$0xf] %vm2198, %v2109
        %2203 = vst.msk [vmem:[#allocation2 + $0x10] sm:$0xf] %vm2198, %v2111
        %2204 = vst.msk [vmem:[#allocation2 + $0x14] sm:$0xf] %vm2198, %v2113
        %2205 = vst.msk [vmem:[#allocation2 + $0x18] sm:$0xf] %vm2198, %v2115
        %2206 = vst.msk [vmem:[#allocation2 + $0x1c] sm:$0xf] %vm2198, %v2117
        %2207 = vst.msk [vmem:[#allocation2 + $0x20] sm:$0xf] %vm2198, %v2119
        %2208 = vst.msk [vmem:[#allocation2 + $0x24] sm:$0xf] %vm2198, %v2121
        %2209 = vst.msk [vmem:[#allocation2 + $0x28] sm:$0xf] %vm2198, %v2123
        %2210 = vst.msk [vmem:[#allocation2 + $0x2c] sm:$0xf] %vm2198, %v2125
        %2211 = vst.msk [vmem:[#allocation2 + $0x30] sm:$0xf] %vm2198, %v2127
        %2212 = vst.msk [vmem:[#allocation2 + $0x34] sm:$0xf] %vm2198, %v2129
        %2213 = vst.msk [vmem:[#allocation2 + $0x38] sm:$0xf] %vm2198, %v2131
        %2214 = vst.msk [vmem:[#allocation2 + $0x3c] sm:$0xf] %vm2198, %v2133
        %2215 = vst.msk [vmem:[#allocation2 + $0x40] sm:$0xf] %vm2198, %v2135
        %2216 = vst.msk [vmem:[#allocation2 + $0x44] sm:$0xf] %vm2198, %v2137
        %2217 = vst.msk [vmem:[#allocation2 + $0x48] sm:$0xf] %vm2198, %v2139
        %2218 = vst.msk [vmem:[#allocation2 + $0x4c] sm:$0xf] %vm2198, %v2141
        %2219 = vst.msk [vmem:[#allocation2 + $0x50] sm:$0xf] %vm2198, %v2143
        %2220 = vst.msk [vmem:[#allocation2 + $0x54] sm:$0xf] %vm2198, %v2145
        %2221 = vst.msk [vmem:[#allocation2 + $0x58] sm:$0xf] %vm2198, %v2147
        %2222 = vst.msk [vmem:[#allocation2 + $0x5c] sm:$0xf] %vm2198, %v2149
        %2223 = vst.msk [vmem:[#allocation2 + $0x60] sm:$0xf] %vm2198, %v2151
        %2224 = vst.msk [vmem:[#allocation2 + $0x64] sm:$0xf] %vm2198, %v2153
        %2225 = vst.msk [vmem:[#allocation2 + $0x68] sm:$0xf] %vm2198, %v2155
        %2226 = vst.msk [vmem:[#allocation2 + $0x6c] sm:$0xf] %vm2198, %v2157
        %2227 = vst.msk [vmem:[#allocation2 + $0x70] sm:$0xf] %vm2198, %v2159
        %2228 = vst.msk [vmem:[#allocation2 + $0x74] sm:$0xf] %vm2198, %v2161
        %2229 = vst.msk [vmem:[#allocation2 + $0x78] sm:$0xf] %vm2198, %v2163
        %2230 = vst.msk [vmem:[#allocation2 + $0x7c] sm:$0xf] %vm2198, %v2165
        %s2231 = scalar_lea.vmem %s168, 24
        %v2232 = vld [vmem:[%s2231] sm:$0xf]
        %v2233 = vld [vmem:[%s2231 + $0x4] sm:$0xf]
        %v2234 = vld [vmem:[%s2231 + $0xc] sm:$0xf]
        %v2235 = vld [vmem:[%s2231 + $0x10] sm:$0xf]
        %v2236 = vld [vmem:[%s2231 + $0x18] sm:$0xf]
        %v2237 = vld [vmem:[%s2231 + $0x1c] sm:$0xf]
        %v2238 = vld [vmem:[%s2231 + $0x24] sm:$0xf]
        %v2239 = vld [vmem:[%s2231 + $0x28] sm:$0xf]
        %v2240 = vld [vmem:[%s2231 + $0x30] sm:$0xf]
        %v2241 = vld [vmem:[%s2231 + $0x34] sm:$0xf]
        %v2242 = vld [vmem:[%s2231 + $0x3c] sm:$0xf]
        %v2243 = vld [vmem:[%s2231 + $0x40] sm:$0xf]
        %v2244 = vld [vmem:[%s2231 + $0x48] sm:$0xf]
        %v2245 = vld [vmem:[%s2231 + $0x4c] sm:$0xf]
        %v2246 = vld [vmem:[%s2231 + $0x54] sm:$0xf]
        %v2247 = vld [vmem:[%s2231 + $0x58] sm:$0xf]
        %v2248 = vld [vmem:[%s2231 + $0x60] sm:$0xf]
        %v2249 = vld [vmem:[%s2231 + $0x64] sm:$0xf]
        %v2250 = vld [vmem:[%s2231 + $0x6c] sm:$0xf]
        %v2251 = vld [vmem:[%s2231 + $0x70] sm:$0xf]
        %v2252 = vld [vmem:[%s2231 + $0x78] sm:$0xf]
        %v2253 = vld [vmem:[%s2231 + $0x7c] sm:$0xf]
        %v2254 = vld [vmem:[%s2231 + $0x84] sm:$0xf]
        %v2255 = vld [vmem:[%s2231 + $0x88] sm:$0xf]
        %v2256 = vld [vmem:[%s2231 + $0x90] sm:$0xf]
        %v2257 = vld [vmem:[%s2231 + $0x94] sm:$0xf]
        %v2258 = vld [vmem:[%s2231 + $0x9c] sm:$0xf]
        %v2259 = vld [vmem:[%s2231 + $0xa0] sm:$0xf]
        %v2260 = vld [vmem:[%s2231 + $0xa8] sm:$0xf]
        %v2261 = vld [vmem:[%s2231 + $0xac] sm:$0xf]
        %v2262 = vld [vmem:[%s2231 + $0xb4] sm:$0xf]
        %v2263 = vld [vmem:[%s2231 + $0xb8] sm:$0xf]
        %2296 = vrot.lane.b32.xlu0 %v2232, 48
        %v2297 = vpop.permute.xlu0 %2296
        %2298 = vrot.lane.b32.xlu0 %v2233, 48
        %v2299 = vpop.permute.xlu0 %2298
        %2300 = vrot.lane.b32.xlu0 %v2234, 48
        %v2301 = vpop.permute.xlu0 %2300
        %2302 = vrot.lane.b32.xlu0 %v2235, 48
        %v2303 = vpop.permute.xlu0 %2302
        %2304 = vrot.lane.b32.xlu0 %v2236, 48
        %v2305 = vpop.permute.xlu0 %2304
        %2306 = vrot.lane.b32.xlu0 %v2237, 48
        %v2307 = vpop.permute.xlu0 %2306
        %2308 = vrot.lane.b32.xlu0 %v2238, 48
        %v2309 = vpop.permute.xlu0 %2308
        %2310 = vrot.lane.b32.xlu0 %v2239, 48
        %v2311 = vpop.permute.xlu0 %2310
        %2312 = vrot.lane.b32.xlu0 %v2240, 48
        %v2313 = vpop.permute.xlu0 %2312
        %2314 = vrot.lane.b32.xlu0 %v2241, 48
        %v2315 = vpop.permute.xlu0 %2314
        %2316 = vrot.lane.b32.xlu0 %v2242, 48
        %v2317 = vpop.permute.xlu0 %2316
        %2318 = vrot.lane.b32.xlu0 %v2243, 48
        %v2319 = vpop.permute.xlu0 %2318
        %2320 = vrot.lane.b32.xlu0 %v2244, 48
        %v2321 = vpop.permute.xlu0 %2320
        %2322 = vrot.lane.b32.xlu0 %v2245, 48
        %v2323 = vpop.permute.xlu0 %2322
        %2324 = vrot.lane.b32.xlu0 %v2246, 48
        %v2325 = vpop.permute.xlu0 %2324
        %2326 = vrot.lane.b32.xlu0 %v2247, 48
        %v2327 = vpop.permute.xlu0 %2326
        %2328 = vrot.lane.b32.xlu0 %v2248, 48
        %v2329 = vpop.permute.xlu0 %2328
        %2330 = vrot.lane.b32.xlu0 %v2249, 48
        %v2331 = vpop.permute.xlu0 %2330
        %2332 = vrot.lane.b32.xlu0 %v2250, 48
        %v2333 = vpop.permute.xlu0 %2332
        %2334 = vrot.lane.b32.xlu0 %v2251, 48
        %v2335 = vpop.permute.xlu0 %2334
        %2336 = vrot.lane.b32.xlu0 %v2252, 48
        %v2337 = vpop.permute.xlu0 %2336
        %2338 = vrot.lane.b32.xlu0 %v2253, 48
        %v2339 = vpop.permute.xlu0 %2338
        %2340 = vrot.lane.b32.xlu0 %v2254, 48
        %v2341 = vpop.permute.xlu0 %2340
        %2342 = vrot.lane.b32.xlu0 %v2255, 48
        %v2343 = vpop.permute.xlu0 %2342
        %2344 = vrot.lane.b32.xlu0 %v2256, 48
        %v2345 = vpop.permute.xlu0 %2344
        %2346 = vrot.lane.b32.xlu0 %v2257, 48
        %v2347 = vpop.permute.xlu0 %2346
        %2348 = vrot.lane.b32.xlu0 %v2258, 48
        %v2349 = vpop.permute.xlu0 %2348
        %2350 = vrot.lane.b32.xlu0 %v2259, 48
        %v2351 = vpop.permute.xlu0 %2350
        %2352 = vrot.lane.b32.xlu0 %v2260, 48
        %v2353 = vpop.permute.xlu0 %2352
        %2354 = vrot.lane.b32.xlu0 %v2261, 48
        %v2355 = vpop.permute.xlu0 %2354
        %2356 = vrot.lane.b32.xlu0 %v2262, 48
        %v2357 = vpop.permute.xlu0 %2356
        %2358 = vrot.lane.b32.xlu0 %v2263, 48
        %v2359 = vpop.permute.xlu0 %2358
        %vm2392 = vcmask 454016
        %2393 = vst.msk [vmem:[#allocation2] sm:$0xf] %vm2392, %v2297
        %2394 = vst.msk [vmem:[#allocation2 + $0x4] sm:$0xf] %vm2392, %v2299
        %2395 = vst.msk [vmem:[#allocation2 + $0x8] sm:$0xf] %vm2392, %v2301
        %2396 = vst.msk [vmem:[#allocation2 + $0xc] sm:$0xf] %vm2392, %v2303
        %2397 = vst.msk [vmem:[#allocation2 + $0x10] sm:$0xf] %vm2392, %v2305
        %2398 = vst.msk [vmem:[#allocation2 + $0x14] sm:$0xf] %vm2392, %v2307
        %2399 = vst.msk [vmem:[#allocation2 + $0x18] sm:$0xf] %vm2392, %v2309
        %2400 = vst.msk [vmem:[#allocation2 + $0x1c] sm:$0xf] %vm2392, %v2311
        %2401 = vst.msk [vmem:[#allocation2 + $0x20] sm:$0xf] %vm2392, %v2313
        %2402 = vst.msk [vmem:[#allocation2 + $0x24] sm:$0xf] %vm2392, %v2315
        %2403 = vst.msk [vmem:[#allocation2 + $0x28] sm:$0xf] %vm2392, %v2317
        %2404 = vst.msk [vmem:[#allocation2 + $0x2c] sm:$0xf] %vm2392, %v2319
        %2405 = vst.msk [vmem:[#allocation2 + $0x30] sm:$0xf] %vm2392, %v2321
        %2406 = vst.msk [vmem:[#allocation2 + $0x34] sm:$0xf] %vm2392, %v2323
        %2407 = vst.msk [vmem:[#allocation2 + $0x38] sm:$0xf] %vm2392, %v2325
        %2408 = vst.msk [vmem:[#allocation2 + $0x3c] sm:$0xf] %vm2392, %v2327
        %2409 = vst.msk [vmem:[#allocation2 + $0x40] sm:$0xf] %vm2392, %v2329
        %2410 = vst.msk [vmem:[#allocation2 + $0x44] sm:$0xf] %vm2392, %v2331
        %2411 = vst.msk [vmem:[#allocation2 + $0x48] sm:$0xf] %vm2392, %v2333
        %2412 = vst.msk [vmem:[#allocation2 + $0x4c] sm:$0xf] %vm2392, %v2335
        %2413 = vst.msk [vmem:[#allocation2 + $0x50] sm:$0xf] %vm2392, %v2337
        %2414 = vst.msk [vmem:[#allocation2 + $0x54] sm:$0xf] %vm2392, %v2339
        %2415 = vst.msk [vmem:[#allocation2 + $0x58] sm:$0xf] %vm2392, %v2341
        %2416 = vst.msk [vmem:[#allocation2 + $0x5c] sm:$0xf] %vm2392, %v2343
        %2417 = vst.msk [vmem:[#allocation2 + $0x60] sm:$0xf] %vm2392, %v2345
        %2418 = vst.msk [vmem:[#allocation2 + $0x64] sm:$0xf] %vm2392, %v2347
        %2419 = vst.msk [vmem:[#allocation2 + $0x68] sm:$0xf] %vm2392, %v2349
        %2420 = vst.msk [vmem:[#allocation2 + $0x6c] sm:$0xf] %vm2392, %v2351
        %2421 = vst.msk [vmem:[#allocation2 + $0x70] sm:$0xf] %vm2392, %v2353
        %2422 = vst.msk [vmem:[#allocation2 + $0x74] sm:$0xf] %vm2392, %v2355
        %2423 = vst.msk [vmem:[#allocation2 + $0x78] sm:$0xf] %vm2392, %v2357
        %2424 = vst.msk [vmem:[#allocation2 + $0x7c] sm:$0xf] %vm2392, %v2359
        %v2425 = vld [vmem:[%s2231] sm:$0xf]
        %v2426 = vld [vmem:[%s2231 + $0x4] sm:$0xf]
        %v2427 = vld [vmem:[%s2231 + $0x8] sm:$0x1]
        %v2428 = vld [vmem:[%s2231 + $0xc] sm:$0xf]
        %v2429 = vld [vmem:[%s2231 + $0x10] sm:$0xf]
        %v2430 = vld [vmem:[%s2231 + $0x14] sm:$0x1]
        %v2431 = vld [vmem:[%s2231 + $0x18] sm:$0xf]
        %v2432 = vld [vmem:[%s2231 + $0x1c] sm:$0xf]
        %v2433 = vld [vmem:[%s2231 + $0x20] sm:$0x1]
        %v2434 = vld [vmem:[%s2231 + $0x24] sm:$0xf]
        %v2435 = vld [vmem:[%s2231 + $0x28] sm:$0xf]
        %v2436 = vld [vmem:[%s2231 + $0x2c] sm:$0x1]
        %v2437 = vld [vmem:[%s2231 + $0x30] sm:$0xf]
        %v2438 = vld [vmem:[%s2231 + $0x34] sm:$0xf]
        %v2439 = vld [vmem:[%s2231 + $0x38] sm:$0x1]
        %v2440 = vld [vmem:[%s2231 + $0x3c] sm:$0xf]
        %v2441 = vld [vmem:[%s2231 + $0x40] sm:$0xf]
        %v2442 = vld [vmem:[%s2231 + $0x44] sm:$0x1]
        %v2443 = vld [vmem:[%s2231 + $0x48] sm:$0xf]
        %v2444 = vld [vmem:[%s2231 + $0x4c] sm:$0xf]
        %v2445 = vld [vmem:[%s2231 + $0x50] sm:$0x1]
        %v2446 = vld [vmem:[%s2231 + $0x54] sm:$0xf]
        %v2447 = vld [vmem:[%s2231 + $0x58] sm:$0xf]
        %v2448 = vld [vmem:[%s2231 + $0x5c] sm:$0x1]
        %v2449 = vld [vmem:[%s2231 + $0x60] sm:$0xf]
        %v2450 = vld [vmem:[%s2231 + $0x64] sm:$0xf]
        %v2451 = vld [vmem:[%s2231 + $0x68] sm:$0x1]
        %v2452 = vld [vmem:[%s2231 + $0x6c] sm:$0xf]
        %v2453 = vld [vmem:[%s2231 + $0x70] sm:$0xf]
        %v2454 = vld [vmem:[%s2231 + $0x74] sm:$0x1]
        %v2455 = vld [vmem:[%s2231 + $0x78] sm:$0xf]
        %v2456 = vld [vmem:[%s2231 + $0x7c] sm:$0xf]
        %v2457 = vld [vmem:[%s2231 + $0x80] sm:$0x1]
        %v2458 = vld [vmem:[%s2231 + $0x84] sm:$0xf]
        %v2459 = vld [vmem:[%s2231 + $0x88] sm:$0xf]
        %v2460 = vld [vmem:[%s2231 + $0x8c] sm:$0x1]
        %v2461 = vld [vmem:[%s2231 + $0x90] sm:$0xf]
        %v2462 = vld [vmem:[%s2231 + $0x94] sm:$0xf]
        %v2463 = vld [vmem:[%s2231 + $0x98] sm:$0x1]
        %v2464 = vld [vmem:[%s2231 + $0x9c] sm:$0xf]
        %v2465 = vld [vmem:[%s2231 + $0xa0] sm:$0xf]
        %v2466 = vld [vmem:[%s2231 + $0xa4] sm:$0x1]
        %v2467 = vld [vmem:[%s2231 + $0xa8] sm:$0xf]
        %v2468 = vld [vmem:[%s2231 + $0xac] sm:$0xf]
        %v2469 = vld [vmem:[%s2231 + $0xb0] sm:$0x1]
        %v2470 = vld [vmem:[%s2231 + $0xb4] sm:$0xf]
        %v2471 = vld [vmem:[%s2231 + $0xb8] sm:$0xf]
        %v2472 = vld [vmem:[%s2231 + $0xbc] sm:$0x1]
        %v2474 = vshrl.u32 %v2425, 16
        %v2476 = vrot.slane %v2474, 4
        %v2477 = vshll.u32 %v2425, 16
        %v2479 = vrot.slane %v2477, 5
        %v2480 = vor.u32 %v2476, %v2479
        %v2481 = vrot.slane %v2480, 4
        %v2483 = vshll.u32 %v2426, 16
        %v2485 = vrot.slane %v2483, 5
        %v2486 = vsel %vm285, %v2481, %v2485
        %v2487 = vshrl.u32 %v2426, 16
        %v2489 = vrot.slane %v2487, 4
        %v2490 = vor.u32 %v2489, %v2485
        %v2491 = vrot.slane %v2490, 4
        %v2493 = vshll.u32 %v2427, 16
        %v2495 = vrot.slane %v2493, 5
        %v2496 = vsel %vm285, %v2491, %v2495
        %v2498 = vshrl.u32 %v2428, 16
        %v2500 = vrot.slane %v2498, 4
        %v2501 = vshll.u32 %v2428, 16
        %v2503 = vrot.slane %v2501, 5
        %v2504 = vor.u32 %v2500, %v2503
        %v2505 = vrot.slane %v2504, 4
        %v2507 = vshll.u32 %v2429, 16
        %v2509 = vrot.slane %v2507, 5
        %v2510 = vsel %vm285, %v2505, %v2509
        %v2511 = vshrl.u32 %v2429, 16
        %v2513 = vrot.slane %v2511, 4
        %v2514 = vor.u32 %v2513, %v2509
        %v2515 = vrot.slane %v2514, 4
        %v2517 = vshll.u32 %v2430, 16
        %v2519 = vrot.slane %v2517, 5
        %v2520 = vsel %vm285, %v2515, %v2519
        %v2522 = vshrl.u32 %v2431, 16
        %v2524 = vrot.slane %v2522, 4
        %v2525 = vshll.u32 %v2431, 16
        %v2527 = vrot.slane %v2525, 5
        %v2528 = vor.u32 %v2524, %v2527
        %v2529 = vrot.slane %v2528, 4
        %v2531 = vshll.u32 %v2432, 16
        %v2533 = vrot.slane %v2531, 5
        %v2534 = vsel %vm285, %v2529, %v2533
        %v2535 = vshrl.u32 %v2432, 16
        %v2537 = vrot.slane %v2535, 4
        %v2538 = vor.u32 %v2537, %v2533
        %v2539 = vrot.slane %v2538, 4
        %v2541 = vshll.u32 %v2433, 16
        %v2543 = vrot.slane %v2541, 5
        %v2544 = vsel %vm285, %v2539, %v2543
        %v2546 = vshrl.u32 %v2434, 16
        %v2548 = vrot.slane %v2546, 4
        %v2549 = vshll.u32 %v2434, 16
        %v2551 = vrot.slane %v2549, 5
        %v2552 = vor.u32 %v2548, %v2551
        %v2553 = vrot.slane %v2552, 4
        %v2555 = vshll.u32 %v2435, 16
        %v2557 = vrot.slane %v2555, 5
        %v2558 = vsel %vm285, %v2553, %v2557
        %v2559 = vshrl.u32 %v2435, 16
        %v2561 = vrot.slane %v2559, 4
        %v2562 = vor.u32 %v2561, %v2557
        %v2563 = vrot.slane %v2562, 4
        %v2565 = vshll.u32 %v2436, 16
        %v2567 = vrot.slane %v2565, 5
        %v2568 = vsel %vm285, %v2563, %v2567
        %v2570 = vshrl.u32 %v2437, 16
        %v2572 = vrot.slane %v2570, 4
        %v2573 = vshll.u32 %v2437, 16
        %v2575 = vrot.slane %v2573, 5
        %v2576 = vor.u32 %v2572, %v2575
        %v2577 = vrot.slane %v2576, 4
        %v2579 = vshll.u32 %v2438, 16
        %v2581 = vrot.slane %v2579, 5
        %v2582 = vsel %vm285, %v2577, %v2581
        %v2583 = vshrl.u32 %v2438, 16
        %v2585 = vrot.slane %v2583, 4
        %v2586 = vor.u32 %v2585, %v2581
        %v2587 = vrot.slane %v2586, 4
        %v2589 = vshll.u32 %v2439, 16
        %v2591 = vrot.slane %v2589, 5
        %v2592 = vsel %vm285, %v2587, %v2591
        %v2594 = vshrl.u32 %v2440, 16
        %v2596 = vrot.slane %v2594, 4
        %v2597 = vshll.u32 %v2440, 16
        %v2599 = vrot.slane %v2597, 5
        %v2600 = vor.u32 %v2596, %v2599
        %v2601 = vrot.slane %v2600, 4
        %v2603 = vshll.u32 %v2441, 16
        %v2605 = vrot.slane %v2603, 5
        %v2606 = vsel %vm285, %v2601, %v2605
        %v2607 = vshrl.u32 %v2441, 16
        %v2609 = vrot.slane %v2607, 4
        %v2610 = vor.u32 %v2609, %v2605
        %v2611 = vrot.slane %v2610, 4
        %v2613 = vshll.u32 %v2442, 16
        %v2615 = vrot.slane %v2613, 5
        %v2616 = vsel %vm285, %v2611, %v2615
        %v2618 = vshrl.u32 %v2443, 16
        %v2620 = vrot.slane %v2618, 4
        %v2621 = vshll.u32 %v2443, 16
        %v2623 = vrot.slane %v2621, 5
        %v2624 = vor.u32 %v2620, %v2623
        %v2625 = vrot.slane %v2624, 4
        %v2627 = vshll.u32 %v2444, 16
        %v2629 = vrot.slane %v2627, 5
        %v2630 = vsel %vm285, %v2625, %v2629
        %v2631 = vshrl.u32 %v2444, 16
        %v2633 = vrot.slane %v2631, 4
        %v2634 = vor.u32 %v2633, %v2629
        %v2635 = vrot.slane %v2634, 4
        %v2637 = vshll.u32 %v2445, 16
        %v2639 = vrot.slane %v2637, 5
        %v2640 = vsel %vm285, %v2635, %v2639
        %v2642 = vshrl.u32 %v2446, 16
        %v2644 = vrot.slane %v2642, 4
        %v2645 = vshll.u32 %v2446, 16
        %v2647 = vrot.slane %v2645, 5
        %v2648 = vor.u32 %v2644, %v2647
        %v2649 = vrot.slane %v2648, 4
        %v2651 = vshll.u32 %v2447, 16
        %v2653 = vrot.slane %v2651, 5
        %v2654 = vsel %vm285, %v2649, %v2653
        %v2655 = vshrl.u32 %v2447, 16
        %v2657 = vrot.slane %v2655, 4
        %v2658 = vor.u32 %v2657, %v2653
        %v2659 = vrot.slane %v2658, 4
        %v2661 = vshll.u32 %v2448, 16
        %v2663 = vrot.slane %v2661, 5
        %v2664 = vsel %vm285, %v2659, %v2663
        %v2666 = vshrl.u32 %v2449, 16
        %v2668 = vrot.slane %v2666, 4
        %v2669 = vshll.u32 %v2449, 16
        %v2671 = vrot.slane %v2669, 5
        %v2672 = vor.u32 %v2668, %v2671
        %v2673 = vrot.slane %v2672, 4
        %v2675 = vshll.u32 %v2450, 16
        %v2677 = vrot.slane %v2675, 5
        %v2678 = vsel %vm285, %v2673, %v2677
        %v2679 = vshrl.u32 %v2450, 16
        %v2681 = vrot.slane %v2679, 4
        %v2682 = vor.u32 %v2681, %v2677
        %v2683 = vrot.slane %v2682, 4
        %v2685 = vshll.u32 %v2451, 16
        %v2687 = vrot.slane %v2685, 5
        %v2688 = vsel %vm285, %v2683, %v2687
        %v2690 = vshrl.u32 %v2452, 16
        %v2692 = vrot.slane %v2690, 4
        %v2693 = vshll.u32 %v2452, 16
        %v2695 = vrot.slane %v2693, 5
        %v2696 = vor.u32 %v2692, %v2695
        %v2697 = vrot.slane %v2696, 4
        %v2699 = vshll.u32 %v2453, 16
        %v2701 = vrot.slane %v2699, 5
        %v2702 = vsel %vm285, %v2697, %v2701
        %v2703 = vshrl.u32 %v2453, 16
        %v2705 = vrot.slane %v2703, 4
        %v2706 = vor.u32 %v2705, %v2701
        %v2707 = vrot.slane %v2706, 4
        %v2709 = vshll.u32 %v2454, 16
        %v2711 = vrot.slane %v2709, 5
        %v2712 = vsel %vm285, %v2707, %v2711
        %v2714 = vshrl.u32 %v2455, 16
        %v2716 = vrot.slane %v2714, 4
        %v2717 = vshll.u32 %v2455, 16
        %v2719 = vrot.slane %v2717, 5
        %v2720 = vor.u32 %v2716, %v2719
        %v2721 = vrot.slane %v2720, 4
        %v2723 = vshll.u32 %v2456, 16
        %v2725 = vrot.slane %v2723, 5
        %v2726 = vsel %vm285, %v2721, %v2725
        %v2727 = vshrl.u32 %v2456, 16
        %v2729 = vrot.slane %v2727, 4
        %v2730 = vor.u32 %v2729, %v2725
        %v2731 = vrot.slane %v2730, 4
        %v2733 = vshll.u32 %v2457, 16
        %v2735 = vrot.slane %v2733, 5
        %v2736 = vsel %vm285, %v2731, %v2735
        %v2738 = vshrl.u32 %v2458, 16
        %v2740 = vrot.slane %v2738, 4
        %v2741 = vshll.u32 %v2458, 16
        %v2743 = vrot.slane %v2741, 5
        %v2744 = vor.u32 %v2740, %v2743
        %v2745 = vrot.slane %v2744, 4
        %v2747 = vshll.u32 %v2459, 16
        %v2749 = vrot.slane %v2747, 5
        %v2750 = vsel %vm285, %v2745, %v2749
        %v2751 = vshrl.u32 %v2459, 16
        %v2753 = vrot.slane %v2751, 4
        %v2754 = vor.u32 %v2753, %v2749
        %v2755 = vrot.slane %v2754, 4
        %v2757 = vshll.u32 %v2460, 16
        %v2759 = vrot.slane %v2757, 5
        %v2760 = vsel %vm285, %v2755, %v2759
        %v2762 = vshrl.u32 %v2461, 16
        %v2764 = vrot.slane %v2762, 4
        %v2765 = vshll.u32 %v2461, 16
        %v2767 = vrot.slane %v2765, 5
        %v2768 = vor.u32 %v2764, %v2767
        %v2769 = vrot.slane %v2768, 4
        %v2771 = vshll.u32 %v2462, 16
        %v2773 = vrot.slane %v2771, 5
        %v2774 = vsel %vm285, %v2769, %v2773
        %v2775 = vshrl.u32 %v2462, 16
        %v2777 = vrot.slane %v2775, 4
        %v2778 = vor.u32 %v2777, %v2773
        %v2779 = vrot.slane %v2778, 4
        %v2781 = vshll.u32 %v2463, 16
        %v2783 = vrot.slane %v2781, 5
        %v2784 = vsel %vm285, %v2779, %v2783
        %v2786 = vshrl.u32 %v2464, 16
        %v2788 = vrot.slane %v2786, 4
        %v2789 = vshll.u32 %v2464, 16
        %v2791 = vrot.slane %v2789, 5
        %v2792 = vor.u32 %v2788, %v2791
        %v2793 = vrot.slane %v2792, 4
        %v2795 = vshll.u32 %v2465, 16
        %v2797 = vrot.slane %v2795, 5
        %v2798 = vsel %vm285, %v2793, %v2797
        %v2799 = vshrl.u32 %v2465, 16
        %v2801 = vrot.slane %v2799, 4
        %v2802 = vor.u32 %v2801, %v2797
        %v2803 = vrot.slane %v2802, 4
        %v2805 = vshll.u32 %v2466, 16
        %v2807 = vrot.slane %v2805, 5
        %v2808 = vsel %vm285, %v2803, %v2807
        %v2810 = vshrl.u32 %v2467, 16
        %v2812 = vrot.slane %v2810, 4
        %v2813 = vshll.u32 %v2467, 16
        %v2815 = vrot.slane %v2813, 5
        %v2816 = vor.u32 %v2812, %v2815
        %v2817 = vrot.slane %v2816, 4
        %v2819 = vshll.u32 %v2468, 16
        %v2821 = vrot.slane %v2819, 5
        %v2822 = vsel %vm285, %v2817, %v2821
        %v2823 = vshrl.u32 %v2468, 16
        %v2825 = vrot.slane %v2823, 4
        %v2826 = vor.u32 %v2825, %v2821
        %v2827 = vrot.slane %v2826, 4
        %v2829 = vshll.u32 %v2469, 16
        %v2831 = vrot.slane %v2829, 5
        %v2832 = vsel %vm285, %v2827, %v2831
        %v2834 = vshrl.u32 %v2470, 16
        %v2836 = vrot.slane %v2834, 4
        %v2837 = vshll.u32 %v2470, 16
        %v2839 = vrot.slane %v2837, 5
        %v2840 = vor.u32 %v2836, %v2839
        %v2841 = vrot.slane %v2840, 4
        %v2843 = vshll.u32 %v2471, 16
        %v2845 = vrot.slane %v2843, 5
        %v2846 = vsel %vm285, %v2841, %v2845
        %v2847 = vshrl.u32 %v2471, 16
        %v2849 = vrot.slane %v2847, 4
        %v2850 = vor.u32 %v2849, %v2845
        %v2851 = vrot.slane %v2850, 4
        %v2853 = vshll.u32 %v2472, 16
        %v2855 = vrot.slane %v2853, 5
        %v2856 = vsel %vm285, %v2851, %v2855
        %2857 = vrot.lane.b32.xlu0 %v2486, 56
        %v2858 = vpop.permute.xlu0 %2857
        %2859 = vrot.lane.b32.xlu0 %v2496, 56
        %v2860 = vpop.permute.xlu0 %2859
        %2861 = vrot.lane.b32.xlu0 %v2510, 56
        %v2862 = vpop.permute.xlu0 %2861
        %2863 = vrot.lane.b32.xlu0 %v2520, 56
        %v2864 = vpop.permute.xlu0 %2863
        %2865 = vrot.lane.b32.xlu0 %v2534, 56
        %v2866 = vpop.permute.xlu0 %2865
        %2867 = vrot.lane.b32.xlu0 %v2544, 56
        %v2868 = vpop.permute.xlu0 %2867
        %2869 = vrot.lane.b32.xlu0 %v2558, 56
        %v2870 = vpop.permute.xlu0 %2869
        %2871 = vrot.lane.b32.xlu0 %v2568, 56
        %v2872 = vpop.permute.xlu0 %2871
        %2873 = vrot.lane.b32.xlu0 %v2582, 56
        %v2874 = vpop.permute.xlu0 %2873
        %2875 = vrot.lane.b32.xlu0 %v2592, 56
        %v2876 = vpop.permute.xlu0 %2875
        %2877 = vrot.lane.b32.xlu0 %v2606, 56
        %v2878 = vpop.permute.xlu0 %2877
        %2879 = vrot.lane.b32.xlu0 %v2616, 56
        %v2880 = vpop.permute.xlu0 %2879
        %2881 = vrot.lane.b32.xlu0 %v2630, 56
        %v2882 = vpop.permute.xlu0 %2881
        %2883 = vrot.lane.b32.xlu0 %v2640, 56
        %v2884 = vpop.permute.xlu0 %2883
        %2885 = vrot.lane.b32.xlu0 %v2654, 56
        %v2886 = vpop.permute.xlu0 %2885
        %2887 = vrot.lane.b32.xlu0 %v2664, 56
        %v2888 = vpop.permute.xlu0 %2887
        %2889 = vrot.lane.b32.xlu0 %v2678, 56
        %v2890 = vpop.permute.xlu0 %2889
        %2891 = vrot.lane.b32.xlu0 %v2688, 56
        %v2892 = vpop.permute.xlu0 %2891
        %2893 = vrot.lane.b32.xlu0 %v2702, 56
        %v2894 = vpop.permute.xlu0 %2893
        %2895 = vrot.lane.b32.xlu0 %v2712, 56
        %v2896 = vpop.permute.xlu0 %2895
        %2897 = vrot.lane.b32.xlu0 %v2726, 56
        %v2898 = vpop.permute.xlu0 %2897
        %2899 = vrot.lane.b32.xlu0 %v2736, 56
        %v2900 = vpop.permute.xlu0 %2899
        %2901 = vrot.lane.b32.xlu0 %v2750, 56
        %v2902 = vpop.permute.xlu0 %2901
        %2903 = vrot.lane.b32.xlu0 %v2760, 56
        %v2904 = vpop.permute.xlu0 %2903
        %2905 = vrot.lane.b32.xlu0 %v2774, 56
        %v2906 = vpop.permute.xlu0 %2905
        %2907 = vrot.lane.b32.xlu0 %v2784, 56
        %v2908 = vpop.permute.xlu0 %2907
        %2909 = vrot.lane.b32.xlu0 %v2798, 56
        %v2910 = vpop.permute.xlu0 %2909
        %2911 = vrot.lane.b32.xlu0 %v2808, 56
        %v2912 = vpop.permute.xlu0 %2911
        %2913 = vrot.lane.b32.xlu0 %v2822, 56
        %v2914 = vpop.permute.xlu0 %2913
        %2915 = vrot.lane.b32.xlu0 %v2832, 56
        %v2916 = vpop.permute.xlu0 %2915
        %2917 = vrot.lane.b32.xlu0 %v2846, 56
        %v2918 = vpop.permute.xlu0 %2917
        %2919 = vrot.lane.b32.xlu0 %v2856, 56
        %v2920 = vpop.permute.xlu0 %2919
        %vm2953 = vcmask 519616
        %2954 = vst.msk [vmem:[#allocation2] sm:$0xf] %vm2953, %v2858
        %2955 = vst.msk [vmem:[#allocation2 + $0x4] sm:$0xf] %vm2953, %v2860
        %2956 = vst.msk [vmem:[#allocation2 + $0x8] sm:$0xf] %vm2953, %v2862
        %2957 = vst.msk [vmem:[#allocation2 + $0xc] sm:$0xf] %vm2953, %v2864
        %2958 = vst.msk [vmem:[#allocation2 + $0x10] sm:$0xf] %vm2953, %v2866
        %2959 = vst.msk [vmem:[#allocation2 + $0x14] sm:$0xf] %vm2953, %v2868
        %2960 = vst.msk [vmem:[#allocation2 + $0x18] sm:$0xf] %vm2953, %v2870
        %2961 = vst.msk [vmem:[#allocation2 + $0x1c] sm:$0xf] %vm2953, %v2872
        %2962 = vst.msk [vmem:[#allocation2 + $0x20] sm:$0xf] %vm2953, %v2874
        %2963 = vst.msk [vmem:[#allocation2 + $0x24] sm:$0xf] %vm2953, %v2876
        %2964 = vst.msk [vmem:[#allocation2 + $0x28] sm:$0xf] %vm2953, %v2878
        %2965 = vst.msk [vmem:[#allocation2 + $0x2c] sm:$0xf] %vm2953, %v2880
        %2966 = vst.msk [vmem:[#allocation2 + $0x30] sm:$0xf] %vm2953, %v2882
        %2967 = vst.msk [vmem:[#allocation2 + $0x34] sm:$0xf] %vm2953, %v2884
        %2968 = vst.msk [vmem:[#allocation2 + $0x38] sm:$0xf] %vm2953, %v2886
        %2969 = vst.msk [vmem:[#allocation2 + $0x3c] sm:$0xf] %vm2953, %v2888
        %2970 = vst.msk [vmem:[#allocation2 + $0x40] sm:$0xf] %vm2953, %v2890
        %2971 = vst.msk [vmem:[#allocation2 + $0x44] sm:$0xf] %vm2953, %v2892
        %2972 = vst.msk [vmem:[#allocation2 + $0x48] sm:$0xf] %vm2953, %v2894
        %2973 = vst.msk [vmem:[#allocation2 + $0x4c] sm:$0xf] %vm2953, %v2896
        %2974 = vst.msk [vmem:[#allocation2 + $0x50] sm:$0xf] %vm2953, %v2898
        %2975 = vst.msk [vmem:[#allocation2 + $0x54] sm:$0xf] %vm2953, %v2900
        %2976 = vst.msk [vmem:[#allocation2 + $0x58] sm:$0xf] %vm2953, %v2902
        %2977 = vst.msk [vmem:[#allocation2 + $0x5c] sm:$0xf] %vm2953, %v2904
        %2978 = vst.msk [vmem:[#allocation2 + $0x60] sm:$0xf] %vm2953, %v2906
        %2979 = vst.msk [vmem:[#allocation2 + $0x64] sm:$0xf] %vm2953, %v2908
        %2980 = vst.msk [vmem:[#allocation2 + $0x68] sm:$0xf] %vm2953, %v2910
        %2981 = vst.msk [vmem:[#allocation2 + $0x6c] sm:$0xf] %vm2953, %v2912
        %2982 = vst.msk [vmem:[#allocation2 + $0x70] sm:$0xf] %vm2953, %v2914
        %2983 = vst.msk [vmem:[#allocation2 + $0x74] sm:$0xf] %vm2953, %v2916
        %2984 = vst.msk [vmem:[#allocation2 + $0x78] sm:$0xf] %vm2953, %v2918
        %2985 = vst.msk [vmem:[#allocation2 + $0x7c] sm:$0xf] %vm2953, %v2920
        %v2986 = vld [vmem:[%s2231] sm:$0xe]
        %v2987 = vld [vmem:[%s2231 + $0x4] sm:$0xf]
        %v2988 = vld [vmem:[%s2231 + $0x8] sm:$0x1]
        %v2989 = vld [vmem:[%s2231 + $0xc] sm:$0xe]
        %v2990 = vld [vmem:[%s2231 + $0x10] sm:$0xf]
        %v2991 = vld [vmem:[%s2231 + $0x14] sm:$0x1]
        %v2992 = vld [vmem:[%s2231 + $0x18] sm:$0xe]
        %v2993 = vld [vmem:[%s2231 + $0x1c] sm:$0xf]
        %v2994 = vld [vmem:[%s2231 + $0x20] sm:$0x1]
        %v2995 = vld [vmem:[%s2231 + $0x24] sm:$0xe]
        %v2996 = vld [vmem:[%s2231 + $0x28] sm:$0xf]
        %v2997 = vld [vmem:[%s2231 + $0x2c] sm:$0x1]
        %v2998 = vld [vmem:[%s2231 + $0x30] sm:$0xe]
        %v2999 = vld [vmem:[%s2231 + $0x34] sm:$0xf]
        %v3000 = vld [vmem:[%s2231 + $0x38] sm:$0x1]
        %v3001 = vld [vmem:[%s2231 + $0x3c] sm:$0xe]
        %v3002 = vld [vmem:[%s2231 + $0x40] sm:$0xf]
        %v3003 = vld [vmem:[%s2231 + $0x44] sm:$0x1]
        %v3004 = vld [vmem:[%s2231 + $0x48] sm:$0xe]
        %v3005 = vld [vmem:[%s2231 + $0x4c] sm:$0xf]
        %v3006 = vld [vmem:[%s2231 + $0x50] sm:$0x1]
        %v3007 = vld [vmem:[%s2231 + $0x54] sm:$0xe]
        %v3008 = vld [vmem:[%s2231 + $0x58] sm:$0xf]
        %v3009 = vld [vmem:[%s2231 + $0x5c] sm:$0x1]
        %v3010 = vld [vmem:[%s2231 + $0x60] sm:$0xe]
        %v3011 = vld [vmem:[%s2231 + $0x64] sm:$0xf]
        %v3012 = vld [vmem:[%s2231 + $0x68] sm:$0x1]
        %v3013 = vld [vmem:[%s2231 + $0x6c] sm:$0xe]
        %v3014 = vld [vmem:[%s2231 + $0x70] sm:$0xf]
        %v3015 = vld [vmem:[%s2231 + $0x74] sm:$0x1]
        %v3016 = vld [vmem:[%s2231 + $0x78] sm:$0xe]
        %v3017 = vld [vmem:[%s2231 + $0x7c] sm:$0xf]
        %v3018 = vld [vmem:[%s2231 + $0x80] sm:$0x1]
        %v3019 = vld [vmem:[%s2231 + $0x84] sm:$0xe]
        %v3020 = vld [vmem:[%s2231 + $0x88] sm:$0xf]
        %v3021 = vld [vmem:[%s2231 + $0x8c] sm:$0x1]
        %v3022 = vld [vmem:[%s2231 + $0x90] sm:$0xe]
        %v3023 = vld [vmem:[%s2231 + $0x94] sm:$0xf]
        %v3024 = vld [vmem:[%s2231 + $0x98] sm:$0x1]
        %v3025 = vld [vmem:[%s2231 + $0x9c] sm:$0xe]
        %v3026 = vld [vmem:[%s2231 + $0xa0] sm:$0xf]
        %v3027 = vld [vmem:[%s2231 + $0xa4] sm:$0x1]
        %v3028 = vld [vmem:[%s2231 + $0xa8] sm:$0xe]
        %v3029 = vld [vmem:[%s2231 + $0xac] sm:$0xf]
        %v3030 = vld [vmem:[%s2231 + $0xb0] sm:$0x1]
        %v3031 = vld [vmem:[%s2231 + $0xb4] sm:$0xe]
        %v3032 = vld [vmem:[%s2231 + $0xb8] sm:$0xf]
        %v3033 = vld [vmem:[%s2231 + $0xbc] sm:$0x1]
        %v3082 = vrot.slane %v2986, 5
        %v3083 = vrot.slane %v3082, 4
        %v3084 = vrot.slane %v2987, 5
        %v3085 = vsel %vm897, %v3083, %v3084
        %v3086 = vrot.slane %v3084, 4
        %v3087 = vrot.slane %v2988, 5
        %v3088 = vsel %vm897, %v3086, %v3087
        %v3089 = vrot.slane %v2989, 5
        %v3090 = vrot.slane %v3089, 4
        %v3091 = vrot.slane %v2990, 5
        %v3092 = vsel %vm897, %v3090, %v3091
        %v3093 = vrot.slane %v3091, 4
        %v3094 = vrot.slane %v2991, 5
        %v3095 = vsel %vm897, %v3093, %v3094
        %v3096 = vrot.slane %v2992, 5
        %v3097 = vrot.slane %v3096, 4
        %v3098 = vrot.slane %v2993, 5
        %v3099 = vsel %vm897, %v3097, %v3098
        %v3100 = vrot.slane %v3098, 4
        %v3101 = vrot.slane %v2994, 5
        %v3102 = vsel %vm897, %v3100, %v3101
        %v3103 = vrot.slane %v2995, 5
        %v3104 = vrot.slane %v3103, 4
        %v3105 = vrot.slane %v2996, 5
        %v3106 = vsel %vm897, %v3104, %v3105
        %v3107 = vrot.slane %v3105, 4
        %v3108 = vrot.slane %v2997, 5
        %v3109 = vsel %vm897, %v3107, %v3108
        %v3110 = vrot.slane %v2998, 5
        %v3111 = vrot.slane %v3110, 4
        %v3112 = vrot.slane %v2999, 5
        %v3113 = vsel %vm897, %v3111, %v3112
        %v3114 = vrot.slane %v3112, 4
        %v3115 = vrot.slane %v3000, 5
        %v3116 = vsel %vm897, %v3114, %v3115
        %v3117 = vrot.slane %v3001, 5
        %v3118 = vrot.slane %v3117, 4
        %v3119 = vrot.slane %v3002, 5
        %v3120 = vsel %vm897, %v3118, %v3119
        %v3121 = vrot.slane %v3119, 4
        %v3122 = vrot.slane %v3003, 5
        %v3123 = vsel %vm897, %v3121, %v3122
        %v3124 = vrot.slane %v3004, 5
        %v3125 = vrot.slane %v3124, 4
        %v3126 = vrot.slane %v3005, 5
        %v3127 = vsel %vm897, %v3125, %v3126
        %v3128 = vrot.slane %v3126, 4
        %v3129 = vrot.slane %v3006, 5
        %v3130 = vsel %vm897, %v3128, %v3129
        %v3131 = vrot.slane %v3007, 5
        %v3132 = vrot.slane %v3131, 4
        %v3133 = vrot.slane %v3008, 5
        %v3134 = vsel %vm897, %v3132, %v3133
        %v3135 = vrot.slane %v3133, 4
        %v3136 = vrot.slane %v3009, 5
        %v3137 = vsel %vm897, %v3135, %v3136
        %v3138 = vrot.slane %v3010, 5
        %v3139 = vrot.slane %v3138, 4
        %v3140 = vrot.slane %v3011, 5
        %v3141 = vsel %vm897, %v3139, %v3140
        %v3142 = vrot.slane %v3140, 4
        %v3143 = vrot.slane %v3012, 5
        %v3144 = vsel %vm897, %v3142, %v3143
        %v3145 = vrot.slane %v3013, 5
        %v3146 = vrot.slane %v3145, 4
        %v3147 = vrot.slane %v3014, 5
        %v3148 = vsel %vm897, %v3146, %v3147
        %v3149 = vrot.slane %v3147, 4
        %v3150 = vrot.slane %v3015, 5
        %v3151 = vsel %vm897, %v3149, %v3150
        %v3152 = vrot.slane %v3016, 5
        %v3153 = vrot.slane %v3152, 4
        %v3154 = vrot.slane %v3017, 5
        %v3155 = vsel %vm897, %v3153, %v3154
        %v3156 = vrot.slane %v3154, 4
        %v3157 = vrot.slane %v3018, 5
        %v3158 = vsel %vm897, %v3156, %v3157
        %v3159 = vrot.slane %v3019, 5
        %v3160 = vrot.slane %v3159, 4
        %v3161 = vrot.slane %v3020, 5
        %v3162 = vsel %vm897, %v3160, %v3161
        %v3163 = vrot.slane %v3161, 4
        %v3164 = vrot.slane %v3021, 5
        %v3165 = vsel %vm897, %v3163, %v3164
        %v3166 = vrot.slane %v3022, 5
        %v3167 = vrot.slane %v3166, 4
        %v3168 = vrot.slane %v3023, 5
        %v3169 = vsel %vm897, %v3167, %v3168
        %v3170 = vrot.slane %v3168, 4
        %v3171 = vrot.slane %v3024, 5
        %v3172 = vsel %vm897, %v3170, %v3171
        %v3173 = vrot.slane %v3025, 5
        %v3174 = vrot.slane %v3173, 4
        %v3175 = vrot.slane %v3026, 5
        %v3176 = vsel %vm897, %v3174, %v3175
        %v3177 = vrot.slane %v3175, 4
        %v3178 = vrot.slane %v3027, 5
        %v3179 = vsel %vm897, %v3177, %v3178
        %v3180 = vrot.slane %v3028, 5
        %v3181 = vrot.slane %v3180, 4
        %v3182 = vrot.slane %v3029, 5
        %v3183 = vsel %vm897, %v3181, %v3182
        %v3184 = vrot.slane %v3182, 4
        %v3185 = vrot.slane %v3030, 5
        %v3186 = vsel %vm897, %v3184, %v3185
        %v3187 = vrot.slane %v3031, 5
        %v3188 = vrot.slane %v3187, 4
        %v3189 = vrot.slane %v3032, 5
        %v3190 = vsel %vm897, %v3188, %v3189
        %v3191 = vrot.slane %v3189, 4
        %v3192 = vrot.slane %v3033, 5
        %v3193 = vsel %vm897, %v3191, %v3192
        %3194 = vrot.lane.b32.xlu0 %v3085, 64
        %v3195 = vpop.permute.xlu0 %3194
        %3196 = vrot.lane.b32.xlu0 %v3088, 64
        %v3197 = vpop.permute.xlu0 %3196
        %3198 = vrot.lane.b32.xlu0 %v3092, 64
        %v3199 = vpop.permute.xlu0 %3198
        %3200 = vrot.lane.b32.xlu0 %v3095, 64
        %v3201 = vpop.permute.xlu0 %3200
        %3202 = vrot.lane.b32.xlu0 %v3099, 64
        %v3203 = vpop.permute.xlu0 %3202
        %3204 = vrot.lane.b32.xlu0 %v3102, 64
        %v3205 = vpop.permute.xlu0 %3204
        %3206 = vrot.lane.b32.xlu0 %v3106, 64
        %v3207 = vpop.permute.xlu0 %3206
        %3208 = vrot.lane.b32.xlu0 %v3109, 64
        %v3209 = vpop.permute.xlu0 %3208
        %3210 = vrot.lane.b32.xlu0 %v3113, 64
        %v3211 = vpop.permute.xlu0 %3210
        %3212 = vrot.lane.b32.xlu0 %v3116, 64
        %v3213 = vpop.permute.xlu0 %3212
        %3214 = vrot.lane.b32.xlu0 %v3120, 64
        %v3215 = vpop.permute.xlu0 %3214
        %3216 = vrot.lane.b32.xlu0 %v3123, 64
        %v3217 = vpop.permute.xlu0 %3216
        %3218 = vrot.lane.b32.xlu0 %v3127, 64
        %v3219 = vpop.permute.xlu0 %3218
        %3220 = vrot.lane.b32.xlu0 %v3130, 64
        %v3221 = vpop.permute.xlu0 %3220
        %3222 = vrot.lane.b32.xlu0 %v3134, 64
        %v3223 = vpop.permute.xlu0 %3222
        %3224 = vrot.lane.b32.xlu0 %v3137, 64
        %v3225 = vpop.permute.xlu0 %3224
        %3226 = vrot.lane.b32.xlu0 %v3141, 64
        %v3227 = vpop.permute.xlu0 %3226
        %3228 = vrot.lane.b32.xlu0 %v3144, 64
        %v3229 = vpop.permute.xlu0 %3228
        %3230 = vrot.lane.b32.xlu0 %v3148, 64
        %v3231 = vpop.permute.xlu0 %3230
        %3232 = vrot.lane.b32.xlu0 %v3151, 64
        %v3233 = vpop.permute.xlu0 %3232
        %3234 = vrot.lane.b32.xlu0 %v3155, 64
        %v3235 = vpop.permute.xlu0 %3234
        %3236 = vrot.lane.b32.xlu0 %v3158, 64
        %v3237 = vpop.permute.xlu0 %3236
        %3238 = vrot.lane.b32.xlu0 %v3162, 64
        %v3239 = vpop.permute.xlu0 %3238
        %3240 = vrot.lane.b32.xlu0 %v3165, 64
        %v3241 = vpop.permute.xlu0 %3240
        %3242 = vrot.lane.b32.xlu0 %v3169, 64
        %v3243 = vpop.permute.xlu0 %3242
        %3244 = vrot.lane.b32.xlu0 %v3172, 64
        %v3245 = vpop.permute.xlu0 %3244
        %3246 = vrot.lane.b32.xlu0 %v3176, 64
        %v3247 = vpop.permute.xlu0 %3246
        %3248 = vrot.lane.b32.xlu0 %v3179, 64
        %v3249 = vpop.permute.xlu0 %3248
        %3250 = vrot.lane.b32.xlu0 %v3183, 64
        %v3251 = vpop.permute.xlu0 %3250
        %3252 = vrot.lane.b32.xlu0 %v3186, 64
        %v3253 = vpop.permute.xlu0 %3252
        %3254 = vrot.lane.b32.xlu0 %v3190, 64
        %v3255 = vpop.permute.xlu0 %3254
        %3256 = vrot.lane.b32.xlu0 %v3193, 64
        %v3257 = vpop.permute.xlu0 %3256
        %vm3290 = vcmask 585216
        %3291 = vst.msk [vmem:[#allocation2] sm:$0xf] %vm3290, %v3195
        %3292 = vst.msk [vmem:[#allocation2 + $0x4] sm:$0xf] %vm3290, %v3197
        %3293 = vst.msk [vmem:[#allocation2 + $0x8] sm:$0xf] %vm3290, %v3199
        %3294 = vst.msk [vmem:[#allocation2 + $0xc] sm:$0xf] %vm3290, %v3201
        %3295 = vst.msk [vmem:[#allocation2 + $0x10] sm:$0xf] %vm3290, %v3203
        %3296 = vst.msk [vmem:[#allocation2 + $0x14] sm:$0xf] %vm3290, %v3205
        %3297 = vst.msk [vmem:[#allocation2 + $0x18] sm:$0xf] %vm3290, %v3207
        %3298 = vst.msk [vmem:[#allocation2 + $0x1c] sm:$0xf] %vm3290, %v3209
        %3299 = vst.msk [vmem:[#allocation2 + $0x20] sm:$0xf] %vm3290, %v3211
        %3300 = vst.msk [vmem:[#allocation2 + $0x24] sm:$0xf] %vm3290, %v3213
        %3301 = vst.msk [vmem:[#allocation2 + $0x28] sm:$0xf] %vm3290, %v3215
        %3302 = vst.msk [vmem:[#allocation2 + $0x2c] sm:$0xf] %vm3290, %v3217
        %3303 = vst.msk [vmem:[#allocation2 + $0x30] sm:$0xf] %vm3290, %v3219
        %3304 = vst.msk [vmem:[#allocation2 + $0x34] sm:$0xf] %vm3290, %v3221
        %3305 = vst.msk [vmem:[#allocation2 + $0x38] sm:$0xf] %vm3290, %v3223
        %3306 = vst.msk [vmem:[#allocation2 + $0x3c] sm:$0xf] %vm3290, %v3225
        %3307 = vst.msk [vmem:[#allocation2 + $0x40] sm:$0xf] %vm3290, %v3227
        %3308 = vst.msk [vmem:[#allocation2 + $0x44] sm:$0xf] %vm3290, %v3229
        %3309 = vst.msk [vmem:[#allocation2 + $0x48] sm:$0xf] %vm3290, %v3231
        %3310 = vst.msk [vmem:[#allocation2 + $0x4c] sm:$0xf] %vm3290, %v3233
        %3311 = vst.msk [vmem:[#allocation2 + $0x50] sm:$0xf] %vm3290, %v3235
        %3312 = vst.msk [vmem:[#allocation2 + $0x54] sm:$0xf] %vm3290, %v3237
        %3313 = vst.msk [vmem:[#allocation2 + $0x58] sm:$0xf] %vm3290, %v3239
        %3314 = vst.msk [vmem:[#allocation2 + $0x5c] sm:$0xf] %vm3290, %v3241
        %3315 = vst.msk [vmem:[#allocation2 + $0x60] sm:$0xf] %vm3290, %v3243
        %3316 = vst.msk [vmem:[#allocation2 + $0x64] sm:$0xf] %vm3290, %v3245
        %3317 = vst.msk [vmem:[#allocation2 + $0x68] sm:$0xf] %vm3290, %v3247
        %3318 = vst.msk [vmem:[#allocation2 + $0x6c] sm:$0xf] %vm3290, %v3249
        %3319 = vst.msk [vmem:[#allocation2 + $0x70] sm:$0xf] %vm3290, %v3251
        %3320 = vst.msk [vmem:[#allocation2 + $0x74] sm:$0xf] %vm3290, %v3253
        %3321 = vst.msk [vmem:[#allocation2 + $0x78] sm:$0xf] %vm3290, %v3255
        %3322 = vst.msk [vmem:[#allocation2 + $0x7c] sm:$0xf] %vm3290, %v3257
        %v3323 = vld [vmem:[#allocation2] sm:$0xf]
        %v3324 = vld [vmem:[#allocation2 + $0x4] sm:$0xf]
        %v3325 = vld [vmem:[#allocation2 + $0x8] sm:$0xf]
        %v3326 = vld [vmem:[#allocation2 + $0xc] sm:$0xf]
        %v3327 = vld [vmem:[#allocation2 + $0x10] sm:$0xf]
        %v3328 = vld [vmem:[#allocation2 + $0x14] sm:$0xf]
        %v3329 = vld [vmem:[#allocation2 + $0x18] sm:$0xf]
        %v3330 = vld [vmem:[#allocation2 + $0x1c] sm:$0xf]
        %v3331 = vld [vmem:[#allocation2 + $0x20] sm:$0xf]
        %v3332 = vld [vmem:[#allocation2 + $0x24] sm:$0xf]
        %v3333 = vld [vmem:[#allocation2 + $0x28] sm:$0xf]
        %v3334 = vld [vmem:[#allocation2 + $0x2c] sm:$0xf]
        %v3335 = vld [vmem:[#allocation2 + $0x30] sm:$0xf]
        %v3336 = vld [vmem:[#allocation2 + $0x34] sm:$0xf]
        %v3337 = vld [vmem:[#allocation2 + $0x38] sm:$0xf]
        %v3338 = vld [vmem:[#allocation2 + $0x3c] sm:$0xf]
        %v3339 = vld [vmem:[#allocation2 + $0x40] sm:$0xf]
        %v3340 = vld [vmem:[#allocation2 + $0x44] sm:$0xf]
        %v3341 = vld [vmem:[#allocation2 + $0x48] sm:$0xf]
        %v3342 = vld [vmem:[#allocation2 + $0x4c] sm:$0xf]
        %v3343 = vld [vmem:[#allocation2 + $0x50] sm:$0xf]
        %v3344 = vld [vmem:[#allocation2 + $0x54] sm:$0xf]
        %v3345 = vld [vmem:[#allocation2 + $0x58] sm:$0xf]
        %v3346 = vld [vmem:[#allocation2 + $0x5c] sm:$0xf]
        %v3347 = vld [vmem:[#allocation2 + $0x60] sm:$0xf]
        %v3348 = vld [vmem:[#allocation2 + $0x64] sm:$0xf]
        %v3349 = vld [vmem:[#allocation2 + $0x68] sm:$0xf]
        %v3350 = vld [vmem:[#allocation2 + $0x6c] sm:$0xf]
        %v3351 = vld [vmem:[#allocation2 + $0x70] sm:$0xf]
        %v3352 = vld [vmem:[#allocation2 + $0x74] sm:$0xf]
        %v3353 = vld [vmem:[#allocation2 + $0x78] sm:$0xf]
        %v3354 = vld [vmem:[#allocation2 + $0x7c] sm:$0xf]
        %v3355 = vld [vmem:[%s1] sm:$0xf]
        %v3356 = vld [vmem:[%s1 + $0x4] sm:$0xf]
        %v3357 = vld [vmem:[%s1 + $0x8] sm:$0xf]
        %v3358 = vld [vmem:[%s1 + $0xc] sm:$0xf]
        %v3359 = vld [vmem:[%s1 + $0x10] sm:$0xf]
        %v3360 = vld [vmem:[%s1 + $0x14] sm:$0xf]
        %v3361 = vld [vmem:[%s1 + $0x18] sm:$0xf]
        %v3362 = vld [vmem:[%s1 + $0x1c] sm:$0xf]
        %v3363 = vld [vmem:[%s1 + $0x20] sm:$0xf]
        %v3364 = vld [vmem:[%s2] sm:$0x1]
        %v3366 = vlaneseq
        %v3367 = vshrl.u32 %v3366, 7
        %v3368 = vsub.s32 0, %v3367
        %v3369 = vrot.slane %v3364, %v3368
        %v3403 = vunpack.c.l.b16 %v3323
        %v3404 = vunpack.c.l.b16 %v3324
        %v3405 = vunpack.c.l.b16 %v3325
        %v3406 = vunpack.c.l.b16 %v3326
        %v3407 = vunpack.c.l.b16 %v3327
        %v3408 = vunpack.c.l.b16 %v3328
        %v3409 = vunpack.c.l.b16 %v3329
        %v3410 = vunpack.c.l.b16 %v3330
        %v3411 = vunpack.c.l.b16 %v3331
        %v3412 = vunpack.c.l.b16 %v3332
        %v3413 = vunpack.c.l.b16 %v3333
        %v3414 = vunpack.c.l.b16 %v3334
        %v3415 = vunpack.c.l.b16 %v3335
        %v3416 = vunpack.c.l.b16 %v3336
        %v3417 = vunpack.c.l.b16 %v3337
        %v3418 = vunpack.c.l.b16 %v3338
        %v3419 = vunpack.c.l.b16 %v3339
        %v3420 = vunpack.c.l.b16 %v3340
        %v3421 = vunpack.c.l.b16 %v3341
        %v3422 = vunpack.c.l.b16 %v3342
        %v3423 = vunpack.c.l.b16 %v3343
        %v3424 = vunpack.c.l.b16 %v3344
        %v3425 = vunpack.c.l.b16 %v3345
        %v3426 = vunpack.c.l.b16 %v3346
        %v3427 = vunpack.c.l.b16 %v3347
        %v3428 = vunpack.c.l.b16 %v3348
        %v3429 = vunpack.c.l.b16 %v3349
        %v3430 = vunpack.c.l.b16 %v3350
        %v3431 = vunpack.c.l.b16 %v3351
        %v3432 = vunpack.c.l.b16 %v3352
        %v3433 = vunpack.c.l.b16 %v3353
        %v3434 = vunpack.c.l.b16 %v3354
        %v3435 = vpack.c.b16 %v3404, %v3403
        %v3436 = vpack.c.b16 %v3406, %v3405
        %v3437 = vpack.c.b16 %v3408, %v3407
        %v3438 = vpack.c.b16 %v3410, %v3409
        %v3439 = vpack.c.b16 %v3412, %v3411
        %v3440 = vpack.c.b16 %v3414, %v3413
        %v3441 = vpack.c.b16 %v3416, %v3415
        %v3442 = vpack.c.b16 %v3418, %v3417
        %v3443 = vpack.c.b16 %v3420, %v3419
        %v3444 = vpack.c.b16 %v3422, %v3421
        %v3445 = vpack.c.b16 %v3424, %v3423
        %v3446 = vpack.c.b16 %v3426, %v3425
        %v3447 = vpack.c.b16 %v3428, %v3427
        %v3448 = vpack.c.b16 %v3430, %v3429
        %v3449 = vpack.c.b16 %v3432, %v3431
        %v3450 = vpack.c.b16 %v3434, %v3433
        %v3460 = vunpack.c.l.b16 %v3355
        %v3461 = vunpack.c.l.b16 %v3356
        %v3462 = vunpack.c.l.b16 %v3357
        %v3463 = vunpack.c.l.b16 %v3358
        %v3464 = vunpack.c.l.b16 %v3359
        %v3465 = vunpack.c.l.b16 %v3360
        %v3466 = vunpack.c.l.b16 %v3361
        %v3467 = vunpack.c.l.b16 %v3362
        %v3468 = vunpack.c.l.b16 %v3363
        %v3469 = vpack.c.b16 %v3461, %v3460
        %v3470 = vpack.c.b16 %v3463, %v3462
        %v3471 = vpack.c.b16 %v3465, %v3464
        %v3472 = vpack.c.b16 %v3467, %v3466
        %v3473 = vpack.c.b16 %v3468, %v3468
        %vm3478 = vcmask 588800
        %v3480 = vsel %vm3478, %v3435, 0
        %v3483 = vsel %vm3478, %v3436, 0
        %v3486 = vsel %vm3478, %v3437, 0
        %v3489 = vsel %vm3478, %v3438, 0
        %v3492 = vsel %vm3478, %v3439, 0
        %v3495 = vsel %vm3478, %v3440, 0
        %v3498 = vsel %vm3478, %v3441, 0
        %v3501 = vsel %vm3478, %v3442, 0
        %v3504 = vsel %vm3478, %v3443, 0
        %v3507 = vsel %vm3478, %v3444, 0
        %v3510 = vsel %vm3478, %v3445, 0
        %v3513 = vsel %vm3478, %v3446, 0
        %v3516 = vsel %vm3478, %v3447, 0
        %v3519 = vsel %vm3478, %v3448, 0
        %v3522 = vsel %vm3478, %v3449, 0
        %v3525 = vsel %vm3478, %v3450, 0
        %vm3527 = vcmask 1043456
        %v3529 = vsel %vm3527, %v3473, 0
        %3531 = vmatprep.subr.bf16.mxu0 0
        %3532 = vmatpush1.bf16.msra.mxu0 0
        %3533 = vmatprep.subr.bf16.mxu0 0
        %3534 = vmatpush1.bf16.msra.mxu0 0
        %3535 = vmatprep.subr.bf16.mxu0 0
        %3536 = vmatpush1.bf16.msra.mxu0 0
        %3537 = vmatprep.subr.bf16.mxu0 0
        %3538 = vmatpush1.bf16.msra.mxu0 %v3529
        %3539 = vmatprep.subr.bf16.mxu0 0
        %3540 = vmatpush1.bf16.msra.mxu0 %v3472
        %3541 = vmatprep.subr.bf16.mxu0 0
        %3542 = vmatpush1.bf16.msra.mxu0 %v3471
        %3543 = vmatprep.subr.bf16.mxu0 0
        %3544 = vmatpush1.bf16.msra.mxu0 %v3470
        %3545 = vmatprep.subr.bf16.mxu0 0
        %3546 = vmatpush1.bf16.msra.mxu0 %v3469
        %3547 = vmatprep.subr.bf16.mxu0 0
        %3548 = vmatpush2.bf16.msra.mxu0 0
        %3549 = vmatprep.subr.bf16.mxu0 0
        %3550 = vmatpush2.bf16.msra.mxu0 0
        %3551 = vmatprep.subr.bf16.mxu0 0
        %3552 = vmatpush2.bf16.msra.mxu0 0
        %3553 = vmatprep.subr.bf16.mxu0 0
        %3554 = vmatpush2.bf16.msra.mxu0 0
        %3555 = vmatprep.subr.bf16.mxu0 0
        %3556 = vmatpush2.bf16.msra.mxu0 0
        %3557 = vmatprep.subr.bf16.mxu0 0
        %3558 = vmatpush2.bf16.msra.mxu0 0
        %3559 = vmatprep.subr.bf16.mxu0 0
        %3560 = vmatpush2.bf16.msra.mxu0 0
        %3561 = vmatprep.subr.bf16.mxu0 0
        %3562 = vmatpush2.bf16.msra.mxu0 0
        %3563 = vmatprep.mubr.bf16.mxu0 0
        %3564 = vmatmul.mubr.bf16.gmra.mxu0 %v3480
        %v3565 = vpop.f32.mrf.mxu0
        %v3566 = vadd.f32 %v3369, %v3565
        %v3567 = vpop.f32.mrf.mxu0
        %v3568 = vpop.f32.mrf.mxu0
        %v3569 = vadd.f32 %v3369, %v3568
        %v3570 = vpop.f32.mrf.mxu0
        %3571 = vmatprep.mubr.bf16.mxu0 0
        %3572 = vmatmul.mubr.bf16.gmra.mxu0 %v3483
        %v3573 = vpop.f32.mrf.mxu0
        %v3574 = vadd.f32 %v3369, %v3573
        %v3575 = vpop.f32.mrf.mxu0
        %v3576 = vpop.f32.mrf.mxu0
        %v3577 = vadd.f32 %v3369, %v3576
        %v3578 = vpop.f32.mrf.mxu0
        %3579 = vmatprep.mubr.bf16.mxu0 0
        %3580 = vmatmul.mubr.bf16.gmra.mxu0 %v3486
        %v3581 = vpop.f32.mrf.mxu0
        %v3582 = vadd.f32 %v3369, %v3581
        %v3583 = vpop.f32.mrf.mxu0
        %v3584 = vpop.f32.mrf.mxu0
        %v3585 = vadd.f32 %v3369, %v3584
        %v3586 = vpop.f32.mrf.mxu0
        %3587 = vmatprep.mubr.bf16.mxu0 0
        %3588 = vmatmul.mubr.bf16.gmra.mxu0 %v3489
        %v3589 = vpop.f32.mrf.mxu0
        %v3590 = vadd.f32 %v3369, %v3589
        %v3591 = vpop.f32.mrf.mxu0
        %v3592 = vpop.f32.mrf.mxu0
        %v3593 = vadd.f32 %v3369, %v3592
        %v3594 = vpop.f32.mrf.mxu0
        %3595 = vmatprep.mubr.bf16.mxu0 0
        %3596 = vmatmul.mubr.bf16.gmra.mxu0 %v3492
        %v3597 = vpop.f32.mrf.mxu0
        %v3598 = vadd.f32 %v3369, %v3597
        %v3599 = vpop.f32.mrf.mxu0
        %v3600 = vpop.f32.mrf.mxu0
        %v3601 = vadd.f32 %v3369, %v3600
        %v3602 = vpop.f32.mrf.mxu0
        %3603 = vmatprep.mubr.bf16.mxu0 0
        %3604 = vmatmul.mubr.bf16.gmra.mxu0 %v3495
        %v3605 = vpop.f32.mrf.mxu0
        %v3606 = vadd.f32 %v3369, %v3605
        %v3607 = vpop.f32.mrf.mxu0
        %v3608 = vpop.f32.mrf.mxu0
        %v3609 = vadd.f32 %v3369, %v3608
        %v3610 = vpop.f32.mrf.mxu0
        %3611 = vmatprep.mubr.bf16.mxu0 0
        %3612 = vmatmul.mubr.bf16.gmra.mxu0 %v3498
        %v3613 = vpop.f32.mrf.mxu0
        %v3614 = vadd.f32 %v3369, %v3613
        %v3615 = vpop.f32.mrf.mxu0
        %v3616 = vpop.f32.mrf.mxu0
        %v3617 = vadd.f32 %v3369, %v3616
        %v3618 = vpop.f32.mrf.mxu0
        %3619 = vmatprep.mubr.bf16.mxu0 0
        %3620 = vmatmul.mubr.bf16.gmra.mxu0 %v3501
        %v3621 = vpop.f32.mrf.mxu0
        %v3622 = vadd.f32 %v3369, %v3621
        %v3623 = vpop.f32.mrf.mxu0
        %v3624 = vpop.f32.mrf.mxu0
        %v3625 = vadd.f32 %v3369, %v3624
        %v3626 = vpop.f32.mrf.mxu0
        %3627 = vmatprep.mubr.bf16.mxu0 0
        %3628 = vmatmul.mubr.bf16.gmra.mxu0 %v3504
        %v3629 = vpop.f32.mrf.mxu0
        %v3630 = vadd.f32 %v3369, %v3629
        %v3631 = vpop.f32.mrf.mxu0
        %v3632 = vpop.f32.mrf.mxu0
        %v3633 = vadd.f32 %v3369, %v3632
        %v3634 = vpop.f32.mrf.mxu0
        %3635 = vmatprep.mubr.bf16.mxu0 0
        %3636 = vmatmul.mubr.bf16.gmra.mxu0 %v3507
        %v3637 = vpop.f32.mrf.mxu0
        %v3638 = vadd.f32 %v3369, %v3637
        %v3639 = vpop.f32.mrf.mxu0
        %v3640 = vpop.f32.mrf.mxu0
        %v3641 = vadd.f32 %v3369, %v3640
        %v3642 = vpop.f32.mrf.mxu0
        %3643 = vmatprep.mubr.bf16.mxu0 0
        %3644 = vmatmul.mubr.bf16.gmra.mxu0 %v3510
        %v3645 = vpop.f32.mrf.mxu0
        %v3646 = vadd.f32 %v3369, %v3645
        %v3647 = vpop.f32.mrf.mxu0
        %v3648 = vpop.f32.mrf.mxu0
        %v3649 = vadd.f32 %v3369, %v3648
        %v3650 = vpop.f32.mrf.mxu0
        %3651 = vmatprep.mubr.bf16.mxu0 0
        %3652 = vmatmul.mubr.bf16.gmra.mxu0 %v3513
        %v3653 = vpop.f32.mrf.mxu0
        %v3654 = vadd.f32 %v3369, %v3653
        %v3655 = vpop.f32.mrf.mxu0
        %v3656 = vpop.f32.mrf.mxu0
        %v3657 = vadd.f32 %v3369, %v3656
        %v3658 = vpop.f32.mrf.mxu0
        %3659 = vmatprep.mubr.bf16.mxu0 0
        %3660 = vmatmul.mubr.bf16.gmra.mxu0 %v3516
        %v3661 = vpop.f32.mrf.mxu0
        %v3662 = vadd.f32 %v3369, %v3661
        %v3663 = vpop.f32.mrf.mxu0
        %v3664 = vpop.f32.mrf.mxu0
        %v3665 = vadd.f32 %v3369, %v3664
        %v3666 = vpop.f32.mrf.mxu0
        %3667 = vmatprep.mubr.bf16.mxu0 0
        %3668 = vmatmul.mubr.bf16.gmra.mxu0 %v3519
        %v3669 = vpop.f32.mrf.mxu0
        %v3670 = vadd.f32 %v3369, %v3669
        %v3671 = vpop.f32.mrf.mxu0
        %v3672 = vpop.f32.mrf.mxu0
        %v3673 = vadd.f32 %v3369, %v3672
        %v3674 = vpop.f32.mrf.mxu0
        %3675 = vmatprep.mubr.bf16.mxu0 0
        %3676 = vmatmul.mubr.bf16.gmra.mxu0 %v3522
        %v3677 = vpop.f32.mrf.mxu0
        %v3678 = vadd.f32 %v3369, %v3677
        %v3679 = vpop.f32.mrf.mxu0
        %v3680 = vpop.f32.mrf.mxu0
        %v3681 = vadd.f32 %v3369, %v3680
        %v3682 = vpop.f32.mrf.mxu0
        %3683 = vmatprep.mubr.bf16.mxu0 0
        %3684 = vmatmul.mubr.bf16.gmra.mxu0 %v3525
        %v3685 = vpop.f32.mrf.mxu0
        %v3686 = vadd.f32 %v3369, %v3685
        %v3687 = vpop.f32.mrf.mxu0
        %v3688 = vpop.f32.mrf.mxu0
        %v3689 = vadd.f32 %v3369, %v3688
        %v3690 = vpop.f32.mrf.mxu0
        %3691 = vdwg.mxu0
        %v3692 = vmax.f32 %v3566, 0.0
        %v3693 = vmax.f32 %v3569, 0.0
        %v3694 = vmax.f32 %v3574, 0.0
        %v3695 = vmax.f32 %v3577, 0.0
        %v3696 = vmax.f32 %v3582, 0.0
        %v3697 = vmax.f32 %v3585, 0.0
        %v3698 = vmax.f32 %v3590, 0.0
        %v3699 = vmax.f32 %v3593, 0.0
        %v3700 = vmax.f32 %v3598, 0.0
        %v3701 = vmax.f32 %v3601, 0.0
        %v3702 = vmax.f32 %v3606, 0.0
        %v3703 = vmax.f32 %v3609, 0.0
        %v3704 = vmax.f32 %v3614, 0.0
        %v3705 = vmax.f32 %v3617, 0.0
        %v3706 = vmax.f32 %v3622, 0.0
        %v3707 = vmax.f32 %v3625, 0.0
        %v3708 = vmax.f32 %v3630, 0.0
        %v3709 = vmax.f32 %v3633, 0.0
        %v3710 = vmax.f32 %v3638, 0.0
        %v3711 = vmax.f32 %v3641, 0.0
        %v3712 = vmax.f32 %v3646, 0.0
        %v3713 = vmax.f32 %v3649, 0.0
        %v3714 = vmax.f32 %v3654, 0.0
        %v3715 = vmax.f32 %v3657, 0.0
        %v3716 = vmax.f32 %v3662, 0.0
        %v3717 = vmax.f32 %v3665, 0.0
        %v3718 = vmax.f32 %v3670, 0.0
        %v3719 = vmax.f32 %v3673, 0.0
        %v3720 = vmax.f32 %v3678, 0.0
        %v3721 = vmax.f32 %v3681, 0.0
        %v3722 = vmax.f32 %v3686, 0.0
        %v3723 = vmax.f32 %v3689, 0.0
        %3724 = vst [vmem:[%s163] sm:$0xff] %v3692
        %3725 = vst [vmem:[%s163 + $0x8] sm:$0xff] %v3693
        %3726 = vst [vmem:[%s163 + $0x10] sm:$0xff] %v3694
        %3727 = vst [vmem:[%s163 + $0x18] sm:$0xff] %v3695
        %3728 = vst [vmem:[%s163 + $0x20] sm:$0xff] %v3696
        %3729 = vst [vmem:[%s163 + $0x28] sm:$0xff] %v3697
        %3730 = vst [vmem:[%s163 + $0x30] sm:$0xff] %v3698
        %3731 = vst [vmem:[%s163 + $0x38] sm:$0xff] %v3699
        %3732 = vst [vmem:[%s163 + $0x40] sm:$0xff] %v3700
        %3733 = vst [vmem:[%s163 + $0x48] sm:$0xff] %v3701
        %3734 = vst [vmem:[%s163 + $0x50] sm:$0xff] %v3702
        %3735 = vst [vmem:[%s163 + $0x58] sm:$0xff] %v3703
        %3736 = vst [vmem:[%s163 + $0x60] sm:$0xff] %v3704
        %3737 = vst [vmem:[%s163 + $0x68] sm:$0xff] %v3705
        %3738 = vst [vmem:[%s163 + $0x70] sm:$0xff] %v3706
        %3739 = vst [vmem:[%s163 + $0x78] sm:$0xff] %v3707
        %3740 = vst [vmem:[%s163 + $0x80] sm:$0xff] %v3708
        %3741 = vst [vmem:[%s163 + $0x88] sm:$0xff] %v3709
        %3742 = vst [vmem:[%s163 + $0x90] sm:$0xff] %v3710
        %3743 = vst [vmem:[%s163 + $0x98] sm:$0xff] %v3711
        %3744 = vst [vmem:[%s163 + $0xa0] sm:$0xff] %v3712
        %3745 = vst [vmem:[%s163 + $0xa8] sm:$0xff] %v3713
        %3746 = vst [vmem:[%s163 + $0xb0] sm:$0xff] %v3714
        %3747 = vst [vmem:[%s163 + $0xb8] sm:$0xff] %v3715
        %3748 = vst [vmem:[%s163 + $0xc0] sm:$0xff] %v3716
        %3749 = vst [vmem:[%s163 + $0xc8] sm:$0xff] %v3717
        %3750 = vst [vmem:[%s163 + $0xd0] sm:$0xff] %v3718
        %3751 = vst [vmem:[%s163 + $0xd8] sm:$0xff] %v3719
        %3752 = vst [vmem:[%s163 + $0xe0] sm:$0xff] %v3720
        %3753 = vst [vmem:[%s163 + $0xe8] sm:$0xff] %v3721
        %3754 = vst [vmem:[%s163 + $0xf0] sm:$0xff] %v3722
        %3755 = vst [vmem:[%s163 + $0xf8] sm:$0xff] %v3723
        %s3756 = sand.u32 %s93, 1
        %s3757 = scalar_lea.sflag [#allocation4], %s3756
        %s3758 = sand.u32 %s93, 1
        %s3759 = smul.addr %s3758, 256
        %s3760 = scalar_lea.vmem [#allocation3], %s3759
        // Predicated region
        $region33: #{tpu_custom_call.1} parent=31 // pred_check
          %p3761 = pneg %p103
        $region34: #{tpu_custom_call.1} parent=31 // pred_check_branch
          %3763 = sbr.rel (%p3761) target = $region36
        $region35: #{tpu_custom_call.1} parent=31 // pred_region
          %s3765 = ssub.s32 4096, 4096
          %3766 = vsyncadd %s3757, %s3765
          %s3767 = smul.addr %s17, 32
          %s3768 = smul.addr %s3767, 128
          %s3769 = scalar_lea.hbm %s3, %s3768
          %s3770 = sshll.u32 %s3760, 4
          %s3771 = int_to_ptr.vmem [resolvable:$true] %s3770
          %3776 = dma.vmem_to_hbm [thread:$0]  %s3771, 4096, %s3769, %s3757, 128, 128, 8
        $region36: #{tpu_custom_call.1} parent=31 // pred_fallthru
          _
      $region32: #{tpu_custom_call.1} parent=5 // pred_fallthru
        _
      %p3777 = scmp.le.s32.totalorder 2, %s12
      // Predicated region
      $region37: #{tpu_custom_call.1} parent=5 // pred_check
        %p3778 = pneg %p3777
      $region38: #{tpu_custom_call.1} parent=5 // pred_check_branch
        %3780 = sbr.rel (%p3778) target = $region40
      $region39: #{tpu_custom_call.1} parent=5 // pred_region
        %s3781 = ssub.s32 %s12, 2
        // Predicated region
        $region41: #{tpu_custom_call.1} parent=39 // pred_check
          %p3782 = pneg %p109
        $region42: #{tpu_custom_call.1} parent=39 // pred_check_branch
          %3784 = sbr.rel (%p3782) target = $region44
        $region43: #{tpu_custom_call.1} parent=39 // pred_region
          %s3785 = sand.u32 %s94, 1
          %s3786 = scalar_lea.sflag [#allocation4], %s3785
          %s3787 = sand.u32 %s94, 1
          %s3788 = smul.addr %s3787, 256
          %s3789 = scalar_lea.vmem [#allocation3], %s3788
          %3790 = dma.done %s3786, 4096
        $region44: #{tpu_custom_call.1} parent=39 // pred_fallthru
          _
      $region40: #{tpu_custom_call.1} parent=5 // pred_fallthru
        _
    $region6: #{tpu_custom_call.1} parent=1 // loop_footer
      %s16 = sadd.s32 1, %s12
    $region7: #{tpu_custom_call.1} parent=1 // loop_footer_branch
      %11 = sbr.rel target = $region3
    $region8: #{tpu_custom_call.1} parent=1 // loop_exit
      _
    %3791 = vsyncpa [#allocation4], 1
    %s3792 = scalar_lea.sflag [#allocation4], 1
    %3793 = vsyncpa %s3792, 1

</llo_original>
